<compile_context>
chip_gen: v7x
topology: tpu7x:2x2x1
jax: 0.10.0
libtpu: 0.0.40
codegen_flags: <defaults>
</compile_context>

<pallas_src>
import jax
import jax.numpy as jnp
import numpy as np
from jax import lax
from jax.experimental import pallas as pl
from jax.experimental.pallas import tpu as pltpu


# ------------------------------ Pallas kernel --------------------------------
def _make_kernel(kt, c_in, c_out, c2, t_out, bt, nt, act):
    """Fused temporal conv (+align, +bias, +activation) for one (bt, nt) block."""

    def kernel(x_ref, w_ref, b_ref, o_ref):
        # x_ref: (bt, c_in, T, nt)   w_ref: (kt, c2, c_in)   b_ref: (c2, 1, 1)
        # o_ref: (bt, c_out, t_out, nt)
        # Bias broadcast hoisted out of the batch loop (broadcast_in_dim is not
        # CSE'd by JAX, so build it once per grid step).
        bias = jnp.broadcast_to(b_ref[...].astype(jnp.float32), (c2, t_out, nt))

        for bb in range(bt):                       # bt small & static -> unrolled
            acc = bias
            # kt accumulating GEMMs over shifted time windows -- reads the ref
            # slices directly, no materialized im2col temp.
            for k in range(kt):
                acc = acc + lax.dot_general(
                    w_ref[k], x_ref[bb, :, k:k + t_out, :],
                    (((1,), (0,)), ((), ())),
                    preferred_element_type=jnp.float32)   # (c2, t_out, nt) f32

            if act == "GLU":
                out = acc[:c_out] * jax.nn.sigmoid(acc[c_out:])
            elif act == "sigmoid":
                out = jax.nn.sigmoid(acc)
            else:                                  # relu
                out = jnp.maximum(acc, 0.0)

            # NOTE: padded node lanes (N..n_pad) compute activation(bias) on the
            # zero-padded input; they are sliced off wrapper-side.
            o_ref[bb] = out.astype(o_ref.dtype)

    return kernel


# --------------------------- hardware introspection ---------------------------
def _tpu_info():
    try:
        if hasattr(pltpu, "get_tpu_info"):
            return pltpu.get_tpu_info()
    except Exception:
        pass
    return None


def _device_kind():
    try:
        return jax.devices()[0].device_kind.lower()
    except Exception:
        return ""


def _num_tensorcores():
    info = _tpu_info()
    if info is not None:
        for name in ("num_cores", "tensorcore_count", "num_tensorcores",
                     "cores_per_chip"):
            v = getattr(info, name, None)
            if isinstance(v, int) and v > 0:
                return v
    return 2 if "v7" in _device_kind() else 1


def _vmem_budget():
    """Returns (tiling budget, vmem_limit_bytes) sized per TPU generation."""
    cap = None
    info = _tpu_info()
    if info is not None:
        cap = getattr(info, "vmem_capacity_bytes", None)
    if not cap:
        cap = 64 * 1024 * 1024              # conservative fallback (v7x per-TC)
    if "v7" in _device_kind():              # v7x: 64 MiB per TensorCore
        cap = min(cap, 64 * 1024 * 1024)
    budget = min(cap // 3, 48 * 1024 * 1024)        # v5e/v6e ~42 MiB, v7x ~21 MiB
    limit = min(cap * 3 // 4, 96 * 1024 * 1024)     # v5e/v6e 96 MiB,  v7x 48 MiB
    return budget, limit


# ------------------------------ tiling heuristic ------------------------------
def _choose_tiles(B, c_in, c_out, c2, T, t_out, N, x_bytes, out_bytes,
                  budget_bytes, want_multi_step):
    n128 = max(128, ((N + 127) // 128) * 128)

    def n_pad_for(nt_):
        return ((N + nt_ - 1) // nt_) * nt_

    def vmem_est(bt_, nt_):
        x_blk = bt_ * c_in * T * nt_ * x_bytes
        o_blk = bt_ * c_out * t_out * nt_ * out_bytes
        temps = (bt_ * c2 + c2 + c_in) * t_out * nt_ * 4   # accs + bias + x slice
        return 2 * (x_blk + o_blk) + temps                 # double-buffered blocks

    # Lane-tile candidates: the whole (128-padded) node axis first (capped at
    # 2048), then halves down to 128.
    nt_cands = []
    v = min(n128, 2048)
    while v >= 128:
        nt_cands.append(v)
        if v == 128:
            break
        v = max(128, (v // 2) // 128 * 128)

    # Batch-tile candidates: divisors of B (capped), descending.
    bt_cands = [d for d in range(min(B, 8), 0, -1) if B % d == 0]

    # For every lane tile, re-run the batch-tile search; then pick the option
    # with least node padding, widest lanes, biggest batch tile.
    options = []
    for nt_ in nt_cands:
        for bt_ in bt_cands:
            if vmem_est(bt_, nt_) <= budget_bytes:
                options.append((bt_, nt_))
                break
    if options:
        bt, nt = min(options, key=lambda o: (n_pad_for(o[1]), -o[1], -o[0]))
    else:
        bt, nt = 1, 128                    # degenerate fallback; vmem_limit > budget

    # Multi-TensorCore (v7x): guarantee >= 2 parallel grid steps.
    if want_multi_step:
        steps = (B // bt) * (n_pad_for(nt) // nt)
        if steps < 2:
            if bt > 1:                     # splitting the batch axis is free
                smaller = [d for d in bt_cands if d < bt]
                bt = smaller[0] if smaller else 1
            elif n128 >= 256:              # B == 1: split the node axis
                nt = max(128, (n128 // 2) // 128 * 128)

    return bt, nt, n_pad_for(nt)


# ------------------------------ wrapper ---------------------------------------
def temporal_conv_layer_pallas(x, weights, kt, c_in, c_out, act="relu",
                               use_bf16_matmul=False, out_dtype=None):
    """x: (B, c_in, T, N). Returns (B, c_out, T-kt+1, N) in out_dtype (def. x.dtype).

    use_bf16_matmul=True halves the dominant HBM read traffic and is recommended
    on all TPU generations (v5e/v6e/v7x) when ~1e-2 relative tolerance is
    acceptable; the fused align/residual path is then rounded to bf16.
    """
    B, C, T, N = x.shape
    assert C == c_in
    t_out = T - kt + 1
    c2 = 2 * c_out if act == "GLU" else c_out
    out_dtype = x.dtype if out_dtype is None else out_dtype

    # ---- fuse align branch into the kt-1 temporal tap of the conv weights ----
    w = weights["conv_w"].astype(jnp.float32)        # (c2, c_in, kt)
    b = weights["conv_b"].astype(jnp.float32)        # (c2,)
    if c_in > c_out:                                 # 1x1-conv align
        a_mat = weights["align_w"].astype(jnp.float32)
        b = b.at[:c_out].add(weights["align_b"].astype(jnp.float32))
    else:                                            # identity / zero-pad align
        a_mat = jnp.eye(c_out, c_in, dtype=jnp.float32)
    w = w.at[:c_out, :, kt - 1].add(a_mat)

    # ---- pack: one (c2, c_in) tap matrix per temporal offset ------------------
    w_taps = jnp.transpose(w, (2, 0, 1))             # (kt, c2, c_in)
    b_packed = b.reshape(c2, 1, 1)

    matmul_dtype = jnp.bfloat16 if use_bf16_matmul else x.dtype
    x_mm = x.astype(matmul_dtype)
    w_taps = w_taps.astype(matmul_dtype)

    # ---- choose tiles from per-generation VMEM budget -------------------------
    x_bytes = jnp.dtype(matmul_dtype).itemsize
    out_bytes = jnp.dtype(out_dtype).itemsize
    budget, vmem_limit = _vmem_budget()
    bt, nt, n_pad = _choose_tiles(B, c_in, c_out, c2, T, t_out, N,
                                  x_bytes, out_bytes, budget,
                                  want_multi_step=_num_tensorcores() >= 2)

    # ---- pad node axis to a multiple of the chosen lane tile ------------------
    if n_pad != N:
        x_mm = jnp.pad(x_mm, ((0, 0), (0, 0), (0, 0), (0, n_pad - N)))

    kernel = _make_kernel(kt, c_in, c_out, c2, t_out, bt, nt, act)
    out = pl.pallas_call(
        kernel,
        out_shape=jax.ShapeDtypeStruct((B, c_out, t_out, n_pad), out_dtype),
        grid=(B // bt, n_pad // nt),
        in_specs=[
            pl.BlockSpec((bt, c_in, T, nt), lambda bi, ni: (bi, 0, 0, ni)),
            pl.BlockSpec((kt, c2, c_in), lambda bi, ni: (0, 0, 0)),
            pl.BlockSpec((c2, 1, 1), lambda bi, ni: (0, 0, 0)),
        ],
        out_specs=pl.BlockSpec((bt, c_out, t_out, nt),
                               lambda bi, ni: (bi, 0, 0, ni)),
        compiler_params=pltpu.CompilerParams(
            dimension_semantics=("parallel", "parallel"),
            vmem_limit_bytes=vmem_limit),
    )(x_mm, w_taps, b_packed)

    if n_pad != N:
        out = out[:, :, :, :N]
    return out


# ----------------------------- pure-JAX reference -----------------------------
def temporal_conv_layer_ref(x, weights, kt, c_in, c_out, act="relu"):
    dn = ("NCHW", "OIHW", "NCHW")
    w = weights["conv_w"][..., None]                 # (c2, c_in, kt, 1)
    conv = lax.conv_general_dilated(x, w, (1, 1), "VALID", dimension_numbers=dn)
    conv = conv + weights["conv_b"][None, :, None, None]
    if c_in > c_out:
        wa = weights["align_w"][:, :, None, None]
        x_al = lax.conv_general_dilated(x, wa, (1, 1), "VALID",
                                        dimension_numbers=dn)
        x_al = x_al + weights["align_b"][None, :, None, None]
    elif c_in < c_out:
        x_al = jnp.pad(x, ((0, 0), (0, c_out - c_in), (0, 0), (0, 0)))
    else:
        x_al = x
    x_in = x_al[:, :, kt - 1:, :]
    if act == "GLU":
        return (conv[:, :c_out] + x_in) * jax.nn.sigmoid(conv[:, c_out:])
    if act == "sigmoid":
        return jax.nn.sigmoid(conv + x_in)
    return jnp.maximum(conv + x_in, 0.0)


def _make_weights(key, kt, c_in, c_out, act):
    c2 = 2 * c_out if act == "GLU" else c_out
    k1, k2, k3, k4 = jax.random.split(key, 4)
    scale = 1.0 / np.sqrt(c_in * kt)
    weights = {
        "conv_w": jax.random.uniform(k1, (c2, c_in, kt), jnp.float32,
                                     -scale, scale),
        "conv_b": jax.random.uniform(k2, (c2,), jnp.float32, -scale, scale),
    }
    if c_in > c_out:
        s = 1.0 / np.sqrt(c_in)
        weights["align_w"] = jax.random.uniform(k3, (c_out, c_in), jnp.float32,
                                                -s, s)
        weights["align_b"] = jax.random.uniform(k4, (c_out,), jnp.float32, -s, s)
    return weights


if __name__ == "__main__":
    key = jax.random.PRNGKey(0)

    configs = [
        # (B, c_in, c_out, T, N, kt, act, use_bf16, rtol, atol)
        (2, 4, 8, 12, 16, 3, "GLU", False, 1e-4, 1e-4),      # align = zero-pad
        (2, 8, 4, 12, 16, 3, "relu", False, 1e-4, 1e-4),     # align = 1x1 conv
        (2, 4, 4, 12, 16, 3, "sigmoid", False, 1e-4, 1e-4),  # align = identity
        (1, 4, 4, 10, 140, 2, "relu", False, 1e-4, 1e-4),    # B=1, padded nodes
        (4, 8, 16, 12, 16, 3, "GLU", True, 5e-2, 5e-2),      # bf16 MXU path
    ]

    for (B, c_in, c_out, T, N, kt, act, use_bf16, rtol, atol) in configs:
        key, kx, kw = jax.random.split(key, 3)
        x = jax.random.normal(kx, (B, c_in, T, N), jnp.float32)
        weights = _make_weights(kw, kt, c_in, c_out, act)

        out = temporal_conv_layer_pallas(x, weights, kt, c_in, c_out, act,
                                         use_bf16_matmul=use_bf16)
        out = jax.block_until_ready(out)

        ref = temporal_conv_layer_ref(x, weights, kt, c_in, c_out, act)
        np.testing.assert_allclose(np.asarray(out), np.asarray(ref),
                                   rtol=rtol, atol=atol)

    print("KERNEL_OK")
</pallas_src>

<mosaic_0001>
module attributes {stable_mosaic.version = 11 : i64} {
  func.func @kernel(%arg0: i32, %arg1: i32, %arg2: memref<2x4x12x128xf32, #tpu.memory_space<vmem>>, %arg3: memref<3x16x4xf32, #tpu.memory_space<vmem>>, %arg4: memref<16x1x1xf32, #tpu.memory_space<vmem>>, %arg5: memref<2x8x10x128xf32, #tpu.memory_space<vmem>>) attributes {dimension_semantics = [#tpu.dimension_semantics<parallel>, #tpu.dimension_semantics<parallel>], iteration_bounds = array<i64: 1, 1>, scalar_prefetch = 0 : i64, scratch_operands = 0 : i64, tpu.core_type = #tpu.core_type<tc>, window_params = [{transform_indices = @transform_0, window_bounds = array<i64: 2, 4, 12, 128>}, {pipeline_mode = #tpu.pipeline_mode<synchronous>, transform_indices = @transform_1, window_bounds = array<i64: 3, 16, 4>}, {pipeline_mode = #tpu.pipeline_mode<synchronous>, transform_indices = @transform_2, window_bounds = array<i64: 16, 1, 1>}, {transform_indices = @transform_3, window_bounds = array<i64: 2, 8, 10, 128>}]} {
    %c0 = arith.constant 0 : index
    %c0_0 = arith.constant 0 : index
    %c0_1 = arith.constant 0 : index
    %0 = vector.load %arg4[%c0, %c0_0, %c0_1] : memref<16x1x1xf32, #tpu.memory_space<vmem>>, vector<16x1x1xf32>
    %1 = vector.shape_cast %0 : vector<16x1x1xf32> to vector<16x1x1xf32>
    %2 = vector.broadcast %1 : vector<16x1x1xf32> to vector<16x10x128xf32>
    %c0_2 = arith.constant 0 : index
    %c0_3 = arith.constant 0 : index
    %c0_4 = arith.constant 0 : index
    %3 = vector.load %arg3[%c0_2, %c0_3, %c0_4] : memref<3x16x4xf32, #tpu.memory_space<vmem>>, vector<1x16x4xf32>
    %4 = vector.shape_cast %3 : vector<1x16x4xf32> to vector<16x4xf32>
    %c0_5 = arith.constant 0 : index
    %c0_6 = arith.constant 0 : index
    %c0_7 = arith.constant 0 : index
    %c0_8 = arith.constant 0 : index
    %5 = vector.load %arg2[%c0_5, %c0_6, %c0_7, %c0_8] : memref<2x4x12x128xf32, #tpu.memory_space<vmem>>, vector<1x4x10x128xf32>
    %6 = vector.shape_cast %5 : vector<1x4x10x128xf32> to vector<4x10x128xf32>
    %cst = arith.constant dense<0.000000e+00> : vector<16x10x128xf32>
    %7 = tpu.matmul %4, %6, %cst {dimension_numbers = #tpu.dot_dimension_numbers<[1], [0], [0], [1, 2], [0, 0, 1, 1, 1, 2], [], []>} : vector<16x4xf32>, vector<4x10x128xf32>, vector<16x10x128xf32> -> vector<16x10x128xf32>
    %8 = arith.addf %2, %7 : vector<16x10x128xf32>
    %c1 = arith.constant 1 : index
    %c0_9 = arith.constant 0 : index
    %c0_10 = arith.constant 0 : index
    %9 = vector.load %arg3[%c1, %c0_9, %c0_10] : memref<3x16x4xf32, #tpu.memory_space<vmem>>, vector<1x16x4xf32>
    %10 = vector.shape_cast %9 : vector<1x16x4xf32> to vector<16x4xf32>
    %c0_11 = arith.constant 0 : index
    %c0_12 = arith.constant 0 : index
    %c1_13 = arith.constant 1 : index
    %c0_14 = arith.constant 0 : index
    %11 = vector.load %arg2[%c0_11, %c0_12, %c1_13, %c0_14] : memref<2x4x12x128xf32, #tpu.memory_space<vmem>>, vector<1x4x10x128xf32>
    %12 = vector.shape_cast %11 : vector<1x4x10x128xf32> to vector<4x10x128xf32>
    %cst_15 = arith.constant dense<0.000000e+00> : vector<16x10x128xf32>
    %13 = tpu.matmul %10, %12, %cst_15 {dimension_numbers = #tpu.dot_dimension_numbers<[1], [0], [0], [1, 2], [0, 0, 1, 1, 1, 2], [], []>} : vector<16x4xf32>, vector<4x10x128xf32>, vector<16x10x128xf32> -> vector<16x10x128xf32>
    %14 = arith.addf %8, %13 : vector<16x10x128xf32>
    %c2 = arith.constant 2 : index
    %c0_16 = arith.constant 0 : index
    %c0_17 = arith.constant 0 : index
    %15 = vector.load %arg3[%c2, %c0_16, %c0_17] : memref<3x16x4xf32, #tpu.memory_space<vmem>>, vector<1x16x4xf32>
    %16 = vector.shape_cast %15 : vector<1x16x4xf32> to vector<16x4xf32>
    %c0_18 = arith.constant 0 : index
    %c0_19 = arith.constant 0 : index
    %c2_20 = arith.constant 2 : index
    %c0_21 = arith.constant 0 : index
    %17 = vector.load %arg2[%c0_18, %c0_19, %c2_20, %c0_21] : memref<2x4x12x128xf32, #tpu.memory_space<vmem>>, vector<1x4x10x128xf32>
    %18 = vector.shape_cast %17 : vector<1x4x10x128xf32> to vector<4x10x128xf32>
    %cst_22 = arith.constant dense<0.000000e+00> : vector<16x10x128xf32>
    %19 = tpu.matmul %16, %18, %cst_22 {dimension_numbers = #tpu.dot_dimension_numbers<[1], [0], [0], [1, 2], [0, 0, 1, 1, 1, 2], [], []>} : vector<16x4xf32>, vector<4x10x128xf32>, vector<16x10x128xf32> -> vector<16x10x128xf32>
    %20 = arith.addf %14, %19 : vector<16x10x128xf32>
    %21 = vector.extract_strided_slice %20 {offsets = [0, 0, 0], sizes = [8, 10, 128], strides = [1, 1, 1]} : vector<16x10x128xf32> to vector<8x10x128xf32>
    %22 = vector.extract_strided_slice %20 {offsets = [8, 0, 0], sizes = [8, 10, 128], strides = [1, 1, 1]} : vector<16x10x128xf32> to vector<8x10x128xf32>
    %23 = arith.negf %22 : vector<8x10x128xf32>
    %24 = math.exp %23 : vector<8x10x128xf32>
    %cst_23 = arith.constant 1.000000e+00 : f32
    %25 = vector.broadcast %cst_23 : f32 to vector<8x10x128xf32>
    %26 = arith.addf %25, %24 : vector<8x10x128xf32>
    %27 = arith.divf %25, %26 : vector<8x10x128xf32>
    %28 = arith.mulf %21, %27 : vector<8x10x128xf32>
    %c0_24 = arith.constant 0 : index
    %c0_25 = arith.constant 0 : index
    %c0_26 = arith.constant 0 : index
    %c0_27 = arith.constant 0 : index
    %29 = vector.load %arg5[%c0_24, %c0_25, %c0_26, %c0_27] : memref<2x8x10x128xf32, #tpu.memory_space<vmem>>, vector<1x8x10x128xf32>
    %30 = vector.shape_cast %29 : vector<1x8x10x128xf32> to vector<8x10x128xf32>
    %31 = vector.shape_cast %28 : vector<8x10x128xf32> to vector<1x8x10x128xf32>
    tpu.vector_store %arg5[%c0_24, %c0_25, %c0_26, %c0_27], %31 {strides = array<i32>} : memref<2x8x10x128xf32, #tpu.memory_space<vmem>>, vector<1x8x10x128xf32>,
    %c0_28 = arith.constant 0 : index
    %c0_29 = arith.constant 0 : index
    %c0_30 = arith.constant 0 : index
    %32 = vector.load %arg3[%c0_28, %c0_29, %c0_30] : memref<3x16x4xf32, #tpu.memory_space<vmem>>, vector<1x16x4xf32>
    %33 = vector.shape_cast %32 : vector<1x16x4xf32> to vector<16x4xf32>
    %c1_31 = arith.constant 1 : index
    %c0_32 = arith.constant 0 : index
    %c0_33 = arith.constant 0 : index
    %c0_34 = arith.constant 0 : index
    %34 = vector.load %arg2[%c1_31, %c0_32, %c0_33, %c0_34] : memref<2x4x12x128xf32, #tpu.memory_space<vmem>>, vector<1x4x10x128xf32>
    %35 = vector.shape_cast %34 : vector<1x4x10x128xf32> to vector<4x10x128xf32>
    %cst_35 = arith.constant dense<0.000000e+00> : vector<16x10x128xf32>
    %36 = tpu.matmul %33, %35, %cst_35 {dimension_numbers = #tpu.dot_dimension_numbers<[1], [0], [0], [1, 2], [0, 0, 1, 1, 1, 2], [], []>} : vector<16x4xf32>, vector<4x10x128xf32>, vector<16x10x128xf32> -> vector<16x10x128xf32>
    %37 = arith.addf %2, %36 : vector<16x10x128xf32>
    %c1_36 = arith.constant 1 : index
    %c0_37 = arith.constant 0 : index
    %c0_38 = arith.constant 0 : index
    %38 = vector.load %arg3[%c1_36, %c0_37, %c0_38] : memref<3x16x4xf32, #tpu.memory_space<vmem>>, vector<1x16x4xf32>
    %39 = vector.shape_cast %38 : vector<1x16x4xf32> to vector<16x4xf32>
    %c1_39 = arith.constant 1 : index
    %c0_40 = arith.constant 0 : index
    %c1_41 = arith.constant 1 : index
    %c0_42 = arith.constant 0 : index
    %40 = vector.load %arg2[%c1_39, %c0_40, %c1_41, %c0_42] : memref<2x4x12x128xf32, #tpu.memory_space<vmem>>, vector<1x4x10x128xf32>
    %41 = vector.shape_cast %40 : vector<1x4x10x128xf32> to vector<4x10x128xf32>
    %cst_43 = arith.constant dense<0.000000e+00> : vector<16x10x128xf32>
    %42 = tpu.matmul %39, %41, %cst_43 {dimension_numbers = #tpu.dot_dimension_numbers<[1], [0], [0], [1, 2], [0, 0, 1, 1, 1, 2], [], []>} : vector<16x4xf32>, vector<4x10x128xf32>, vector<16x10x128xf32> -> vector<16x10x128xf32>
    %43 = arith.addf %37, %42 : vector<16x10x128xf32>
    %c2_44 = arith.constant 2 : index
    %c0_45 = arith.constant 0 : index
    %c0_46 = arith.constant 0 : index
    %44 = vector.load %arg3[%c2_44, %c0_45, %c0_46] : memref<3x16x4xf32, #tpu.memory_space<vmem>>, vector<1x16x4xf32>
    %45 = vector.shape_cast %44 : vector<1x16x4xf32> to vector<16x4xf32>
    %c1_47 = arith.constant 1 : index
    %c0_48 = arith.constant 0 : index
    %c2_49 = arith.constant 2 : index
    %c0_50 = arith.constant 0 : index
    %46 = vector.load %arg2[%c1_47, %c0_48, %c2_49, %c0_50] : memref<2x4x12x128xf32, #tpu.memory_space<vmem>>, vector<1x4x10x128xf32>
    %47 = vector.shape_cast %46 : vector<1x4x10x128xf32> to vector<4x10x128xf32>
    %cst_51 = arith.constant dense<0.000000e+00> : vector<16x10x128xf32>
    %48 = tpu.matmul %45, %47, %cst_51 {dimension_numbers = #tpu.dot_dimension_numbers<[1], [0], [0], [1, 2], [0, 0, 1, 1, 1, 2], [], []>} : vector<16x4xf32>, vector<4x10x128xf32>, vector<16x10x128xf32> -> vector<16x10x128xf32>
    %49 = arith.addf %43, %48 : vector<16x10x128xf32>
    %50 = vector.extract_strided_slice %49 {offsets = [0, 0, 0], sizes = [8, 10, 128], strides = [1, 1, 1]} : vector<16x10x128xf32> to vector<8x10x128xf32>
    %51 = vector.extract_strided_slice %49 {offsets = [8, 0, 0], sizes = [8, 10, 128], strides = [1, 1, 1]} : vector<16x10x128xf32> to vector<8x10x128xf32>
    %52 = arith.negf %51 : vector<8x10x128xf32>
    %53 = math.exp %52 : vector<8x10x128xf32>
    %cst_52 = arith.constant 1.000000e+00 : f32
    %54 = vector.broadcast %cst_52 : f32 to vector<8x10x128xf32>
    %55 = arith.addf %54, %53 : vector<8x10x128xf32>
    %56 = arith.divf %54, %55 : vector<8x10x128xf32>
    %57 = arith.mulf %50, %56 : vector<8x10x128xf32>
    %c1_53 = arith.constant 1 : index
    %c0_54 = arith.constant 0 : index
    %c0_55 = arith.constant 0 : index
    %c0_56 = arith.constant 0 : index
    %58 = vector.load %arg5[%c1_53, %c0_54, %c0_55, %c0_56] : memref<2x8x10x128xf32, #tpu.memory_space<vmem>>, vector<1x8x10x128xf32>
    %59 = vector.shape_cast %58 : vector<1x8x10x128xf32> to vector<8x10x128xf32>
    %60 = vector.shape_cast %57 : vector<8x10x128xf32> to vector<1x8x10x128xf32>
    tpu.vector_store %arg5[%c1_53, %c0_54, %c0_55, %c0_56], %60 {strides = array<i32>} : memref<2x8x10x128xf32, #tpu.memory_space<vmem>>, vector<1x8x10x128xf32>,
    return
  }
  func.func @transform_0(%arg0: i32, %arg1: i32) -> (i32, i32, i32, i32) {
    %c0_i32 = arith.constant 0 : i32
    %c0_i32_0 = arith.constant 0 : i32
    %c0_i32_1 = arith.constant 0 : i32
    return %arg0, %c0_i32, %c0_i32_0, %arg1 : i32, i32, i32, i32
  }
  func.func @transform_1(%arg0: i32, %arg1: i32) -> (i32, i32, i32) {
    %c0_i32 = arith.constant 0 : i32
    %c0_i32_0 = arith.constant 0 : i32
    %c0_i32_1 = arith.constant 0 : i32
    %c0_i32_2 = arith.constant 0 : i32
    return %c0_i32, %c0_i32_0, %c0_i32_1 : i32, i32, i32
  }
  func.func @transform_2(%arg0: i32, %arg1: i32) -> (i32, i32, i32) {
    %c0_i32 = arith.constant 0 : i32
    %c0_i32_0 = arith.constant 0 : i32
    %c0_i32_1 = arith.constant 0 : i32
    %c0_i32_2 = arith.constant 0 : i32
    return %c0_i32, %c0_i32_0, %c0_i32_1 : i32, i32, i32
  }
  func.func @transform_3(%arg0: i32, %arg1: i32) -> (i32, i32, i32, i32) {
    %c0_i32 = arith.constant 0 : i32
    %c0_i32_0 = arith.constant 0 : i32
    %c0_i32_1 = arith.constant 0 : i32
    return %arg0, %c0_i32, %c0_i32_0, %arg1 : i32, i32, i32, i32
  }
}

</mosaic_0001>

<llo_original>
// kernel: tpu_custom_call.1
$region0: #{tpu_custom_call.1}
  #allocation0 [shape = 'u32[]', space=smem, size = 0x4, offset = 0x4, fixed_abs, tag = 'smem constant byte address 0x4 - core index']
  #allocation1 [shape = 'u32[144,128]{1,0:T(1,128)}', space=vmem, size = 0x12000, scoped, tag = 'internal scratch']
  %s0 = inlined_call_operand.vmem [shape: f32[2,4,12,128], index: 0, kind: input, shape index: {}]
  %s1 = inlined_call_operand.vmem [shape: f32[3,16,4], index: 1, kind: input, shape index: {}]
  %s2 = inlined_call_operand.vmem [shape: f32[16,1,1], index: 2, kind: input, shape index: {}]
  %s3 = inlined_call_operand.vmem [shape: f32[2,8,10,128], index: 3, kind: output, shape index: {}]
  %s4 = sld [smem:[#allocation0]]
  $region22: #{tpu_custom_call.1} parent=0
    _
  %s6 = ssub.s32 1, %s4
  %s7 = scalar_select 0, %s6, %s4
  // Predicated region
  $region2: #{tpu_custom_call.1} parent=0 // pred_check
    _
  $region3: #{tpu_custom_call.1} parent=0 // pred_check_branch
    %9 = sbr.rel (0) target = $region5
  $region4: #{tpu_custom_call.1} parent=0 // pred_region
    _
  $region5: #{tpu_custom_call.1} parent=0 // pred_fallthru
    _
  // Predicated region
  $region6: #{tpu_custom_call.1} parent=0 // pred_check
    _
  $region7: #{tpu_custom_call.1} parent=0 // pred_check_branch
    %11 = sbr.rel (0) target = $region9
  $region8: #{tpu_custom_call.1} parent=0 // pred_region
    _
  $region9: #{tpu_custom_call.1} parent=0 // pred_fallthru
    _
  // Predicated region
  $region10: #{tpu_custom_call.1} parent=0 // pred_check
    _
  $region11: #{tpu_custom_call.1} parent=0 // pred_check_branch
    %13 = sbr.rel (0) target = $region13
  $region12: #{tpu_custom_call.1} parent=0 // pred_region
    _
  $region13: #{tpu_custom_call.1} parent=0 // pred_fallthru
    _
  %v14 = vld [vmem:[%s2] sm:$0x1]
  %v15 = vld [vmem:[%s2 + $0x1] sm:$0x1]
  %v16 = vld [vmem:[%s2 + $0x2] sm:$0x1]
  %v17 = vld [vmem:[%s2 + $0x3] sm:$0x1]
  %v18 = vld [vmem:[%s2 + $0x4] sm:$0x1]
  %v19 = vld [vmem:[%s2 + $0x5] sm:$0x1]
  %v20 = vld [vmem:[%s2 + $0x6] sm:$0x1]
  %v21 = vld [vmem:[%s2 + $0x7] sm:$0x1]
  %v22 = vld [vmem:[%s2 + $0x8] sm:$0x1]
  %v23 = vld [vmem:[%s2 + $0x9] sm:$0x1]
  %v24 = vld [vmem:[%s2 + $0xa] sm:$0x1]
  %v25 = vld [vmem:[%s2 + $0xb] sm:$0x1]
  %v26 = vld [vmem:[%s2 + $0xc] sm:$0x1]
  %v27 = vld [vmem:[%s2 + $0xd] sm:$0x1]
  %v28 = vld [vmem:[%s2 + $0xe] sm:$0x1]
  %v29 = vld [vmem:[%s2 + $0xf] sm:$0x1]
  %v46 = vlaneseq
  %v47 = vshrl.u32 %v46, 7
  %v48 = vsub.s32 0, %v47
  %v49 = vrot.slane %v14, %v48
  %v50 = vlaneseq
  %v51 = vshrl.u32 %v50, 7
  %v52 = vsub.s32 0, %v51
  %v53 = vrot.slane %v15, %v52
  %v54 = vlaneseq
  %v55 = vshrl.u32 %v54, 7
  %v56 = vsub.s32 0, %v55
  %v57 = vrot.slane %v16, %v56
  %v58 = vlaneseq
  %v59 = vshrl.u32 %v58, 7
  %v60 = vsub.s32 0, %v59
  %v61 = vrot.slane %v17, %v60
  %v62 = vlaneseq
  %v63 = vshrl.u32 %v62, 7
  %v64 = vsub.s32 0, %v63
  %v65 = vrot.slane %v18, %v64
  %v66 = vlaneseq
  %v67 = vshrl.u32 %v66, 7
  %v68 = vsub.s32 0, %v67
  %v69 = vrot.slane %v19, %v68
  %v70 = vlaneseq
  %v71 = vshrl.u32 %v70, 7
  %v72 = vsub.s32 0, %v71
  %v73 = vrot.slane %v20, %v72
  %v74 = vlaneseq
  %v75 = vshrl.u32 %v74, 7
  %v76 = vsub.s32 0, %v75
  %v77 = vrot.slane %v21, %v76
  %v78 = vlaneseq
  %v79 = vshrl.u32 %v78, 7
  %v80 = vsub.s32 0, %v79
  %v81 = vrot.slane %v22, %v80
  %v82 = vlaneseq
  %v83 = vshrl.u32 %v82, 7
  %v84 = vsub.s32 0, %v83
  %v85 = vrot.slane %v23, %v84
  %v86 = vlaneseq
  %v87 = vshrl.u32 %v86, 7
  %v88 = vsub.s32 0, %v87
  %v89 = vrot.slane %v24, %v88
  %v90 = vlaneseq
  %v91 = vshrl.u32 %v90, 7
  %v92 = vsub.s32 0, %v91
  %v93 = vrot.slane %v25, %v92
  %v94 = vlaneseq
  %v95 = vshrl.u32 %v94, 7
  %v96 = vsub.s32 0, %v95
  %v97 = vrot.slane %v26, %v96
  %v98 = vlaneseq
  %v99 = vshrl.u32 %v98, 7
  %v100 = vsub.s32 0, %v99
  %v101 = vrot.slane %v27, %v100
  %v102 = vlaneseq
  %v103 = vshrl.u32 %v102, 7
  %v104 = vsub.s32 0, %v103
  %v105 = vrot.slane %v28, %v104
  %v106 = vlaneseq
  %v107 = vshrl.u32 %v106, 7
  %v108 = vsub.s32 0, %v107
  %v109 = vrot.slane %v29, %v108
  %110 = vset.pattern.permute.xlu0 0
  %111 = vperm.xlu0 %110, %v49
  %v112 = vpop.permute.xlu0 %111
  %114 = vset.pattern.permute.xlu0 0
  %115 = vperm.xlu0 %114, %v53
  %v116 = vpop.permute.xlu0 %115
  %118 = vset.pattern.permute.xlu0 0
  %119 = vperm.xlu0 %118, %v57
  %v120 = vpop.permute.xlu0 %119
  %122 = vset.pattern.permute.xlu0 0
  %123 = vperm.xlu0 %122, %v61
  %v124 = vpop.permute.xlu0 %123
  %126 = vset.pattern.permute.xlu0 0
  %127 = vperm.xlu0 %126, %v65
  %v128 = vpop.permute.xlu0 %127
  %130 = vset.pattern.permute.xlu0 0
  %131 = vperm.xlu0 %130, %v69
  %v132 = vpop.permute.xlu0 %131
  %134 = vset.pattern.permute.xlu0 0
  %135 = vperm.xlu0 %134, %v73
  %v136 = vpop.permute.xlu0 %135
  %138 = vset.pattern.permute.xlu0 0
  %139 = vperm.xlu0 %138, %v77
  %v140 = vpop.permute.xlu0 %139
  %142 = vset.pattern.permute.xlu0 0
  %143 = vperm.xlu0 %142, %v81
  %v144 = vpop.permute.xlu0 %143
  %146 = vset.pattern.permute.xlu0 0
  %147 = vperm.xlu0 %146, %v85
  %v148 = vpop.permute.xlu0 %147
  %150 = vset.pattern.permute.xlu0 0
  %151 = vperm.xlu0 %150, %v89
  %v152 = vpop.permute.xlu0 %151
  %154 = vset.pattern.permute.xlu0 0
  %155 = vperm.xlu0 %154, %v93
  %v156 = vpop.permute.xlu0 %155
  %158 = vset.pattern.permute.xlu0 0
  %159 = vperm.xlu0 %158, %v97
  %v160 = vpop.permute.xlu0 %159
  %162 = vset.pattern.permute.xlu0 0
  %163 = vperm.xlu0 %162, %v101
  %v164 = vpop.permute.xlu0 %163
  %166 = vset.pattern.permute.xlu0 0
  %167 = vperm.xlu0 %166, %v105
  %v168 = vpop.permute.xlu0 %167
  %170 = vset.pattern.permute.xlu0 0
  %171 = vperm.xlu0 %170, %v109
  %v172 = vpop.permute.xlu0 %171
  %v174 = vld [vmem:[%s1] sm:$0xff]
  %v175 = vld [vmem:[%s1 + $0x8] sm:$0xff]
  %v176 = vld [vmem:[%s0] sm:$0xff]
  %v177 = vld [vmem:[%s0 + $0x8] sm:$0x3]
  %v178 = vld [vmem:[%s0 + $0x10] sm:$0xff]
  %v179 = vld [vmem:[%s0 + $0x18] sm:$0x3]
  %v180 = vld [vmem:[%s0 + $0x20] sm:$0xff]
  %v181 = vld [vmem:[%s0 + $0x28] sm:$0x3]
  %v182 = vld [vmem:[%s0 + $0x30] sm:$0xff]
  %v183 = vld [vmem:[%s0 + $0x38] sm:$0x3]
  %v184 = vcombine.low %v176, %v180
  %v185 = vcombine.high %v176, %v180
  %v187 = vunpack.c.l.s4 1983009808
  %v188 = vunpack.c.0.s8 %v187
  %v189 = vlaneseq
  %v190 = vshrl.u32 %v189, 7
  %v191 = vsub.s32 %v188, %v190
  %v192 = vrot.slane %v184, %v191
  %v194 = vunpack.c.l.s4 1983009808
  %v195 = vunpack.c.0.s8 %v194
  %v196 = vlaneseq
  %v197 = vshrl.u32 %v196, 7
  %v198 = vsub.s32 %v195, %v197
  %v199 = vrot.slane %v185, %v198
  %v200 = vcombine.low %v178, %v182
  %v201 = vcombine.high %v178, %v182
  %v203 = vunpack.c.l.s4 1983009808
  %v204 = vunpack.c.0.s8 %v203
  %v205 = vlaneseq
  %v206 = vshrl.u32 %v205, 7
  %v207 = vsub.s32 %v204, %v206
  %v208 = vrot.slane %v200, %v207
  %v210 = vunpack.c.l.s4 1983009808
  %v211 = vunpack.c.0.s8 %v210
  %v212 = vlaneseq
  %v213 = vshrl.u32 %v212, 7
  %v214 = vsub.s32 %v211, %v213
  %v215 = vrot.slane %v201, %v214
  %v216 = vcombine.low %v192, %v208
  %v217 = vcombine.high %v192, %v208
  %v219 = vunpack.c.l.s4 1934713408
  %v220 = vunpack.c.0.s8 %v219
  %v221 = vlaneseq
  %v222 = vshrl.u32 %v221, 7
  %v223 = vsub.s32 %v220, %v222
  %v224 = vrot.slane %v216, %v223
  %v226 = vunpack.c.l.s4 1934713408
  %v227 = vunpack.c.0.s8 %v226
  %v228 = vlaneseq
  %v229 = vshrl.u32 %v228, 7
  %v230 = vsub.s32 %v227, %v229
  %v231 = vrot.slane %v217, %v230
  %v232 = vcombine.low %v199, %v215
  %v233 = vcombine.high %v199, %v215
  %v235 = vunpack.c.l.s4 1934713408
  %v236 = vunpack.c.0.s8 %v235
  %v237 = vlaneseq
  %v238 = vshrl.u32 %v237, 7
  %v239 = vsub.s32 %v236, %v238
  %v240 = vrot.slane %v232, %v239
  %v242 = vunpack.c.l.s4 1934713408
  %v243 = vunpack.c.0.s8 %v242
  %v244 = vlaneseq
  %v245 = vshrl.u32 %v244, 7
  %v246 = vsub.s32 %v243, %v245
  %v247 = vrot.slane %v233, %v246
  %v248 = vcombine.high %v224, 0.0
  %v249 = vcombine.high %v231, 0.0
  %v250 = vcombine.high %v240, 0.0
  %v251 = vcombine.high %v247, 0.0
  %v252 = vcombine.low %v177, %v181
  %v254 = vunpack.c.l.s4 1983009808
  %v255 = vunpack.c.0.s8 %v254
  %v256 = vlaneseq
  %v257 = vshrl.u32 %v256, 7
  %v258 = vsub.s32 %v255, %v257
  %v259 = vrot.slane %v252, %v258
  %v260 = vcombine.low %v179, %v183
  %v262 = vunpack.c.l.s4 1983009808
  %v263 = vunpack.c.0.s8 %v262
  %v264 = vlaneseq
  %v265 = vshrl.u32 %v264, 7
  %v266 = vsub.s32 %v263, %v265
  %v267 = vrot.slane %v260, %v266
  %v268 = vcombine.low %v259, %v267
  %v270 = vunpack.c.l.s4 1934713408
  %v271 = vunpack.c.0.s8 %v270
  %v272 = vlaneseq
  %v273 = vshrl.u32 %v272, 7
  %v274 = vsub.s32 %v271, %v273
  %v275 = vrot.slane %v268, %v274
  %v276 = vcombine.high %v275, 0.0
  %v277 = vcombine.low 0.0, 0.0
  %v279 = vunpack.c.l.s4 1983009808
  %v280 = vunpack.c.0.s8 %v279
  %v281 = vlaneseq
  %v282 = vshrl.u32 %v281, 7
  %v283 = vsub.s32 %v280, %v282
  %v284 = vrot.slane %v277, %v283
  %v285 = vcombine.low %v284, %v284
  %v287 = vunpack.c.l.s4 1934713408
  %v288 = vunpack.c.0.s8 %v287
  %v289 = vlaneseq
  %v290 = vshrl.u32 %v289, 7
  %v291 = vsub.s32 %v288, %v290
  %v292 = vrot.slane %v285, %v291
  %v293 = vcombine.low %v292, %v292
  %v294 = vcombine.high %v292, %v292
  %vm295 = vcmask 31744
  %v297 = vsel %vm295, %v174, 0
  %v300 = vsel %vm295, %v175, 0
  %vm302 = vcmask 1043456
  %v304 = vsel %vm302, %v224, 0
  %v307 = vsel %vm302, %v248, 0
  %v310 = vsel %vm302, %v231, 0
  %v313 = vsel %vm302, %v249, 0
  %v316 = vsel %vm302, %v240, 0
  %v319 = vsel %vm302, %v250, 0
  %v322 = vsel %vm302, %v247, 0
  %v325 = vsel %vm302, %v251, 0
  %v328 = vsel %vm302, %v275, 0
  %v331 = vsel %vm302, %v276, 0
  %333 = vmatprep.subr.mxu0 %v307
  %334 = vmatpush1.msra.mxu0 %v304
  %335 = vmatprep.subr.mxu0 0.0
  %336 = vmatpush1.msra.mxu0 0.0
  %337 = vmatprep.subr.mxu0 0.0
  %338 = vmatpush1.msra.mxu0 0.0
  %339 = vmatprep.subr.mxu0 0.0
  %340 = vmatpush1.msra.mxu0 0.0
  %341 = vmatprep.subr.mxu0 0.0
  %342 = vmatpush1.msra.mxu0 0.0
  %343 = vmatprep.subr.mxu0 0.0
  %344 = vmatpush1.msra.mxu0 0.0
  %345 = vmatprep.subr.mxu0 0.0
  %346 = vmatpush1.msra.mxu0 0.0
  %347 = vmatprep.subr.mxu0 0.0
  %348 = vmatpush1.msra.mxu0 0.0
  %349 = vmatprep.subr.mxu0 0.0
  %350 = vmatpush1.msra.mxu0 0.0
  %351 = vmatprep.subr.mxu0 0.0
  %352 = vmatpush1.msra.mxu0 0.0
  %353 = vmatprep.subr.mxu0 0.0
  %354 = vmatpush1.msra.mxu0 0.0
  %355 = vmatprep.subr.mxu0 0.0
  %356 = vmatpush1.msra.mxu0 0.0
  %357 = vmatprep.subr.mxu0 0.0
  %358 = vmatpush1.msra.mxu0 0.0
  %359 = vmatprep.subr.mxu0 0.0
  %360 = vmatpush1.msra.mxu0 0.0
  %361 = vmatprep.subr.mxu0 0.0
  %362 = vmatpush1.msra.mxu0 0.0
  %363 = vmatprep.subr.mxu0 0.0
  %364 = vmatpush1.msra.mxu0 0.0
  %365 = vmatprep.subr.mxu0 0.0
  %366 = vmatpush1.msra.mxu0 0.0
  %367 = vmatprep.subr.mxu0 0.0
  %368 = vmatpush1.msra.mxu0 0.0
  %369 = vmatprep.subr.mxu0 0.0
  %370 = vmatpush1.msra.mxu0 0.0
  %371 = vmatprep.subr.mxu0 0.0
  %372 = vmatpush1.msra.mxu0 0.0
  %373 = vmatprep.subr.mxu0 0.0
  %374 = vmatpush1.msra.mxu0 0.0
  %375 = vmatprep.subr.mxu0 0.0
  %376 = vmatpush1.msra.mxu0 0.0
  %377 = vmatprep.subr.mxu0 0.0
  %378 = vmatpush1.msra.mxu0 0.0
  %379 = vmatprep.subr.mxu0 0.0
  %380 = vmatpush1.msra.mxu0 0.0
  %381 = vmatprep.subr.mxu0 0.0
  %382 = vmatpush1.msra.mxu0 0.0
  %383 = vmatprep.subr.mxu0 0.0
  %384 = vmatpush1.msra.mxu0 0.0
  %385 = vmatprep.subr.mxu0 0.0
  %386 = vmatpush1.msra.mxu0 0.0
  %387 = vmatprep.subr.mxu0 0.0
  %388 = vmatpush1.msra.mxu0 0.0
  %389 = vmatprep.subr.mxu0 0.0
  %390 = vmatpush1.msra.mxu0 0.0
  %391 = vmatprep.subr.mxu0 0.0
  %392 = vmatpush1.msra.mxu0 0.0
  %393 = vmatprep.subr.mxu0 0.0
  %394 = vmatpush1.msra.mxu0 0.0
  %395 = vmatprep.subr.mxu0 0.0
  %396 = vmatpush1.msra.mxu0 0.0
  %397 = vmatprep.mubr.f32.mxu0 0.0
  %398 = vmatmul.mubr.f32.gmra.mrb[0].mxu0 %v297
  %v399 = vpop.f32.mrb[0].mxu0
  %v400 = vadd.f32 %v293, %v399
  %v401 = vpop.f32.mrb[0].mxu0
  %v402 = vadd.f32 %v294, %v401
  %403 = vmatprep.mubr.f32.mxu0 0.0
  %404 = vmatmul.mubr.f32.gmra.mrb[0].mxu0 %v300
  %v405 = vpop.f32.mrb[0].mxu0
  %v406 = vadd.f32 %v293, %v405
  %v407 = vpop.f32.mrb[0].mxu0
  %v408 = vadd.f32 %v294, %v407
  %409 = vdwg.mxu0
  %410 = vmatprep.subr.mxu0 %v313
  %411 = vmatpush1.msra.mxu0 %v310
  %412 = vmatprep.subr.mxu0 0.0
  %413 = vmatpush1.msra.mxu0 0.0
  %414 = vmatprep.subr.mxu0 0.0
  %415 = vmatpush1.msra.mxu0 0.0
  %416 = vmatprep.subr.mxu0 0.0
  %417 = vmatpush1.msra.mxu0 0.0
  %418 = vmatprep.subr.mxu0 0.0
  %419 = vmatpush1.msra.mxu0 0.0
  %420 = vmatprep.subr.mxu0 0.0
  %421 = vmatpush1.msra.mxu0 0.0
  %422 = vmatprep.subr.mxu0 0.0
  %423 = vmatpush1.msra.mxu0 0.0
  %424 = vmatprep.subr.mxu0 0.0
  %425 = vmatpush1.msra.mxu0 0.0
  %426 = vmatprep.subr.mxu0 0.0
  %427 = vmatpush1.msra.mxu0 0.0
  %428 = vmatprep.subr.mxu0 0.0
  %429 = vmatpush1.msra.mxu0 0.0
  %430 = vmatprep.subr.mxu0 0.0
  %431 = vmatpush1.msra.mxu0 0.0
  %432 = vmatprep.subr.mxu0 0.0
  %433 = vmatpush1.msra.mxu0 0.0
  %434 = vmatprep.subr.mxu0 0.0
  %435 = vmatpush1.msra.mxu0 0.0
  %436 = vmatprep.subr.mxu0 0.0
  %437 = vmatpush1.msra.mxu0 0.0
  %438 = vmatprep.subr.mxu0 0.0
  %439 = vmatpush1.msra.mxu0 0.0
  %440 = vmatprep.subr.mxu0 0.0
  %441 = vmatpush1.msra.mxu0 0.0
  %442 = vmatprep.subr.mxu0 0.0
  %443 = vmatpush1.msra.mxu0 0.0
  %444 = vmatprep.subr.mxu0 0.0
  %445 = vmatpush1.msra.mxu0 0.0
  %446 = vmatprep.subr.mxu0 0.0
  %447 = vmatpush1.msra.mxu0 0.0
  %448 = vmatprep.subr.mxu0 0.0
  %449 = vmatpush1.msra.mxu0 0.0
  %450 = vmatprep.subr.mxu0 0.0
  %451 = vmatpush1.msra.mxu0 0.0
  %452 = vmatprep.subr.mxu0 0.0
  %453 = vmatpush1.msra.mxu0 0.0
  %454 = vmatprep.subr.mxu0 0.0
  %455 = vmatpush1.msra.mxu0 0.0
  %456 = vmatprep.subr.mxu0 0.0
  %457 = vmatpush1.msra.mxu0 0.0
  %458 = vmatprep.subr.mxu0 0.0
  %459 = vmatpush1.msra.mxu0 0.0
  %460 = vmatprep.subr.mxu0 0.0
  %461 = vmatpush1.msra.mxu0 0.0
  %462 = vmatprep.subr.mxu0 0.0
  %463 = vmatpush1.msra.mxu0 0.0
  %464 = vmatprep.subr.mxu0 0.0
  %465 = vmatpush1.msra.mxu0 0.0
  %466 = vmatprep.subr.mxu0 0.0
  %467 = vmatpush1.msra.mxu0 0.0
  %468 = vmatprep.subr.mxu0 0.0
  %469 = vmatpush1.msra.mxu0 0.0
  %470 = vmatprep.subr.mxu0 0.0
  %471 = vmatpush1.msra.mxu0 0.0
  %472 = vmatprep.subr.mxu0 0.0
  %473 = vmatpush1.msra.mxu0 0.0
  %474 = vmatprep.mubr.f32.mxu0 0.0
  %475 = vmatmul.mubr.f32.gmra.mrb[0].mxu0 %v297
  %v476 = vpop.f32.mrb[0].mxu0
  %v477 = vadd.f32 0.0, %v476
  %v478 = vpop.f32.mrb[0].mxu0
  %v479 = vadd.f32 0.0, %v478
  %480 = vmatprep.mubr.f32.mxu0 0.0
  %481 = vmatmul.mubr.f32.gmra.mrb[0].mxu0 %v300
  %v482 = vpop.f32.mrb[0].mxu0
  %v483 = vadd.f32 0.0, %v482
  %v484 = vpop.f32.mrb[0].mxu0
  %v485 = vadd.f32 0.0, %v484
  %486 = vdwg.mxu0
  %487 = vmatprep.subr.mxu0 %v319
  %488 = vmatpush1.msra.mxu0 %v316
  %489 = vmatprep.subr.mxu0 0.0
  %490 = vmatpush1.msra.mxu0 0.0
  %491 = vmatprep.subr.mxu0 0.0
  %492 = vmatpush1.msra.mxu0 0.0
  %493 = vmatprep.subr.mxu0 0.0
  %494 = vmatpush1.msra.mxu0 0.0
  %495 = vmatprep.subr.mxu0 0.0
  %496 = vmatpush1.msra.mxu0 0.0
  %497 = vmatprep.subr.mxu0 0.0
  %498 = vmatpush1.msra.mxu0 0.0
  %499 = vmatprep.subr.mxu0 0.0
  %500 = vmatpush1.msra.mxu0 0.0
  %501 = vmatprep.subr.mxu0 0.0
  %502 = vmatpush1.msra.mxu0 0.0
  %503 = vmatprep.subr.mxu0 0.0
  %504 = vmatpush1.msra.mxu0 0.0
  %505 = vmatprep.subr.mxu0 0.0
  %506 = vmatpush1.msra.mxu0 0.0
  %507 = vmatprep.subr.mxu0 0.0
  %508 = vmatpush1.msra.mxu0 0.0
  %509 = vmatprep.subr.mxu0 0.0
  %510 = vmatpush1.msra.mxu0 0.0
  %511 = vmatprep.subr.mxu0 0.0
  %512 = vmatpush1.msra.mxu0 0.0
  %513 = vmatprep.subr.mxu0 0.0
  %514 = vmatpush1.msra.mxu0 0.0
  %515 = vmatprep.subr.mxu0 0.0
  %516 = vmatpush1.msra.mxu0 0.0
  %517 = vmatprep.subr.mxu0 0.0
  %518 = vmatpush1.msra.mxu0 0.0
  %519 = vmatprep.subr.mxu0 0.0
  %520 = vmatpush1.msra.mxu0 0.0
  %521 = vmatprep.subr.mxu0 0.0
  %522 = vmatpush1.msra.mxu0 0.0
  %523 = vmatprep.subr.mxu0 0.0
  %524 = vmatpush1.msra.mxu0 0.0
  %525 = vmatprep.subr.mxu0 0.0
  %526 = vmatpush1.msra.mxu0 0.0
  %527 = vmatprep.subr.mxu0 0.0
  %528 = vmatpush1.msra.mxu0 0.0
  %529 = vmatprep.subr.mxu0 0.0
  %530 = vmatpush1.msra.mxu0 0.0
  %531 = vmatprep.subr.mxu0 0.0
  %532 = vmatpush1.msra.mxu0 0.0
  %533 = vmatprep.subr.mxu0 0.0
  %534 = vmatpush1.msra.mxu0 0.0
  %535 = vmatprep.subr.mxu0 0.0
  %536 = vmatpush1.msra.mxu0 0.0
  %537 = vmatprep.subr.mxu0 0.0
  %538 = vmatpush1.msra.mxu0 0.0
  %539 = vmatprep.subr.mxu0 0.0
  %540 = vmatpush1.msra.mxu0 0.0
  %541 = vmatprep.subr.mxu0 0.0
  %542 = vmatpush1.msra.mxu0 0.0
  %543 = vmatprep.subr.mxu0 0.0
  %544 = vmatpush1.msra.mxu0 0.0
  %545 = vmatprep.subr.mxu0 0.0
  %546 = vmatpush1.msra.mxu0 0.0
  %547 = vmatprep.subr.mxu0 0.0
  %548 = vmatpush1.msra.mxu0 0.0
  %549 = vmatprep.subr.mxu0 0.0
  %550 = vmatpush1.msra.mxu0 0.0
  %551 = vmatprep.mubr.f32.mxu0 0.0
  %552 = vmatmul.mubr.f32.gmra.mrb[0].mxu0 %v297
  %v553 = vpop.f32.mrb[0].mxu0
  %v554 = vadd.f32 0.0, %v553
  %v555 = vpop.f32.mrb[0].mxu0
  %v556 = vadd.f32 0.0, %v555
  %557 = vmatprep.mubr.f32.mxu0 0.0
  %558 = vmatmul.mubr.f32.gmra.mrb[0].mxu0 %v300
  %v559 = vpop.f32.mrb[0].mxu0
  %v560 = vadd.f32 0.0, %v559
  %v561 = vpop.f32.mrb[0].mxu0
  %v562 = vadd.f32 0.0, %v561
  %563 = vdwg.mxu0
  %564 = vmatprep.subr.mxu0 %v325
  %565 = vmatpush1.msra.mxu0 %v322
  %566 = vmatprep.subr.mxu0 0.0
  %567 = vmatpush1.msra.mxu0 0.0
  %568 = vmatprep.subr.mxu0 0.0
  %569 = vmatpush1.msra.mxu0 0.0
  %570 = vmatprep.subr.mxu0 0.0
  %571 = vmatpush1.msra.mxu0 0.0
  %572 = vmatprep.subr.mxu0 0.0
  %573 = vmatpush1.msra.mxu0 0.0
  %574 = vmatprep.subr.mxu0 0.0
  %575 = vmatpush1.msra.mxu0 0.0
  %576 = vmatprep.subr.mxu0 0.0
  %577 = vmatpush1.msra.mxu0 0.0
  %578 = vmatprep.subr.mxu0 0.0
  %579 = vmatpush1.msra.mxu0 0.0
  %580 = vmatprep.subr.mxu0 0.0
  %581 = vmatpush1.msra.mxu0 0.0
  %582 = vmatprep.subr.mxu0 0.0
  %583 = vmatpush1.msra.mxu0 0.0
  %584 = vmatprep.subr.mxu0 0.0
  %585 = vmatpush1.msra.mxu0 0.0
  %586 = vmatprep.subr.mxu0 0.0
  %587 = vmatpush1.msra.mxu0 0.0
  %588 = vmatprep.subr.mxu0 0.0
  %589 = vmatpush1.msra.mxu0 0.0
  %590 = vmatprep.subr.mxu0 0.0
  %591 = vmatpush1.msra.mxu0 0.0
  %592 = vmatprep.subr.mxu0 0.0
  %593 = vmatpush1.msra.mxu0 0.0
  %594 = vmatprep.subr.mxu0 0.0
  %595 = vmatpush1.msra.mxu0 0.0
  %596 = vmatprep.subr.mxu0 0.0
  %597 = vmatpush1.msra.mxu0 0.0
  %598 = vmatprep.subr.mxu0 0.0
  %599 = vmatpush1.msra.mxu0 0.0
  %600 = vmatprep.subr.mxu0 0.0
  %601 = vmatpush1.msra.mxu0 0.0
  %602 = vmatprep.subr.mxu0 0.0
  %603 = vmatpush1.msra.mxu0 0.0
  %604 = vmatprep.subr.mxu0 0.0
  %605 = vmatpush1.msra.mxu0 0.0
  %606 = vmatprep.subr.mxu0 0.0
  %607 = vmatpush1.msra.mxu0 0.0
  %608 = vmatprep.subr.mxu0 0.0
  %609 = vmatpush1.msra.mxu0 0.0
  %610 = vmatprep.subr.mxu0 0.0
  %611 = vmatpush1.msra.mxu0 0.0
  %612 = vmatprep.subr.mxu0 0.0
  %613 = vmatpush1.msra.mxu0 0.0
  %614 = vmatprep.subr.mxu0 0.0
  %615 = vmatpush1.msra.mxu0 0.0
  %616 = vmatprep.subr.mxu0 0.0
  %617 = vmatpush1.msra.mxu0 0.0
  %618 = vmatprep.subr.mxu0 0.0
  %619 = vmatpush1.msra.mxu0 0.0
  %620 = vmatprep.subr.mxu0 0.0
  %621 = vmatpush1.msra.mxu0 0.0
  %622 = vmatprep.subr.mxu0 0.0
  %623 = vmatpush1.msra.mxu0 0.0
  %624 = vmatprep.subr.mxu0 0.0
  %625 = vmatpush1.msra.mxu0 0.0
  %626 = vmatprep.subr.mxu0 0.0
  %627 = vmatpush1.msra.mxu0 0.0
  %628 = vmatprep.mubr.f32.mxu0 0.0
  %629 = vmatmul.mubr.f32.gmra.mrb[0].mxu0 %v297
  %v630 = vpop.f32.mrb[0].mxu0
  %v631 = vadd.f32 0.0, %v630
  %v632 = vpop.f32.mrb[0].mxu0
  %v633 = vadd.f32 0.0, %v632
  %634 = vmatprep.mubr.f32.mxu0 0.0
  %635 = vmatmul.mubr.f32.gmra.mrb[0].mxu0 %v300
  %v636 = vpop.f32.mrb[0].mxu0
  %v637 = vadd.f32 0.0, %v636
  %v638 = vpop.f32.mrb[0].mxu0
  %v639 = vadd.f32 0.0, %v638
  %640 = vdwg.mxu0
  %641 = vmatprep.subr.mxu0 %v331
  %642 = vmatpush1.msra.mxu0 %v328
  %643 = vmatprep.subr.mxu0 0.0
  %644 = vmatpush1.msra.mxu0 0.0
  %645 = vmatprep.subr.mxu0 0.0
  %646 = vmatpush1.msra.mxu0 0.0
  %647 = vmatprep.subr.mxu0 0.0
  %648 = vmatpush1.msra.mxu0 0.0
  %649 = vmatprep.subr.mxu0 0.0
  %650 = vmatpush1.msra.mxu0 0.0
  %651 = vmatprep.subr.mxu0 0.0
  %652 = vmatpush1.msra.mxu0 0.0
  %653 = vmatprep.subr.mxu0 0.0
  %654 = vmatpush1.msra.mxu0 0.0
  %655 = vmatprep.subr.mxu0 0.0
  %656 = vmatpush1.msra.mxu0 0.0
  %657 = vmatprep.subr.mxu0 0.0
  %658 = vmatpush1.msra.mxu0 0.0
  %659 = vmatprep.subr.mxu0 0.0
  %660 = vmatpush1.msra.mxu0 0.0
  %661 = vmatprep.subr.mxu0 0.0
  %662 = vmatpush1.msra.mxu0 0.0
  %663 = vmatprep.subr.mxu0 0.0
  %664 = vmatpush1.msra.mxu0 0.0
  %665 = vmatprep.subr.mxu0 0.0
  %666 = vmatpush1.msra.mxu0 0.0
  %667 = vmatprep.subr.mxu0 0.0
  %668 = vmatpush1.msra.mxu0 0.0
  %669 = vmatprep.subr.mxu0 0.0
  %670 = vmatpush1.msra.mxu0 0.0
  %671 = vmatprep.subr.mxu0 0.0
  %672 = vmatpush1.msra.mxu0 0.0
  %673 = vmatprep.subr.mxu0 0.0
  %674 = vmatpush1.msra.mxu0 0.0
  %675 = vmatprep.subr.mxu0 0.0
  %676 = vmatpush1.msra.mxu0 0.0
  %677 = vmatprep.subr.mxu0 0.0
  %678 = vmatpush1.msra.mxu0 0.0
  %679 = vmatprep.subr.mxu0 0.0
  %680 = vmatpush1.msra.mxu0 0.0
  %681 = vmatprep.subr.mxu0 0.0
  %682 = vmatpush1.msra.mxu0 0.0
  %683 = vmatprep.subr.mxu0 0.0
  %684 = vmatpush1.msra.mxu0 0.0
  %685 = vmatprep.subr.mxu0 0.0
  %686 = vmatpush1.msra.mxu0 0.0
  %687 = vmatprep.subr.mxu0 0.0
  %688 = vmatpush1.msra.mxu0 0.0
  %689 = vmatprep.subr.mxu0 0.0
  %690 = vmatpush1.msra.mxu0 0.0
  %691 = vmatprep.subr.mxu0 0.0
  %692 = vmatpush1.msra.mxu0 0.0
  %693 = vmatprep.subr.mxu0 0.0
  %694 = vmatpush1.msra.mxu0 0.0
  %695 = vmatprep.subr.mxu0 0.0
  %696 = vmatpush1.msra.mxu0 0.0
  %697 = vmatprep.subr.mxu0 0.0
  %698 = vmatpush1.msra.mxu0 0.0
  %699 = vmatprep.subr.mxu0 0.0
  %700 = vmatpush1.msra.mxu0 0.0
  %701 = vmatprep.subr.mxu0 0.0
  %702 = vmatpush1.msra.mxu0 0.0
  %703 = vmatprep.subr.mxu0 0.0
  %704 = vmatpush1.msra.mxu0 0.0
  %705 = vmatprep.mubr.f32.mxu0 0.0
  %706 = vmatmul.mubr.f32.gmra.mrb[0].mxu0 %v297
  %v707 = vpop.f32.mrb[0].mxu0
  %v708 = vadd.f32 %v293, %v707
  %v709 = vpop.f32.mrb[0].mxu0
  %v710 = vadd.f32 %v294, %v709
  %711 = vmatprep.mubr.f32.mxu0 0.0
  %712 = vmatmul.mubr.f32.gmra.mrb[0].mxu0 %v300
  %v713 = vpop.f32.mrb[0].mxu0
  %v714 = vadd.f32 %v293, %v713
  %v715 = vpop.f32.mrb[0].mxu0
  %v716 = vadd.f32 %v294, %v715
  %717 = vdwg.mxu0
  %v718 = vcombine.low %v400, %v477
  %v719 = vcombine.high %v400, %v477
  %v721 = vunpack.c.l.s4 1983009808
  %v722 = vunpack.c.0.s8 %v721
  %v723 = vlaneseq
  %v724 = vshrl.u32 %v723, 7
  %v725 = vsub.s32 %v722, %v724
  %v726 = vrot.slane %v718, %v725
  %v728 = vunpack.c.l.s4 1983009808
  %v729 = vunpack.c.0.s8 %v728
  %v730 = vlaneseq
  %v731 = vshrl.u32 %v730, 7
  %v732 = vsub.s32 %v729, %v731
  %v733 = vrot.slane %v719, %v732
  %v734 = vcombine.low %v402, %v479
  %v735 = vcombine.high %v402, %v479
  %v737 = vunpack.c.l.s4 1983009808
  %v738 = vunpack.c.0.s8 %v737
  %v739 = vlaneseq
  %v740 = vshrl.u32 %v739, 7
  %v741 = vsub.s32 %v738, %v740
  %v742 = vrot.slane %v734, %v741
  %v744 = vunpack.c.l.s4 1983009808
  %v745 = vunpack.c.0.s8 %v744
  %v746 = vlaneseq
  %v747 = vshrl.u32 %v746, 7
  %v748 = vsub.s32 %v745, %v747
  %v749 = vrot.slane %v735, %v748
  %v750 = vcombine.low %v554, %v631
  %v751 = vcombine.high %v554, %v631
  %v753 = vunpack.c.l.s4 1983009808
  %v754 = vunpack.c.0.s8 %v753
  %v755 = vlaneseq
  %v756 = vshrl.u32 %v755, 7
  %v757 = vsub.s32 %v754, %v756
  %v758 = vrot.slane %v750, %v757
  %v760 = vunpack.c.l.s4 1983009808
  %v761 = vunpack.c.0.s8 %v760
  %v762 = vlaneseq
  %v763 = vshrl.u32 %v762, 7
  %v764 = vsub.s32 %v761, %v763
  %v765 = vrot.slane %v751, %v764
  %v766 = vcombine.low %v556, %v633
  %v767 = vcombine.high %v556, %v633
  %v769 = vunpack.c.l.s4 1983009808
  %v770 = vunpack.c.0.s8 %v769
  %v771 = vlaneseq
  %v772 = vshrl.u32 %v771, 7
  %v773 = vsub.s32 %v770, %v772
  %v774 = vrot.slane %v766, %v773
  %v776 = vunpack.c.l.s4 1983009808
  %v777 = vunpack.c.0.s8 %v776
  %v778 = vlaneseq
  %v779 = vshrl.u32 %v778, 7
  %v780 = vsub.s32 %v777, %v779
  %v781 = vrot.slane %v767, %v780
  %v782 = vcombine.low %v726, %v742
  %v783 = vcombine.high %v726, %v742
  %v785 = vunpack.c.l.s4 1934713408
  %v786 = vunpack.c.0.s8 %v785
  %v787 = vlaneseq
  %v788 = vshrl.u32 %v787, 7
  %v789 = vsub.s32 %v786, %v788
  %v790 = vrot.slane %v782, %v789
  %v792 = vunpack.c.l.s4 1934713408
  %v793 = vunpack.c.0.s8 %v792
  %v794 = vlaneseq
  %v795 = vshrl.u32 %v794, 7
  %v796 = vsub.s32 %v793, %v795
  %v797 = vrot.slane %v783, %v796
  %v798 = vcombine.low %v733, %v749
  %v799 = vcombine.high %v733, %v749
  %v801 = vunpack.c.l.s4 1934713408
  %v802 = vunpack.c.0.s8 %v801
  %v803 = vlaneseq
  %v804 = vshrl.u32 %v803, 7
  %v805 = vsub.s32 %v802, %v804
  %v806 = vrot.slane %v798, %v805
  %v808 = vunpack.c.l.s4 1934713408
  %v809 = vunpack.c.0.s8 %v808
  %v810 = vlaneseq
  %v811 = vshrl.u32 %v810, 7
  %v812 = vsub.s32 %v809, %v811
  %v813 = vrot.slane %v799, %v812
  %v814 = vcombine.low %v758, %v774
  %v815 = vcombine.high %v758, %v774
  %v817 = vunpack.c.l.s4 1934713408
  %v818 = vunpack.c.0.s8 %v817
  %v819 = vlaneseq
  %v820 = vshrl.u32 %v819, 7
  %v821 = vsub.s32 %v818, %v820
  %v822 = vrot.slane %v814, %v821
  %v824 = vunpack.c.l.s4 1934713408
  %v825 = vunpack.c.0.s8 %v824
  %v826 = vlaneseq
  %v827 = vshrl.u32 %v826, 7
  %v828 = vsub.s32 %v825, %v827
  %v829 = vrot.slane %v815, %v828
  %v830 = vcombine.low %v765, %v781
  %v831 = vcombine.high %v765, %v781
  %v833 = vunpack.c.l.s4 1934713408
  %v834 = vunpack.c.0.s8 %v833
  %v835 = vlaneseq
  %v836 = vshrl.u32 %v835, 7
  %v837 = vsub.s32 %v834, %v836
  %v838 = vrot.slane %v830, %v837
  %v840 = vunpack.c.l.s4 1934713408
  %v841 = vunpack.c.0.s8 %v840
  %v842 = vlaneseq
  %v843 = vshrl.u32 %v842, 7
  %v844 = vsub.s32 %v841, %v843
  %v845 = vrot.slane %v831, %v844
  %v846 = vcombine.low %v790, %v822
  %v847 = vcombine.high %v790, %v822
  %v848 = vcombine.low %v797, %v829
  %v849 = vcombine.high %v797, %v829
  %v850 = vcombine.low %v806, %v838
  %v851 = vcombine.high %v806, %v838
  %v852 = vcombine.low %v813, %v845
  %v853 = vcombine.high %v813, %v845
  %v854 = vcombine.high %v708, 0.0
  %v856 = vunpack.c.l.s4 1983009808
  %v857 = vunpack.c.0.s8 %v856
  %v858 = vlaneseq
  %v859 = vshrl.u32 %v858, 7
  %v860 = vsub.s32 %v857, %v859
  %v861 = vrot.slane %v708, %v860
  %v863 = vunpack.c.l.s4 1983009808
  %v864 = vunpack.c.0.s8 %v863
  %v865 = vlaneseq
  %v866 = vshrl.u32 %v865, 7
  %v867 = vsub.s32 %v864, %v866
  %v868 = vrot.slane %v854, %v867
  %v869 = vcombine.high %v710, 0.0
  %v871 = vunpack.c.l.s4 1983009808
  %v872 = vunpack.c.0.s8 %v871
  %v873 = vlaneseq
  %v874 = vshrl.u32 %v873, 7
  %v875 = vsub.s32 %v872, %v874
  %v876 = vrot.slane %v710, %v875
  %v878 = vunpack.c.l.s4 1983009808
  %v879 = vunpack.c.0.s8 %v878
  %v880 = vlaneseq
  %v881 = vshrl.u32 %v880, 7
  %v882 = vsub.s32 %v879, %v881
  %v883 = vrot.slane %v869, %v882
  %v884 = vcombine.low %v861, %v876
  %v885 = vcombine.high %v861, %v876
  %v887 = vunpack.c.l.s4 1934713408
  %v888 = vunpack.c.0.s8 %v887
  %v889 = vlaneseq
  %v890 = vshrl.u32 %v889, 7
  %v891 = vsub.s32 %v888, %v890
  %v892 = vrot.slane %v884, %v891
  %v894 = vunpack.c.l.s4 1934713408
  %v895 = vunpack.c.0.s8 %v894
  %v896 = vlaneseq
  %v897 = vshrl.u32 %v896, 7
  %v898 = vsub.s32 %v895, %v897
  %v899 = vrot.slane %v885, %v898
  %v900 = vcombine.low %v868, %v883
  %v901 = vcombine.high %v868, %v883
  %v903 = vunpack.c.l.s4 1934713408
  %v904 = vunpack.c.0.s8 %v903
  %v905 = vlaneseq
  %v906 = vshrl.u32 %v905, 7
  %v907 = vsub.s32 %v904, %v906
  %v908 = vrot.slane %v900, %v907
  %v910 = vunpack.c.l.s4 1934713408
  %v911 = vunpack.c.0.s8 %v910
  %v912 = vlaneseq
  %v913 = vshrl.u32 %v912, 7
  %v914 = vsub.s32 %v911, %v913
  %v915 = vrot.slane %v901, %v914
  %v916 = vcombine.high %v892, 0.0
  %v917 = vcombine.high %v899, 0.0
  %v918 = vcombine.high %v908, 0.0
  %v919 = vcombine.high %v915, 0.0
  %v920 = vcombine.low %v406, %v483
  %v921 = vcombine.high %v406, %v483
  %v923 = vunpack.c.l.s4 1983009808
  %v924 = vunpack.c.0.s8 %v923
  %v925 = vlaneseq
  %v926 = vshrl.u32 %v925, 7
  %v927 = vsub.s32 %v924, %v926
  %v928 = vrot.slane %v920, %v927
  %v930 = vunpack.c.l.s4 1983009808
  %v931 = vunpack.c.0.s8 %v930
  %v932 = vlaneseq
  %v933 = vshrl.u32 %v932, 7
  %v934 = vsub.s32 %v931, %v933
  %v935 = vrot.slane %v921, %v934
  %v936 = vcombine.low %v408, %v485
  %v937 = vcombine.high %v408, %v485
  %v939 = vunpack.c.l.s4 1983009808
  %v940 = vunpack.c.0.s8 %v939
  %v941 = vlaneseq
  %v942 = vshrl.u32 %v941, 7
  %v943 = vsub.s32 %v940, %v942
  %v944 = vrot.slane %v936, %v943
  %v946 = vunpack.c.l.s4 1983009808
  %v947 = vunpack.c.0.s8 %v946
  %v948 = vlaneseq
  %v949 = vshrl.u32 %v948, 7
  %v950 = vsub.s32 %v947, %v949
  %v951 = vrot.slane %v937, %v950
  %v952 = vcombine.low %v560, %v637
  %v953 = vcombine.high %v560, %v637
  %v955 = vunpack.c.l.s4 1983009808
  %v956 = vunpack.c.0.s8 %v955
  %v957 = vlaneseq
  %v958 = vshrl.u32 %v957, 7
  %v959 = vsub.s32 %v956, %v958
  %v960 = vrot.slane %v952, %v959
  %v962 = vunpack.c.l.s4 1983009808
  %v963 = vunpack.c.0.s8 %v962
  %v964 = vlaneseq
  %v965 = vshrl.u32 %v964, 7
  %v966 = vsub.s32 %v963, %v965
  %v967 = vrot.slane %v953, %v966
  %v968 = vcombine.low %v562, %v639
  %v969 = vcombine.high %v562, %v639
  %v971 = vunpack.c.l.s4 1983009808
  %v972 = vunpack.c.0.s8 %v971
  %v973 = vlaneseq
  %v974 = vshrl.u32 %v973, 7
  %v975 = vsub.s32 %v972, %v974
  %v976 = vrot.slane %v968, %v975
  %v978 = vunpack.c.l.s4 1983009808
  %v979 = vunpack.c.0.s8 %v978
  %v980 = vlaneseq
  %v981 = vshrl.u32 %v980, 7
  %v982 = vsub.s32 %v979, %v981
  %v983 = vrot.slane %v969, %v982
  %v984 = vcombine.low %v928, %v944
  %v985 = vcombine.high %v928, %v944
  %v987 = vunpack.c.l.s4 1934713408
  %v988 = vunpack.c.0.s8 %v987
  %v989 = vlaneseq
  %v990 = vshrl.u32 %v989, 7
  %v991 = vsub.s32 %v988, %v990
  %v992 = vrot.slane %v984, %v991
  %v994 = vunpack.c.l.s4 1934713408
  %v995 = vunpack.c.0.s8 %v994
  %v996 = vlaneseq
  %v997 = vshrl.u32 %v996, 7
  %v998 = vsub.s32 %v995, %v997
  %v999 = vrot.slane %v985, %v998
  %v1000 = vcombine.low %v935, %v951
  %v1001 = vcombine.high %v935, %v951
  %v1003 = vunpack.c.l.s4 1934713408
  %v1004 = vunpack.c.0.s8 %v1003
  %v1005 = vlaneseq
  %v1006 = vshrl.u32 %v1005, 7
  %v1007 = vsub.s32 %v1004, %v1006
  %v1008 = vrot.slane %v1000, %v1007
  %v1010 = vunpack.c.l.s4 1934713408
  %v1011 = vunpack.c.0.s8 %v1010
  %v1012 = vlaneseq
  %v1013 = vshrl.u32 %v1012, 7
  %v1014 = vsub.s32 %v1011, %v1013
  %v1015 = vrot.slane %v1001, %v1014
  %v1016 = vcombine.low %v960, %v976
  %v1017 = vcombine.high %v960, %v976
  %v1019 = vunpack.c.l.s4 1934713408
  %v1020 = vunpack.c.0.s8 %v1019
  %v1021 = vlaneseq
  %v1022 = vshrl.u32 %v1021, 7
  %v1023 = vsub.s32 %v1020, %v1022
  %v1024 = vrot.slane %v1016, %v1023
  %v1026 = vunpack.c.l.s4 1934713408
  %v1027 = vunpack.c.0.s8 %v1026
  %v1028 = vlaneseq
  %v1029 = vshrl.u32 %v1028, 7
  %v1030 = vsub.s32 %v1027, %v1029
  %v1031 = vrot.slane %v1017, %v1030
  %v1032 = vcombine.low %v967, %v983
  %v1033 = vcombine.high %v967, %v983
  %v1035 = vunpack.c.l.s4 1934713408
  %v1036 = vunpack.c.0.s8 %v1035
  %v1037 = vlaneseq
  %v1038 = vshrl.u32 %v1037, 7
  %v1039 = vsub.s32 %v1036, %v1038
  %v1040 = vrot.slane %v1032, %v1039
  %v1042 = vunpack.c.l.s4 1934713408
  %v1043 = vunpack.c.0.s8 %v1042
  %v1044 = vlaneseq
  %v1045 = vshrl.u32 %v1044, 7
  %v1046 = vsub.s32 %v1043, %v1045
  %v1047 = vrot.slane %v1033, %v1046
  %v1048 = vcombine.low %v992, %v1024
  %v1049 = vcombine.high %v992, %v1024
  %v1050 = vcombine.low %v999, %v1031
  %v1051 = vcombine.high %v999, %v1031
  %v1052 = vcombine.low %v1008, %v1040
  %v1053 = vcombine.high %v1008, %v1040
  %v1054 = vcombine.low %v1015, %v1047
  %v1055 = vcombine.high %v1015, %v1047
  %v1056 = vcombine.high %v714, 0.0
  %v1058 = vunpack.c.l.s4 1983009808
  %v1059 = vunpack.c.0.s8 %v1058
  %v1060 = vlaneseq
  %v1061 = vshrl.u32 %v1060, 7
  %v1062 = vsub.s32 %v1059, %v1061
  %v1063 = vrot.slane %v714, %v1062
  %v1065 = vunpack.c.l.s4 1983009808
  %v1066 = vunpack.c.0.s8 %v1065
  %v1067 = vlaneseq
  %v1068 = vshrl.u32 %v1067, 7
  %v1069 = vsub.s32 %v1066, %v1068
  %v1070 = vrot.slane %v1056, %v1069
  %v1071 = vcombine.high %v716, 0.0
  %v1073 = vunpack.c.l.s4 1983009808
  %v1074 = vunpack.c.0.s8 %v1073
  %v1075 = vlaneseq
  %v1076 = vshrl.u32 %v1075, 7
  %v1077 = vsub.s32 %v1074, %v1076
  %v1078 = vrot.slane %v716, %v1077
  %v1080 = vunpack.c.l.s4 1983009808
  %v1081 = vunpack.c.0.s8 %v1080
  %v1082 = vlaneseq
  %v1083 = vshrl.u32 %v1082, 7
  %v1084 = vsub.s32 %v1081, %v1083
  %v1085 = vrot.slane %v1071, %v1084
  %v1086 = vcombine.low %v1063, %v1078
  %v1087 = vcombine.high %v1063, %v1078
  %v1089 = vunpack.c.l.s4 1934713408
  %v1090 = vunpack.c.0.s8 %v1089
  %v1091 = vlaneseq
  %v1092 = vshrl.u32 %v1091, 7
  %v1093 = vsub.s32 %v1090, %v1092
  %v1094 = vrot.slane %v1086, %v1093
  %v1096 = vunpack.c.l.s4 1934713408
  %v1097 = vunpack.c.0.s8 %v1096
  %v1098 = vlaneseq
  %v1099 = vshrl.u32 %v1098, 7
  %v1100 = vsub.s32 %v1097, %v1099
  %v1101 = vrot.slane %v1087, %v1100
  %v1102 = vcombine.low %v1070, %v1085
  %v1103 = vcombine.high %v1070, %v1085
  %v1105 = vunpack.c.l.s4 1934713408
  %v1106 = vunpack.c.0.s8 %v1105
  %v1107 = vlaneseq
  %v1108 = vshrl.u32 %v1107, 7
  %v1109 = vsub.s32 %v1106, %v1108
  %v1110 = vrot.slane %v1102, %v1109
  %v1112 = vunpack.c.l.s4 1934713408
  %v1113 = vunpack.c.0.s8 %v1112
  %v1114 = vlaneseq
  %v1115 = vshrl.u32 %v1114, 7
  %v1116 = vsub.s32 %v1113, %v1115
  %v1117 = vrot.slane %v1103, %v1116
  %v1118 = vcombine.high %v1094, 0.0
  %v1119 = vcombine.high %v1101, 0.0
  %v1120 = vcombine.high %v1110, 0.0
  %v1121 = vcombine.high %v1117, 0.0
  %v1122 = vadd.f32 %v112, %v846
  %v1123 = vadd.f32 %v112, %v892
  %v1124 = vadd.f32 %v116, %v847
  %v1125 = vadd.f32 %v116, %v916
  %v1126 = vadd.f32 %v120, %v848
  %v1127 = vadd.f32 %v120, %v899
  %v1128 = vadd.f32 %v124, %v849
  %v1129 = vadd.f32 %v124, %v917
  %v1130 = vadd.f32 %v128, %v850
  %v1131 = vadd.f32 %v128, %v908
  %v1132 = vadd.f32 %v132, %v851
  %v1133 = vadd.f32 %v132, %v918
  %v1134 = vadd.f32 %v136, %v852
  %v1135 = vadd.f32 %v136, %v915
  %v1136 = vadd.f32 %v140, %v853
  %v1137 = vadd.f32 %v140, %v919
  %v1138 = vadd.f32 %v144, %v1048
  %v1139 = vadd.f32 %v144, %v1094
  %v1140 = vadd.f32 %v148, %v1049
  %v1141 = vadd.f32 %v148, %v1118
  %v1142 = vadd.f32 %v152, %v1050
  %v1143 = vadd.f32 %v152, %v1101
  %v1144 = vadd.f32 %v156, %v1051
  %v1145 = vadd.f32 %v156, %v1119
  %v1146 = vadd.f32 %v160, %v1052
  %v1147 = vadd.f32 %v160, %v1110
  %v1148 = vadd.f32 %v164, %v1053
  %v1149 = vadd.f32 %v164, %v1120
  %v1150 = vadd.f32 %v168, %v1054
  %v1151 = vadd.f32 %v168, %v1117
  %v1152 = vadd.f32 %v172, %v1055
  %v1153 = vadd.f32 %v172, %v1121
  %s1154 = scalar_lea.vmem %s1, 16
  %v1155 = vld [vmem:[%s1154] sm:$0xff]
  %v1156 = vld [vmem:[%s1154 + $0x8] sm:$0xff]
  %v1157 = vld [vmem:[%s0 + $0x1] sm:$0xff]
  %v1158 = vld [vmem:[%s0 + $0x9] sm:$0x3]
  %v1159 = vld [vmem:[%s0 + $0x11] sm:$0xff]
  %v1160 = vld [vmem:[%s0 + $0x19] sm:$0x3]
  %v1161 = vld [vmem:[%s0 + $0x21] sm:$0xff]
  %v1162 = vld [vmem:[%s0 + $0x29] sm:$0x3]
  %v1163 = vld [vmem:[%s0 + $0x31] sm:$0xff]
  %v1164 = vld [vmem:[%s0 + $0x39] sm:$0x3]
  %v1165 = vcombine.low %v1157, %v1161
  %v1166 = vcombine.high %v1157, %v1161
  %v1168 = vunpack.c.l.s4 1983009808
  %v1169 = vunpack.c.0.s8 %v1168
  %v1170 = vlaneseq
  %v1171 = vshrl.u32 %v1170, 7
  %v1172 = vsub.s32 %v1169, %v1171
  %v1173 = vrot.slane %v1165, %v1172
  %v1175 = vunpack.c.l.s4 1983009808
  %v1176 = vunpack.c.0.s8 %v1175
  %v1177 = vlaneseq
  %v1178 = vshrl.u32 %v1177, 7
  %v1179 = vsub.s32 %v1176, %v1178
  %v1180 = vrot.slane %v1166, %v1179
  %v1181 = vcombine.low %v1159, %v1163
  %v1182 = vcombine.high %v1159, %v1163
  %v1184 = vunpack.c.l.s4 1983009808
  %v1185 = vunpack.c.0.s8 %v1184
  %v1186 = vlaneseq
  %v1187 = vshrl.u32 %v1186, 7
  %v1188 = vsub.s32 %v1185, %v1187
  %v1189 = vrot.slane %v1181, %v1188
  %v1191 = vunpack.c.l.s4 1983009808
  %v1192 = vunpack.c.0.s8 %v1191
  %v1193 = vlaneseq
  %v1194 = vshrl.u32 %v1193, 7
  %v1195 = vsub.s32 %v1192, %v1194
  %v1196 = vrot.slane %v1182, %v1195
  %v1197 = vcombine.low %v1173, %v1189
  %v1198 = vcombine.high %v1173, %v1189
  %v1200 = vunpack.c.l.s4 1934713408
  %v1201 = vunpack.c.0.s8 %v1200
  %v1202 = vlaneseq
  %v1203 = vshrl.u32 %v1202, 7
  %v1204 = vsub.s32 %v1201, %v1203
  %v1205 = vrot.slane %v1197, %v1204
  %v1207 = vunpack.c.l.s4 1934713408
  %v1208 = vunpack.c.0.s8 %v1207
  %v1209 = vlaneseq
  %v1210 = vshrl.u32 %v1209, 7
  %v1211 = vsub.s32 %v1208, %v1210
  %v1212 = vrot.slane %v1198, %v1211
  %v1213 = vcombine.low %v1180, %v1196
  %v1214 = vcombine.high %v1180, %v1196
  %v1216 = vunpack.c.l.s4 1934713408
  %v1217 = vunpack.c.0.s8 %v1216
  %v1218 = vlaneseq
  %v1219 = vshrl.u32 %v1218, 7
  %v1220 = vsub.s32 %v1217, %v1219
  %v1221 = vrot.slane %v1213, %v1220
  %v1223 = vunpack.c.l.s4 1934713408
  %v1224 = vunpack.c.0.s8 %v1223
  %v1225 = vlaneseq
  %v1226 = vshrl.u32 %v1225, 7
  %v1227 = vsub.s32 %v1224, %v1226
  %v1228 = vrot.slane %v1214, %v1227
  %v1229 = vcombine.high %v1205, 0.0
  %v1230 = vcombine.high %v1212, 0.0
  %v1231 = vcombine.high %v1221, 0.0
  %v1232 = vcombine.high %v1228, 0.0
  %v1233 = vcombine.low %v1158, %v1162
  %v1235 = vunpack.c.l.s4 1983009808
  %v1236 = vunpack.c.0.s8 %v1235
  %v1237 = vlaneseq
  %v1238 = vshrl.u32 %v1237, 7
  %v1239 = vsub.s32 %v1236, %v1238
  %v1240 = vrot.slane %v1233, %v1239
  %v1241 = vcombine.low %v1160, %v1164
  %v1243 = vunpack.c.l.s4 1983009808
  %v1244 = vunpack.c.0.s8 %v1243
  %v1245 = vlaneseq
  %v1246 = vshrl.u32 %v1245, 7
  %v1247 = vsub.s32 %v1244, %v1246
  %v1248 = vrot.slane %v1241, %v1247
  %v1249 = vcombine.low %v1240, %v1248
  %v1251 = vunpack.c.l.s4 1934713408
  %v1252 = vunpack.c.0.s8 %v1251
  %v1253 = vlaneseq
  %v1254 = vshrl.u32 %v1253, 7
  %v1255 = vsub.s32 %v1252, %v1254
  %v1256 = vrot.slane %v1249, %v1255
  %v1257 = vcombine.high %v1256, 0.0
  %v1259 = vsel %vm295, %v1155, 0
  %v1262 = vsel %vm295, %v1156, 0
  %v1265 = vsel %vm302, %v1205, 0
  %v1268 = vsel %vm302, %v1229, 0
  %v1271 = vsel %vm302, %v1212, 0
  %v1274 = vsel %vm302, %v1230, 0
  %v1277 = vsel %vm302, %v1221, 0
  %v1280 = vsel %vm302, %v1231, 0
  %v1283 = vsel %vm302, %v1228, 0
  %v1286 = vsel %vm302, %v1232, 0
  %v1289 = vsel %vm302, %v1256, 0
  %v1292 = vsel %vm302, %v1257, 0
  %1294 = vmatprep.subr.mxu0 %v1268
  %1295 = vmatpush1.msra.mxu0 %v1265
  %1296 = vmatprep.subr.mxu0 0.0
  %1297 = vmatpush1.msra.mxu0 0.0
  %1298 = vmatprep.subr.mxu0 0.0
  %1299 = vmatpush1.msra.mxu0 0.0
  %1300 = vmatprep.subr.mxu0 0.0
  %1301 = vmatpush1.msra.mxu0 0.0
  %1302 = vmatprep.subr.mxu0 0.0
  %1303 = vmatpush1.msra.mxu0 0.0
  %1304 = vmatprep.subr.mxu0 0.0
  %1305 = vmatpush1.msra.mxu0 0.0
  %1306 = vmatprep.subr.mxu0 0.0
  %1307 = vmatpush1.msra.mxu0 0.0
  %1308 = vmatprep.subr.mxu0 0.0
  %1309 = vmatpush1.msra.mxu0 0.0
  %1310 = vmatprep.subr.mxu0 0.0
  %1311 = vmatpush1.msra.mxu0 0.0
  %1312 = vmatprep.subr.mxu0 0.0
  %1313 = vmatpush1.msra.mxu0 0.0
  %1314 = vmatprep.subr.mxu0 0.0
  %1315 = vmatpush1.msra.mxu0 0.0
  %1316 = vmatprep.subr.mxu0 0.0
  %1317 = vmatpush1.msra.mxu0 0.0
  %1318 = vmatprep.subr.mxu0 0.0
  %1319 = vmatpush1.msra.mxu0 0.0
  %1320 = vmatprep.subr.mxu0 0.0
  %1321 = vmatpush1.msra.mxu0 0.0
  %1322 = vmatprep.subr.mxu0 0.0
  %1323 = vmatpush1.msra.mxu0 0.0
  %1324 = vmatprep.subr.mxu0 0.0
  %1325 = vmatpush1.msra.mxu0 0.0
  %1326 = vmatprep.subr.mxu0 0.0
  %1327 = vmatpush1.msra.mxu0 0.0
  %1328 = vmatprep.subr.mxu0 0.0
  %1329 = vmatpush1.msra.mxu0 0.0
  %1330 = vmatprep.subr.mxu0 0.0
  %1331 = vmatpush1.msra.mxu0 0.0
  %1332 = vmatprep.subr.mxu0 0.0
  %1333 = vmatpush1.msra.mxu0 0.0
  %1334 = vmatprep.subr.mxu0 0.0
  %1335 = vmatpush1.msra.mxu0 0.0
  %1336 = vmatprep.subr.mxu0 0.0
  %1337 = vmatpush1.msra.mxu0 0.0
  %1338 = vmatprep.subr.mxu0 0.0
  %1339 = vmatpush1.msra.mxu0 0.0
  %1340 = vmatprep.subr.mxu0 0.0
  %1341 = vmatpush1.msra.mxu0 0.0
  %1342 = vmatprep.subr.mxu0 0.0
  %1343 = vmatpush1.msra.mxu0 0.0
  %1344 = vmatprep.subr.mxu0 0.0
  %1345 = vmatpush1.msra.mxu0 0.0
  %1346 = vmatprep.subr.mxu0 0.0
  %1347 = vmatpush1.msra.mxu0 0.0
  %1348 = vmatprep.subr.mxu0 0.0
  %1349 = vmatpush1.msra.mxu0 0.0
  %1350 = vmatprep.subr.mxu0 0.0
  %1351 = vmatpush1.msra.mxu0 0.0
  %1352 = vmatprep.subr.mxu0 0.0
  %1353 = vmatpush1.msra.mxu0 0.0
  %1354 = vmatprep.subr.mxu0 0.0
  %1355 = vmatpush1.msra.mxu0 0.0
  %1356 = vmatprep.subr.mxu0 0.0
  %1357 = vmatpush1.msra.mxu0 0.0
  %1358 = vmatprep.mubr.f32.mxu0 0.0
  %1359 = vmatmul.mubr.f32.gmra.mrb[0].mxu0 %v1259
  %v1360 = vpop.f32.mrb[0].mxu0
  %v1361 = vadd.f32 %v293, %v1360
  %v1362 = vpop.f32.mrb[0].mxu0
  %v1363 = vadd.f32 %v294, %v1362
  %1364 = vmatprep.mubr.f32.mxu0 0.0
  %1365 = vmatmul.mubr.f32.gmra.mrb[0].mxu0 %v1262
  %v1366 = vpop.f32.mrb[0].mxu0
  %v1367 = vadd.f32 %v293, %v1366
  %v1368 = vpop.f32.mrb[0].mxu0
  %v1369 = vadd.f32 %v294, %v1368
  %1370 = vdwg.mxu0
  %1371 = vmatprep.subr.mxu0 %v1274
  %1372 = vmatpush1.msra.mxu0 %v1271
  %1373 = vmatprep.subr.mxu0 0.0
  %1374 = vmatpush1.msra.mxu0 0.0
  %1375 = vmatprep.subr.mxu0 0.0
  %1376 = vmatpush1.msra.mxu0 0.0
  %1377 = vmatprep.subr.mxu0 0.0
  %1378 = vmatpush1.msra.mxu0 0.0
  %1379 = vmatprep.subr.mxu0 0.0
  %1380 = vmatpush1.msra.mxu0 0.0
  %1381 = vmatprep.subr.mxu0 0.0
  %1382 = vmatpush1.msra.mxu0 0.0
  %1383 = vmatprep.subr.mxu0 0.0
  %1384 = vmatpush1.msra.mxu0 0.0
  %1385 = vmatprep.subr.mxu0 0.0
  %1386 = vmatpush1.msra.mxu0 0.0
  %1387 = vmatprep.subr.mxu0 0.0
  %1388 = vmatpush1.msra.mxu0 0.0
  %1389 = vmatprep.subr.mxu0 0.0
  %1390 = vmatpush1.msra.mxu0 0.0
  %1391 = vmatprep.subr.mxu0 0.0
  %1392 = vmatpush1.msra.mxu0 0.0
  %1393 = vmatprep.subr.mxu0 0.0
  %1394 = vmatpush1.msra.mxu0 0.0
  %1395 = vmatprep.subr.mxu0 0.0
  %1396 = vmatpush1.msra.mxu0 0.0
  %1397 = vmatprep.subr.mxu0 0.0
  %1398 = vmatpush1.msra.mxu0 0.0
  %1399 = vmatprep.subr.mxu0 0.0
  %1400 = vmatpush1.msra.mxu0 0.0
  %1401 = vmatprep.subr.mxu0 0.0
  %1402 = vmatpush1.msra.mxu0 0.0
  %1403 = vmatprep.subr.mxu0 0.0
  %1404 = vmatpush1.msra.mxu0 0.0
  %1405 = vmatprep.subr.mxu0 0.0
  %1406 = vmatpush1.msra.mxu0 0.0
  %1407 = vmatprep.subr.mxu0 0.0
  %1408 = vmatpush1.msra.mxu0 0.0
  %1409 = vmatprep.subr.mxu0 0.0
  %1410 = vmatpush1.msra.mxu0 0.0
  %1411 = vmatprep.subr.mxu0 0.0
  %1412 = vmatpush1.msra.mxu0 0.0
  %1413 = vmatprep.subr.mxu0 0.0
  %1414 = vmatpush1.msra.mxu0 0.0
  %1415 = vmatprep.subr.mxu0 0.0
  %1416 = vmatpush1.msra.mxu0 0.0
  %1417 = vmatprep.subr.mxu0 0.0
  %1418 = vmatpush1.msra.mxu0 0.0
  %1419 = vmatprep.subr.mxu0 0.0
  %1420 = vmatpush1.msra.mxu0 0.0
  %1421 = vmatprep.subr.mxu0 0.0
  %1422 = vmatpush1.msra.mxu0 0.0
  %1423 = vmatprep.subr.mxu0 0.0
  %1424 = vmatpush1.msra.mxu0 0.0
  %1425 = vmatprep.subr.mxu0 0.0
  %1426 = vmatpush1.msra.mxu0 0.0
  %1427 = vmatprep.subr.mxu0 0.0
  %1428 = vmatpush1.msra.mxu0 0.0
  %1429 = vmatprep.subr.mxu0 0.0
  %1430 = vmatpush1.msra.mxu0 0.0
  %1431 = vmatprep.subr.mxu0 0.0
  %1432 = vmatpush1.msra.mxu0 0.0
  %1433 = vmatprep.subr.mxu0 0.0
  %1434 = vmatpush1.msra.mxu0 0.0
  %1435 = vmatprep.mubr.f32.mxu0 0.0
  %1436 = vmatmul.mubr.f32.gmra.mrb[0].mxu0 %v1259
  %v1437 = vpop.f32.mrb[0].mxu0
  %v1438 = vadd.f32 0.0, %v1437
  %v1439 = vpop.f32.mrb[0].mxu0
  %v1440 = vadd.f32 0.0, %v1439
  %1441 = vmatprep.mubr.f32.mxu0 0.0
  %1442 = vmatmul.mubr.f32.gmra.mrb[0].mxu0 %v1262
  %v1443 = vpop.f32.mrb[0].mxu0
  %v1444 = vadd.f32 0.0, %v1443
  %v1445 = vpop.f32.mrb[0].mxu0
  %v1446 = vadd.f32 0.0, %v1445
  %1447 = vdwg.mxu0
  %1448 = vmatprep.subr.mxu0 %v1280
  %1449 = vmatpush1.msra.mxu0 %v1277
  %1450 = vmatprep.subr.mxu0 0.0
  %1451 = vmatpush1.msra.mxu0 0.0
  %1452 = vmatprep.subr.mxu0 0.0
  %1453 = vmatpush1.msra.mxu0 0.0
  %1454 = vmatprep.subr.mxu0 0.0
  %1455 = vmatpush1.msra.mxu0 0.0
  %1456 = vmatprep.subr.mxu0 0.0
  %1457 = vmatpush1.msra.mxu0 0.0
  %1458 = vmatprep.subr.mxu0 0.0
  %1459 = vmatpush1.msra.mxu0 0.0
  %1460 = vmatprep.subr.mxu0 0.0
  %1461 = vmatpush1.msra.mxu0 0.0
  %1462 = vmatprep.subr.mxu0 0.0
  %1463 = vmatpush1.msra.mxu0 0.0
  %1464 = vmatprep.subr.mxu0 0.0
  %1465 = vmatpush1.msra.mxu0 0.0
  %1466 = vmatprep.subr.mxu0 0.0
  %1467 = vmatpush1.msra.mxu0 0.0
  %1468 = vmatprep.subr.mxu0 0.0
  %1469 = vmatpush1.msra.mxu0 0.0
  %1470 = vmatprep.subr.mxu0 0.0
  %1471 = vmatpush1.msra.mxu0 0.0
  %1472 = vmatprep.subr.mxu0 0.0
  %1473 = vmatpush1.msra.mxu0 0.0
  %1474 = vmatprep.subr.mxu0 0.0
  %1475 = vmatpush1.msra.mxu0 0.0
  %1476 = vmatprep.subr.mxu0 0.0
  %1477 = vmatpush1.msra.mxu0 0.0
  %1478 = vmatprep.subr.mxu0 0.0
  %1479 = vmatpush1.msra.mxu0 0.0
  %1480 = vmatprep.subr.mxu0 0.0
  %1481 = vmatpush1.msra.mxu0 0.0
  %1482 = vmatprep.subr.mxu0 0.0
  %1483 = vmatpush1.msra.mxu0 0.0
  %1484 = vmatprep.subr.mxu0 0.0
  %1485 = vmatpush1.msra.mxu0 0.0
  %1486 = vmatprep.subr.mxu0 0.0
  %1487 = vmatpush1.msra.mxu0 0.0
  %1488 = vmatprep.subr.mxu0 0.0
  %1489 = vmatpush1.msra.mxu0 0.0
  %1490 = vmatprep.subr.mxu0 0.0
  %1491 = vmatpush1.msra.mxu0 0.0
  %1492 = vmatprep.subr.mxu0 0.0
  %1493 = vmatpush1.msra.mxu0 0.0
  %1494 = vmatprep.subr.mxu0 0.0
  %1495 = vmatpush1.msra.mxu0 0.0
  %1496 = vmatprep.subr.mxu0 0.0
  %1497 = vmatpush1.msra.mxu0 0.0
  %1498 = vmatprep.subr.mxu0 0.0
  %1499 = vmatpush1.msra.mxu0 0.0
  %1500 = vmatprep.subr.mxu0 0.0
  %1501 = vmatpush1.msra.mxu0 0.0
  %1502 = vmatprep.subr.mxu0 0.0
  %1503 = vmatpush1.msra.mxu0 0.0
  %1504 = vmatprep.subr.mxu0 0.0
  %1505 = vmatpush1.msra.mxu0 0.0
  %1506 = vmatprep.subr.mxu0 0.0
  %1507 = vmatpush1.msra.mxu0 0.0
  %1508 = vmatprep.subr.mxu0 0.0
  %1509 = vmatpush1.msra.mxu0 0.0
  %1510 = vmatprep.subr.mxu0 0.0
  %1511 = vmatpush1.msra.mxu0 0.0
  %1512 = vmatprep.mubr.f32.mxu0 0.0
  %1513 = vmatmul.mubr.f32.gmra.mrb[0].mxu0 %v1259
  %v1514 = vpop.f32.mrb[0].mxu0
  %v1515 = vadd.f32 0.0, %v1514
  %v1516 = vpop.f32.mrb[0].mxu0
  %v1517 = vadd.f32 0.0, %v1516
  %1518 = vmatprep.mubr.f32.mxu0 0.0
  %1519 = vmatmul.mubr.f32.gmra.mrb[0].mxu0 %v1262
  %v1520 = vpop.f32.mrb[0].mxu0
  %v1521 = vadd.f32 0.0, %v1520
  %v1522 = vpop.f32.mrb[0].mxu0
  %v1523 = vadd.f32 0.0, %v1522
  %1524 = vdwg.mxu0
  %1525 = vmatprep.subr.mxu0 %v1286
  %1526 = vmatpush1.msra.mxu0 %v1283
  %1527 = vmatprep.subr.mxu0 0.0
  %1528 = vmatpush1.msra.mxu0 0.0
  %1529 = vmatprep.subr.mxu0 0.0
  %1530 = vmatpush1.msra.mxu0 0.0
  %1531 = vmatprep.subr.mxu0 0.0
  %1532 = vmatpush1.msra.mxu0 0.0
  %1533 = vmatprep.subr.mxu0 0.0
  %1534 = vmatpush1.msra.mxu0 0.0
  %1535 = vmatprep.subr.mxu0 0.0
  %1536 = vmatpush1.msra.mxu0 0.0
  %1537 = vmatprep.subr.mxu0 0.0
  %1538 = vmatpush1.msra.mxu0 0.0
  %1539 = vmatprep.subr.mxu0 0.0
  %1540 = vmatpush1.msra.mxu0 0.0
  %1541 = vmatprep.subr.mxu0 0.0
  %1542 = vmatpush1.msra.mxu0 0.0
  %1543 = vmatprep.subr.mxu0 0.0
  %1544 = vmatpush1.msra.mxu0 0.0
  %1545 = vmatprep.subr.mxu0 0.0
  %1546 = vmatpush1.msra.mxu0 0.0
  %1547 = vmatprep.subr.mxu0 0.0
  %1548 = vmatpush1.msra.mxu0 0.0
  %1549 = vmatprep.subr.mxu0 0.0
  %1550 = vmatpush1.msra.mxu0 0.0
  %1551 = vmatprep.subr.mxu0 0.0
  %1552 = vmatpush1.msra.mxu0 0.0
  %1553 = vmatprep.subr.mxu0 0.0
  %1554 = vmatpush1.msra.mxu0 0.0
  %1555 = vmatprep.subr.mxu0 0.0
  %1556 = vmatpush1.msra.mxu0 0.0
  %1557 = vmatprep.subr.mxu0 0.0
  %1558 = vmatpush1.msra.mxu0 0.0
  %1559 = vmatprep.subr.mxu0 0.0
  %1560 = vmatpush1.msra.mxu0 0.0
  %1561 = vmatprep.subr.mxu0 0.0
  %1562 = vmatpush1.msra.mxu0 0.0
  %1563 = vmatprep.subr.mxu0 0.0
  %1564 = vmatpush1.msra.mxu0 0.0
  %1565 = vmatprep.subr.mxu0 0.0
  %1566 = vmatpush1.msra.mxu0 0.0
  %1567 = vmatprep.subr.mxu0 0.0
  %1568 = vmatpush1.msra.mxu0 0.0
  %1569 = vmatprep.subr.mxu0 0.0
  %1570 = vmatpush1.msra.mxu0 0.0
  %1571 = vmatprep.subr.mxu0 0.0
  %1572 = vmatpush1.msra.mxu0 0.0
  %1573 = vmatprep.subr.mxu0 0.0
  %1574 = vmatpush1.msra.mxu0 0.0
  %1575 = vmatprep.subr.mxu0 0.0
  %1576 = vmatpush1.msra.mxu0 0.0
  %1577 = vmatprep.subr.mxu0 0.0
  %1578 = vmatpush1.msra.mxu0 0.0
  %1579 = vmatprep.subr.mxu0 0.0
  %1580 = vmatpush1.msra.mxu0 0.0
  %1581 = vmatprep.subr.mxu0 0.0
  %1582 = vmatpush1.msra.mxu0 0.0
  %1583 = vmatprep.subr.mxu0 0.0
  %1584 = vmatpush1.msra.mxu0 0.0
  %1585 = vmatprep.subr.mxu0 0.0
  %1586 = vmatpush1.msra.mxu0 0.0
  %1587 = vmatprep.subr.mxu0 0.0
  %1588 = vmatpush1.msra.mxu0 0.0
  %1589 = vmatprep.mubr.f32.mxu0 0.0
  %1590 = vmatmul.mubr.f32.gmra.mrb[0].mxu0 %v1259
  %v1591 = vpop.f32.mrb[0].mxu0
  %v1592 = vadd.f32 0.0, %v1591
  %v1593 = vpop.f32.mrb[0].mxu0
  %v1594 = vadd.f32 0.0, %v1593
  %1595 = vmatprep.mubr.f32.mxu0 0.0
  %1596 = vmatmul.mubr.f32.gmra.mrb[0].mxu0 %v1262
  %v1597 = vpop.f32.mrb[0].mxu0
  %v1598 = vadd.f32 0.0, %v1597
  %v1599 = vpop.f32.mrb[0].mxu0
  %v1600 = vadd.f32 0.0, %v1599
  %1601 = vdwg.mxu0
  %1602 = vmatprep.subr.mxu0 %v1292
  %1603 = vmatpush1.msra.mxu0 %v1289
  %1604 = vmatprep.subr.mxu0 0.0
  %1605 = vmatpush1.msra.mxu0 0.0
  %1606 = vmatprep.subr.mxu0 0.0
  %1607 = vmatpush1.msra.mxu0 0.0
  %1608 = vmatprep.subr.mxu0 0.0
  %1609 = vmatpush1.msra.mxu0 0.0
  %1610 = vmatprep.subr.mxu0 0.0
  %1611 = vmatpush1.msra.mxu0 0.0
  %1612 = vmatprep.subr.mxu0 0.0
  %1613 = vmatpush1.msra.mxu0 0.0
  %1614 = vmatprep.subr.mxu0 0.0
  %1615 = vmatpush1.msra.mxu0 0.0
  %1616 = vmatprep.subr.mxu0 0.0
  %1617 = vmatpush1.msra.mxu0 0.0
  %1618 = vmatprep.subr.mxu0 0.0
  %1619 = vmatpush1.msra.mxu0 0.0
  %1620 = vmatprep.subr.mxu0 0.0
  %1621 = vmatpush1.msra.mxu0 0.0
  %1622 = vmatprep.subr.mxu0 0.0
  %1623 = vmatpush1.msra.mxu0 0.0
  %1624 = vmatprep.subr.mxu0 0.0
  %1625 = vmatpush1.msra.mxu0 0.0
  %1626 = vmatprep.subr.mxu0 0.0
  %1627 = vmatpush1.msra.mxu0 0.0
  %1628 = vmatprep.subr.mxu0 0.0
  %1629 = vmatpush1.msra.mxu0 0.0
  %1630 = vmatprep.subr.mxu0 0.0
  %1631 = vmatpush1.msra.mxu0 0.0
  %1632 = vmatprep.subr.mxu0 0.0
  %1633 = vmatpush1.msra.mxu0 0.0
  %1634 = vmatprep.subr.mxu0 0.0
  %1635 = vmatpush1.msra.mxu0 0.0
  %1636 = vmatprep.subr.mxu0 0.0
  %1637 = vmatpush1.msra.mxu0 0.0
  %1638 = vmatprep.subr.mxu0 0.0
  %1639 = vmatpush1.msra.mxu0 0.0
  %1640 = vmatprep.subr.mxu0 0.0
  %1641 = vmatpush1.msra.mxu0 0.0
  %1642 = vmatprep.subr.mxu0 0.0
  %1643 = vmatpush1.msra.mxu0 0.0
  %1644 = vmatprep.subr.mxu0 0.0
  %1645 = vmatpush1.msra.mxu0 0.0
  %1646 = vmatprep.subr.mxu0 0.0
  %1647 = vmatpush1.msra.mxu0 0.0
  %1648 = vmatprep.subr.mxu0 0.0
  %1649 = vmatpush1.msra.mxu0 0.0
  %1650 = vmatprep.subr.mxu0 0.0
  %1651 = vmatpush1.msra.mxu0 0.0
  %1652 = vmatprep.subr.mxu0 0.0
  %1653 = vmatpush1.msra.mxu0 0.0
  %1654 = vmatprep.subr.mxu0 0.0
  %1655 = vmatpush1.msra.mxu0 0.0
  %1656 = vmatprep.subr.mxu0 0.0
  %1657 = vmatpush1.msra.mxu0 0.0
  %1658 = vmatprep.subr.mxu0 0.0
  %1659 = vmatpush1.msra.mxu0 0.0
  %1660 = vmatprep.subr.mxu0 0.0
  %1661 = vmatpush1.msra.mxu0 0.0
  %1662 = vmatprep.subr.mxu0 0.0
  %1663 = vmatpush1.msra.mxu0 0.0
  %1664 = vmatprep.subr.mxu0 0.0
  %1665 = vmatpush1.msra.mxu0 0.0
  %1666 = vmatprep.mubr.f32.mxu0 0.0
  %1667 = vmatmul.mubr.f32.gmra.mrb[0].mxu0 %v1259
  %v1668 = vpop.f32.mrb[0].mxu0
  %v1669 = vadd.f32 %v293, %v1668
  %v1670 = vpop.f32.mrb[0].mxu0
  %v1671 = vadd.f32 %v294, %v1670
  %1672 = vmatprep.mubr.f32.mxu0 0.0
  %1673 = vmatmul.mubr.f32.gmra.mrb[0].mxu0 %v1262
  %v1674 = vpop.f32.mrb[0].mxu0
  %v1675 = vadd.f32 %v293, %v1674
  %v1676 = vpop.f32.mrb[0].mxu0
  %v1677 = vadd.f32 %v294, %v1676
  %1678 = vdwg.mxu0
  %v1679 = vcombine.low %v1361, %v1438
  %v1680 = vcombine.high %v1361, %v1438
  %v1682 = vunpack.c.l.s4 1983009808
  %v1683 = vunpack.c.0.s8 %v1682
  %v1684 = vlaneseq
  %v1685 = vshrl.u32 %v1684, 7
  %v1686 = vsub.s32 %v1683, %v1685
  %v1687 = vrot.slane %v1679, %v1686
  %v1689 = vunpack.c.l.s4 1983009808
  %v1690 = vunpack.c.0.s8 %v1689
  %v1691 = vlaneseq
  %v1692 = vshrl.u32 %v1691, 7
  %v1693 = vsub.s32 %v1690, %v1692
  %v1694 = vrot.slane %v1680, %v1693
  %v1695 = vcombine.low %v1363, %v1440
  %v1696 = vcombine.high %v1363, %v1440
  %v1698 = vunpack.c.l.s4 1983009808
  %v1699 = vunpack.c.0.s8 %v1698
  %v1700 = vlaneseq
  %v1701 = vshrl.u32 %v1700, 7
  %v1702 = vsub.s32 %v1699, %v1701
  %v1703 = vrot.slane %v1695, %v1702
  %v1705 = vunpack.c.l.s4 1983009808
  %v1706 = vunpack.c.0.s8 %v1705
  %v1707 = vlaneseq
  %v1708 = vshrl.u32 %v1707, 7
  %v1709 = vsub.s32 %v1706, %v1708
  %v1710 = vrot.slane %v1696, %v1709
  %v1711 = vcombine.low %v1515, %v1592
  %v1712 = vcombine.high %v1515, %v1592
  %v1714 = vunpack.c.l.s4 1983009808
  %v1715 = vunpack.c.0.s8 %v1714
  %v1716 = vlaneseq
  %v1717 = vshrl.u32 %v1716, 7
  %v1718 = vsub.s32 %v1715, %v1717
  %v1719 = vrot.slane %v1711, %v1718
  %v1721 = vunpack.c.l.s4 1983009808
  %v1722 = vunpack.c.0.s8 %v1721
  %v1723 = vlaneseq
  %v1724 = vshrl.u32 %v1723, 7
  %v1725 = vsub.s32 %v1722, %v1724
  %v1726 = vrot.slane %v1712, %v1725
  %v1727 = vcombine.low %v1517, %v1594
  %v1728 = vcombine.high %v1517, %v1594
  %v1730 = vunpack.c.l.s4 1983009808
  %v1731 = vunpack.c.0.s8 %v1730
  %v1732 = vlaneseq
  %v1733 = vshrl.u32 %v1732, 7
  %v1734 = vsub.s32 %v1731, %v1733
  %v1735 = vrot.slane %v1727, %v1734
  %v1737 = vunpack.c.l.s4 1983009808
  %v1738 = vunpack.c.0.s8 %v1737
  %v1739 = vlaneseq
  %v1740 = vshrl.u32 %v1739, 7
  %v1741 = vsub.s32 %v1738, %v1740
  %v1742 = vrot.slane %v1728, %v1741
  %v1743 = vcombine.low %v1687, %v1703
  %v1744 = vcombine.high %v1687, %v1703
  %v1746 = vunpack.c.l.s4 1934713408
  %v1747 = vunpack.c.0.s8 %v1746
  %v1748 = vlaneseq
  %v1749 = vshrl.u32 %v1748, 7
  %v1750 = vsub.s32 %v1747, %v1749
  %v1751 = vrot.slane %v1743, %v1750
  %v1753 = vunpack.c.l.s4 1934713408
  %v1754 = vunpack.c.0.s8 %v1753
  %v1755 = vlaneseq
  %v1756 = vshrl.u32 %v1755, 7
  %v1757 = vsub.s32 %v1754, %v1756
  %v1758 = vrot.slane %v1744, %v1757
  %v1759 = vcombine.low %v1694, %v1710
  %v1760 = vcombine.high %v1694, %v1710
  %v1762 = vunpack.c.l.s4 1934713408
  %v1763 = vunpack.c.0.s8 %v1762
  %v1764 = vlaneseq
  %v1765 = vshrl.u32 %v1764, 7
  %v1766 = vsub.s32 %v1763, %v1765
  %v1767 = vrot.slane %v1759, %v1766
  %v1769 = vunpack.c.l.s4 1934713408
  %v1770 = vunpack.c.0.s8 %v1769
  %v1771 = vlaneseq
  %v1772 = vshrl.u32 %v1771, 7
  %v1773 = vsub.s32 %v1770, %v1772
  %v1774 = vrot.slane %v1760, %v1773
  %v1775 = vcombine.low %v1719, %v1735
  %v1776 = vcombine.high %v1719, %v1735
  %v1778 = vunpack.c.l.s4 1934713408
  %v1779 = vunpack.c.0.s8 %v1778
  %v1780 = vlaneseq
  %v1781 = vshrl.u32 %v1780, 7
  %v1782 = vsub.s32 %v1779, %v1781
  %v1783 = vrot.slane %v1775, %v1782
  %v1785 = vunpack.c.l.s4 1934713408
  %v1786 = vunpack.c.0.s8 %v1785
  %v1787 = vlaneseq
  %v1788 = vshrl.u32 %v1787, 7
  %v1789 = vsub.s32 %v1786, %v1788
  %v1790 = vrot.slane %v1776, %v1789
  %v1791 = vcombine.low %v1726, %v1742
  %v1792 = vcombine.high %v1726, %v1742
  %v1794 = vunpack.c.l.s4 1934713408
  %v1795 = vunpack.c.0.s8 %v1794
  %v1796 = vlaneseq
  %v1797 = vshrl.u32 %v1796, 7
  %v1798 = vsub.s32 %v1795, %v1797
  %v1799 = vrot.slane %v1791, %v1798
  %v1801 = vunpack.c.l.s4 1934713408
  %v1802 = vunpack.c.0.s8 %v1801
  %v1803 = vlaneseq
  %v1804 = vshrl.u32 %v1803, 7
  %v1805 = vsub.s32 %v1802, %v1804
  %v1806 = vrot.slane %v1792, %v1805
  %v1807 = vcombine.low %v1751, %v1783
  %v1808 = vcombine.high %v1751, %v1783
  %v1809 = vcombine.low %v1758, %v1790
  %v1810 = vcombine.high %v1758, %v1790
  %v1811 = vcombine.low %v1767, %v1799
  %v1812 = vcombine.high %v1767, %v1799
  %v1813 = vcombine.low %v1774, %v1806
  %v1814 = vcombine.high %v1774, %v1806
  %v1815 = vcombine.high %v1669, 0.0
  %v1817 = vunpack.c.l.s4 1983009808
  %v1818 = vunpack.c.0.s8 %v1817
  %v1819 = vlaneseq
  %v1820 = vshrl.u32 %v1819, 7
  %v1821 = vsub.s32 %v1818, %v1820
  %v1822 = vrot.slane %v1669, %v1821
  %v1824 = vunpack.c.l.s4 1983009808
  %v1825 = vunpack.c.0.s8 %v1824
  %v1826 = vlaneseq
  %v1827 = vshrl.u32 %v1826, 7
  %v1828 = vsub.s32 %v1825, %v1827
  %v1829 = vrot.slane %v1815, %v1828
  %v1830 = vcombine.high %v1671, 0.0
  %v1832 = vunpack.c.l.s4 1983009808
  %v1833 = vunpack.c.0.s8 %v1832
  %v1834 = vlaneseq
  %v1835 = vshrl.u32 %v1834, 7
  %v1836 = vsub.s32 %v1833, %v1835
  %v1837 = vrot.slane %v1671, %v1836
  %v1839 = vunpack.c.l.s4 1983009808
  %v1840 = vunpack.c.0.s8 %v1839
  %v1841 = vlaneseq
  %v1842 = vshrl.u32 %v1841, 7
  %v1843 = vsub.s32 %v1840, %v1842
  %v1844 = vrot.slane %v1830, %v1843
  %v1845 = vcombine.low %v1822, %v1837
  %v1846 = vcombine.high %v1822, %v1837
  %v1848 = vunpack.c.l.s4 1934713408
  %v1849 = vunpack.c.0.s8 %v1848
  %v1850 = vlaneseq
  %v1851 = vshrl.u32 %v1850, 7
  %v1852 = vsub.s32 %v1849, %v1851
  %v1853 = vrot.slane %v1845, %v1852
  %v1855 = vunpack.c.l.s4 1934713408
  %v1856 = vunpack.c.0.s8 %v1855
  %v1857 = vlaneseq
  %v1858 = vshrl.u32 %v1857, 7
  %v1859 = vsub.s32 %v1856, %v1858
  %v1860 = vrot.slane %v1846, %v1859
  %v1861 = vcombine.low %v1829, %v1844
  %v1862 = vcombine.high %v1829, %v1844
  %v1864 = vunpack.c.l.s4 1934713408
  %v1865 = vunpack.c.0.s8 %v1864
  %v1866 = vlaneseq
  %v1867 = vshrl.u32 %v1866, 7
  %v1868 = vsub.s32 %v1865, %v1867
  %v1869 = vrot.slane %v1861, %v1868
  %v1871 = vunpack.c.l.s4 1934713408
  %v1872 = vunpack.c.0.s8 %v1871
  %v1873 = vlaneseq
  %v1874 = vshrl.u32 %v1873, 7
  %v1875 = vsub.s32 %v1872, %v1874
  %v1876 = vrot.slane %v1862, %v1875
  %v1877 = vcombine.high %v1853, 0.0
  %v1878 = vcombine.high %v1860, 0.0
  %v1879 = vcombine.high %v1869, 0.0
  %v1880 = vcombine.high %v1876, 0.0
  %v1881 = vcombine.low %v1367, %v1444
  %v1882 = vcombine.high %v1367, %v1444
  %v1884 = vunpack.c.l.s4 1983009808
  %v1885 = vunpack.c.0.s8 %v1884
  %v1886 = vlaneseq
  %v1887 = vshrl.u32 %v1886, 7
  %v1888 = vsub.s32 %v1885, %v1887
  %v1889 = vrot.slane %v1881, %v1888
  %v1891 = vunpack.c.l.s4 1983009808
  %v1892 = vunpack.c.0.s8 %v1891
  %v1893 = vlaneseq
  %v1894 = vshrl.u32 %v1893, 7
  %v1895 = vsub.s32 %v1892, %v1894
  %v1896 = vrot.slane %v1882, %v1895
  %v1897 = vcombine.low %v1369, %v1446
  %v1898 = vcombine.high %v1369, %v1446
  %v1900 = vunpack.c.l.s4 1983009808
  %v1901 = vunpack.c.0.s8 %v1900
  %v1902 = vlaneseq
  %v1903 = vshrl.u32 %v1902, 7
  %v1904 = vsub.s32 %v1901, %v1903
  %v1905 = vrot.slane %v1897, %v1904
  %v1907 = vunpack.c.l.s4 1983009808
  %v1908 = vunpack.c.0.s8 %v1907
  %v1909 = vlaneseq
  %v1910 = vshrl.u32 %v1909, 7
  %v1911 = vsub.s32 %v1908, %v1910
  %v1912 = vrot.slane %v1898, %v1911
  %v1913 = vcombine.low %v1521, %v1598
  %v1914 = vcombine.high %v1521, %v1598
  %v1916 = vunpack.c.l.s4 1983009808
  %v1917 = vunpack.c.0.s8 %v1916
  %v1918 = vlaneseq
  %v1919 = vshrl.u32 %v1918, 7
  %v1920 = vsub.s32 %v1917, %v1919
  %v1921 = vrot.slane %v1913, %v1920
  %v1923 = vunpack.c.l.s4 1983009808
  %v1924 = vunpack.c.0.s8 %v1923
  %v1925 = vlaneseq
  %v1926 = vshrl.u32 %v1925, 7
  %v1927 = vsub.s32 %v1924, %v1926
  %v1928 = vrot.slane %v1914, %v1927
  %v1929 = vcombine.low %v1523, %v1600
  %v1930 = vcombine.high %v1523, %v1600
  %v1932 = vunpack.c.l.s4 1983009808
  %v1933 = vunpack.c.0.s8 %v1932
  %v1934 = vlaneseq
  %v1935 = vshrl.u32 %v1934, 7
  %v1936 = vsub.s32 %v1933, %v1935
  %v1937 = vrot.slane %v1929, %v1936
  %v1939 = vunpack.c.l.s4 1983009808
  %v1940 = vunpack.c.0.s8 %v1939
  %v1941 = vlaneseq
  %v1942 = vshrl.u32 %v1941, 7
  %v1943 = vsub.s32 %v1940, %v1942
  %v1944 = vrot.slane %v1930, %v1943
  %v1945 = vcombine.low %v1889, %v1905
  %v1946 = vcombine.high %v1889, %v1905
  %v1948 = vunpack.c.l.s4 1934713408
  %v1949 = vunpack.c.0.s8 %v1948
  %v1950 = vlaneseq
  %v1951 = vshrl.u32 %v1950, 7
  %v1952 = vsub.s32 %v1949, %v1951
  %v1953 = vrot.slane %v1945, %v1952
  %v1955 = vunpack.c.l.s4 1934713408
  %v1956 = vunpack.c.0.s8 %v1955
  %v1957 = vlaneseq
  %v1958 = vshrl.u32 %v1957, 7
  %v1959 = vsub.s32 %v1956, %v1958
  %v1960 = vrot.slane %v1946, %v1959
  %v1961 = vcombine.low %v1896, %v1912
  %v1962 = vcombine.high %v1896, %v1912
  %v1964 = vunpack.c.l.s4 1934713408
  %v1965 = vunpack.c.0.s8 %v1964
  %v1966 = vlaneseq
  %v1967 = vshrl.u32 %v1966, 7
  %v1968 = vsub.s32 %v1965, %v1967
  %v1969 = vrot.slane %v1961, %v1968
  %v1971 = vunpack.c.l.s4 1934713408
  %v1972 = vunpack.c.0.s8 %v1971
  %v1973 = vlaneseq
  %v1974 = vshrl.u32 %v1973, 7
  %v1975 = vsub.s32 %v1972, %v1974
  %v1976 = vrot.slane %v1962, %v1975
  %v1977 = vcombine.low %v1921, %v1937
  %v1978 = vcombine.high %v1921, %v1937
  %v1980 = vunpack.c.l.s4 1934713408
  %v1981 = vunpack.c.0.s8 %v1980
  %v1982 = vlaneseq
  %v1983 = vshrl.u32 %v1982, 7
  %v1984 = vsub.s32 %v1981, %v1983
  %v1985 = vrot.slane %v1977, %v1984
  %v1987 = vunpack.c.l.s4 1934713408
  %v1988 = vunpack.c.0.s8 %v1987
  %v1989 = vlaneseq
  %v1990 = vshrl.u32 %v1989, 7
  %v1991 = vsub.s32 %v1988, %v1990
  %v1992 = vrot.slane %v1978, %v1991
  %v1993 = vcombine.low %v1928, %v1944
  %v1994 = vcombine.high %v1928, %v1944
  %v1996 = vunpack.c.l.s4 1934713408
  %v1997 = vunpack.c.0.s8 %v1996
  %v1998 = vlaneseq
  %v1999 = vshrl.u32 %v1998, 7
  %v2000 = vsub.s32 %v1997, %v1999
  %v2001 = vrot.slane %v1993, %v2000
  %v2003 = vunpack.c.l.s4 1934713408
  %v2004 = vunpack.c.0.s8 %v2003
  %v2005 = vlaneseq
  %v2006 = vshrl.u32 %v2005, 7
  %v2007 = vsub.s32 %v2004, %v2006
  %v2008 = vrot.slane %v1994, %v2007
  %v2009 = vcombine.low %v1953, %v1985
  %v2010 = vcombine.high %v1953, %v1985
  %v2011 = vcombine.low %v1960, %v1992
  %v2012 = vcombine.high %v1960, %v1992
  %v2013 = vcombine.low %v1969, %v2001
  %v2014 = vcombine.high %v1969, %v2001
  %v2015 = vcombine.low %v1976, %v2008
  %v2016 = vcombine.high %v1976, %v2008
  %v2017 = vcombine.high %v1675, 0.0
  %v2019 = vunpack.c.l.s4 1983009808
  %v2020 = vunpack.c.0.s8 %v2019
  %v2021 = vlaneseq
  %v2022 = vshrl.u32 %v2021, 7
  %v2023 = vsub.s32 %v2020, %v2022
  %v2024 = vrot.slane %v1675, %v2023
  %v2026 = vunpack.c.l.s4 1983009808
  %v2027 = vunpack.c.0.s8 %v2026
  %v2028 = vlaneseq
  %v2029 = vshrl.u32 %v2028, 7
  %v2030 = vsub.s32 %v2027, %v2029
  %v2031 = vrot.slane %v2017, %v2030
  %v2032 = vcombine.high %v1677, 0.0
  %v2034 = vunpack.c.l.s4 1983009808
  %v2035 = vunpack.c.0.s8 %v2034
  %v2036 = vlaneseq
  %v2037 = vshrl.u32 %v2036, 7
  %v2038 = vsub.s32 %v2035, %v2037
  %v2039 = vrot.slane %v1677, %v2038
  %v2041 = vunpack.c.l.s4 1983009808
  %v2042 = vunpack.c.0.s8 %v2041
  %v2043 = vlaneseq
  %v2044 = vshrl.u32 %v2043, 7
  %v2045 = vsub.s32 %v2042, %v2044
  %v2046 = vrot.slane %v2032, %v2045
  %v2047 = vcombine.low %v2024, %v2039
  %v2048 = vcombine.high %v2024, %v2039
  %v2050 = vunpack.c.l.s4 1934713408
  %v2051 = vunpack.c.0.s8 %v2050
  %v2052 = vlaneseq
  %v2053 = vshrl.u32 %v2052, 7
  %v2054 = vsub.s32 %v2051, %v2053
  %v2055 = vrot.slane %v2047, %v2054
  %v2057 = vunpack.c.l.s4 1934713408
  %v2058 = vunpack.c.0.s8 %v2057
  %v2059 = vlaneseq
  %v2060 = vshrl.u32 %v2059, 7
  %v2061 = vsub.s32 %v2058, %v2060
  %v2062 = vrot.slane %v2048, %v2061
  %v2063 = vcombine.low %v2031, %v2046
  %v2064 = vcombine.high %v2031, %v2046
  %v2066 = vunpack.c.l.s4 1934713408
  %v2067 = vunpack.c.0.s8 %v2066
  %v2068 = vlaneseq
  %v2069 = vshrl.u32 %v2068, 7
  %v2070 = vsub.s32 %v2067, %v2069
  %v2071 = vrot.slane %v2063, %v2070
  %v2073 = vunpack.c.l.s4 1934713408
  %v2074 = vunpack.c.0.s8 %v2073
  %v2075 = vlaneseq
  %v2076 = vshrl.u32 %v2075, 7
  %v2077 = vsub.s32 %v2074, %v2076
  %v2078 = vrot.slane %v2064, %v2077
  %v2079 = vcombine.high %v2055, 0.0
  %v2080 = vcombine.high %v2062, 0.0
  %v2081 = vcombine.high %v2071, 0.0
  %v2082 = vcombine.high %v2078, 0.0
  %v2083 = vadd.f32 %v1122, %v1807
  %v2084 = vadd.f32 %v1123, %v1853
  %v2085 = vadd.f32 %v1124, %v1808
  %v2086 = vadd.f32 %v1125, %v1877
  %v2087 = vadd.f32 %v1126, %v1809
  %v2088 = vadd.f32 %v1127, %v1860
  %v2089 = vadd.f32 %v1128, %v1810
  %v2090 = vadd.f32 %v1129, %v1878
  %v2091 = vadd.f32 %v1130, %v1811
  %v2092 = vadd.f32 %v1131, %v1869
  %v2093 = vadd.f32 %v1132, %v1812
  %v2094 = vadd.f32 %v1133, %v1879
  %v2095 = vadd.f32 %v1134, %v1813
  %v2096 = vadd.f32 %v1135, %v1876
  %v2097 = vadd.f32 %v1136, %v1814
  %v2098 = vadd.f32 %v1137, %v1880
  %v2099 = vadd.f32 %v1138, %v2009
  %v2100 = vadd.f32 %v1139, %v2055
  %v2101 = vadd.f32 %v1140, %v2010
  %v2102 = vadd.f32 %v1141, %v2079
  %v2103 = vadd.f32 %v1142, %v2011
  %v2104 = vadd.f32 %v1143, %v2062
  %v2105 = vadd.f32 %v1144, %v2012
  %v2106 = vadd.f32 %v1145, %v2080
  %v2107 = vadd.f32 %v1146, %v2013
  %v2108 = vadd.f32 %v1147, %v2071
  %v2109 = vadd.f32 %v1148, %v2014
  %v2110 = vadd.f32 %v1149, %v2081
  %v2111 = vadd.f32 %v1150, %v2015
  %v2112 = vadd.f32 %v1151, %v2078
  %v2113 = vadd.f32 %v1152, %v2016
  %v2114 = vadd.f32 %v1153, %v2082
  %s2115 = scalar_lea.vmem %s1, 32
  %v2116 = vld [vmem:[%s2115] sm:$0xff]
  %v2117 = vld [vmem:[%s2115 + $0x8] sm:$0xff]
  %v2118 = vld [vmem:[%s0 + $0x2] sm:$0xff]
  %v2119 = vld [vmem:[%s0 + $0xa] sm:$0x3]
  %v2120 = vld [vmem:[%s0 + $0x12] sm:$0xff]
  %v2121 = vld [vmem:[%s0 + $0x1a] sm:$0x3]
  %v2122 = vld [vmem:[%s0 + $0x22] sm:$0xff]
  %v2123 = vld [vmem:[%s0 + $0x2a] sm:$0x3]
  %v2124 = vld [vmem:[%s0 + $0x32] sm:$0xff]
  %v2125 = vld [vmem:[%s0 + $0x3a] sm:$0x3]
  %v2126 = vcombine.low %v2118, %v2122
  %v2127 = vcombine.high %v2118, %v2122
  %v2129 = vunpack.c.l.s4 1983009808
  %v2130 = vunpack.c.0.s8 %v2129
  %v2131 = vlaneseq
  %v2132 = vshrl.u32 %v2131, 7
  %v2133 = vsub.s32 %v2130, %v2132
  %v2134 = vrot.slane %v2126, %v2133
  %v2136 = vunpack.c.l.s4 1983009808
  %v2137 = vunpack.c.0.s8 %v2136
  %v2138 = vlaneseq
  %v2139 = vshrl.u32 %v2138, 7
  %v2140 = vsub.s32 %v2137, %v2139
  %v2141 = vrot.slane %v2127, %v2140
  %v2142 = vcombine.low %v2120, %v2124
  %v2143 = vcombine.high %v2120, %v2124
  %v2145 = vunpack.c.l.s4 1983009808
  %v2146 = vunpack.c.0.s8 %v2145
  %v2147 = vlaneseq
  %v2148 = vshrl.u32 %v2147, 7
  %v2149 = vsub.s32 %v2146, %v2148
  %v2150 = vrot.slane %v2142, %v2149
  %v2152 = vunpack.c.l.s4 1983009808
  %v2153 = vunpack.c.0.s8 %v2152
  %v2154 = vlaneseq
  %v2155 = vshrl.u32 %v2154, 7
  %v2156 = vsub.s32 %v2153, %v2155
  %v2157 = vrot.slane %v2143, %v2156
  %v2158 = vcombine.low %v2134, %v2150
  %v2159 = vcombine.high %v2134, %v2150
  %v2161 = vunpack.c.l.s4 1934713408
  %v2162 = vunpack.c.0.s8 %v2161
  %v2163 = vlaneseq
  %v2164 = vshrl.u32 %v2163, 7
  %v2165 = vsub.s32 %v2162, %v2164
  %v2166 = vrot.slane %v2158, %v2165
  %v2168 = vunpack.c.l.s4 1934713408
  %v2169 = vunpack.c.0.s8 %v2168
  %v2170 = vlaneseq
  %v2171 = vshrl.u32 %v2170, 7
  %v2172 = vsub.s32 %v2169, %v2171
  %v2173 = vrot.slane %v2159, %v2172
  %v2174 = vcombine.low %v2141, %v2157
  %v2175 = vcombine.high %v2141, %v2157
  %v2177 = vunpack.c.l.s4 1934713408
  %v2178 = vunpack.c.0.s8 %v2177
  %v2179 = vlaneseq
  %v2180 = vshrl.u32 %v2179, 7
  %v2181 = vsub.s32 %v2178, %v2180
  %v2182 = vrot.slane %v2174, %v2181
  %v2184 = vunpack.c.l.s4 1934713408
  %v2185 = vunpack.c.0.s8 %v2184
  %v2186 = vlaneseq
  %v2187 = vshrl.u32 %v2186, 7
  %v2188 = vsub.s32 %v2185, %v2187
  %v2189 = vrot.slane %v2175, %v2188
  %v2190 = vcombine.high %v2166, 0.0
  %v2191 = vcombine.high %v2173, 0.0
  %v2192 = vcombine.high %v2182, 0.0
  %v2193 = vcombine.high %v2189, 0.0
  %v2194 = vcombine.low %v2119, %v2123
  %v2196 = vunpack.c.l.s4 1983009808
  %v2197 = vunpack.c.0.s8 %v2196
  %v2198 = vlaneseq
  %v2199 = vshrl.u32 %v2198, 7
  %v2200 = vsub.s32 %v2197, %v2199
  %v2201 = vrot.slane %v2194, %v2200
  %v2202 = vcombine.low %v2121, %v2125
  %v2204 = vunpack.c.l.s4 1983009808
  %v2205 = vunpack.c.0.s8 %v2204
  %v2206 = vlaneseq
  %v2207 = vshrl.u32 %v2206, 7
  %v2208 = vsub.s32 %v2205, %v2207
  %v2209 = vrot.slane %v2202, %v2208
  %v2210 = vcombine.low %v2201, %v2209
  %v2212 = vunpack.c.l.s4 1934713408
  %v2213 = vunpack.c.0.s8 %v2212
  %v2214 = vlaneseq
  %v2215 = vshrl.u32 %v2214, 7
  %v2216 = vsub.s32 %v2213, %v2215
  %v2217 = vrot.slane %v2210, %v2216
  %v2218 = vcombine.high %v2217, 0.0
  %v2220 = vsel %vm295, %v2116, 0
  %v2223 = vsel %vm295, %v2117, 0
  %v2226 = vsel %vm302, %v2166, 0
  %v2229 = vsel %vm302, %v2190, 0
  %v2232 = vsel %vm302, %v2173, 0
  %v2235 = vsel %vm302, %v2191, 0
  %v2238 = vsel %vm302, %v2182, 0
  %v2241 = vsel %vm302, %v2192, 0
  %v2244 = vsel %vm302, %v2189, 0
  %v2247 = vsel %vm302, %v2193, 0
  %v2250 = vsel %vm302, %v2217, 0
  %v2253 = vsel %vm302, %v2218, 0
  %2255 = vmatprep.subr.mxu0 %v2229
  %2256 = vmatpush1.msra.mxu0 %v2226
  %2257 = vmatprep.subr.mxu0 0.0
  %2258 = vmatpush1.msra.mxu0 0.0
  %2259 = vmatprep.subr.mxu0 0.0
  %2260 = vmatpush1.msra.mxu0 0.0
  %2261 = vmatprep.subr.mxu0 0.0
  %2262 = vmatpush1.msra.mxu0 0.0
  %2263 = vmatprep.subr.mxu0 0.0
  %2264 = vmatpush1.msra.mxu0 0.0
  %2265 = vmatprep.subr.mxu0 0.0
  %2266 = vmatpush1.msra.mxu0 0.0
  %2267 = vmatprep.subr.mxu0 0.0
  %2268 = vmatpush1.msra.mxu0 0.0
  %2269 = vmatprep.subr.mxu0 0.0
  %2270 = vmatpush1.msra.mxu0 0.0
  %2271 = vmatprep.subr.mxu0 0.0
  %2272 = vmatpush1.msra.mxu0 0.0
  %2273 = vmatprep.subr.mxu0 0.0
  %2274 = vmatpush1.msra.mxu0 0.0
  %2275 = vmatprep.subr.mxu0 0.0
  %2276 = vmatpush1.msra.mxu0 0.0
  %2277 = vmatprep.subr.mxu0 0.0
  %2278 = vmatpush1.msra.mxu0 0.0
  %2279 = vmatprep.subr.mxu0 0.0
  %2280 = vmatpush1.msra.mxu0 0.0
  %2281 = vmatprep.subr.mxu0 0.0
  %2282 = vmatpush1.msra.mxu0 0.0
  %2283 = vmatprep.subr.mxu0 0.0
  %2284 = vmatpush1.msra.mxu0 0.0
  %2285 = vmatprep.subr.mxu0 0.0
  %2286 = vmatpush1.msra.mxu0 0.0
  %2287 = vmatprep.subr.mxu0 0.0
  %2288 = vmatpush1.msra.mxu0 0.0
  %2289 = vmatprep.subr.mxu0 0.0
  %2290 = vmatpush1.msra.mxu0 0.0
  %2291 = vmatprep.subr.mxu0 0.0
  %2292 = vmatpush1.msra.mxu0 0.0
  %2293 = vmatprep.subr.mxu0 0.0
  %2294 = vmatpush1.msra.mxu0 0.0
  %2295 = vmatprep.subr.mxu0 0.0
  %2296 = vmatpush1.msra.mxu0 0.0
  %2297 = vmatprep.subr.mxu0 0.0
  %2298 = vmatpush1.msra.mxu0 0.0
  %2299 = vmatprep.subr.mxu0 0.0
  %2300 = vmatpush1.msra.mxu0 0.0
  %2301 = vmatprep.subr.mxu0 0.0
  %2302 = vmatpush1.msra.mxu0 0.0
  %2303 = vmatprep.subr.mxu0 0.0
  %2304 = vmatpush1.msra.mxu0 0.0
  %2305 = vmatprep.subr.mxu0 0.0
  %2306 = vmatpush1.msra.mxu0 0.0
  %2307 = vmatprep.subr.mxu0 0.0
  %2308 = vmatpush1.msra.mxu0 0.0
  %2309 = vmatprep.subr.mxu0 0.0
  %2310 = vmatpush1.msra.mxu0 0.0
  %2311 = vmatprep.subr.mxu0 0.0
  %2312 = vmatpush1.msra.mxu0 0.0
  %2313 = vmatprep.subr.mxu0 0.0
  %2314 = vmatpush1.msra.mxu0 0.0
  %2315 = vmatprep.subr.mxu0 0.0
  %2316 = vmatpush1.msra.mxu0 0.0
  %2317 = vmatprep.subr.mxu0 0.0
  %2318 = vmatpush1.msra.mxu0 0.0
  %2319 = vmatprep.mubr.f32.mxu0 0.0
  %2320 = vmatmul.mubr.f32.gmra.mrb[0].mxu0 %v2220
  %v2321 = vpop.f32.mrb[0].mxu0
  %v2322 = vadd.f32 %v293, %v2321
  %v2323 = vpop.f32.mrb[0].mxu0
  %v2324 = vadd.f32 %v294, %v2323
  %2325 = vmatprep.mubr.f32.mxu0 0.0
  %2326 = vmatmul.mubr.f32.gmra.mrb[0].mxu0 %v2223
  %v2327 = vpop.f32.mrb[0].mxu0
  %v2328 = vadd.f32 %v293, %v2327
  %v2329 = vpop.f32.mrb[0].mxu0
  %v2330 = vadd.f32 %v294, %v2329
  %2331 = vdwg.mxu0
  %2332 = vmatprep.subr.mxu0 %v2235
  %2333 = vmatpush1.msra.mxu0 %v2232
  %2334 = vmatprep.subr.mxu0 0.0
  %2335 = vmatpush1.msra.mxu0 0.0
  %2336 = vmatprep.subr.mxu0 0.0
  %2337 = vmatpush1.msra.mxu0 0.0
  %2338 = vmatprep.subr.mxu0 0.0
  %2339 = vmatpush1.msra.mxu0 0.0
  %2340 = vmatprep.subr.mxu0 0.0
  %2341 = vmatpush1.msra.mxu0 0.0
  %2342 = vmatprep.subr.mxu0 0.0
  %2343 = vmatpush1.msra.mxu0 0.0
  %2344 = vmatprep.subr.mxu0 0.0
  %2345 = vmatpush1.msra.mxu0 0.0
  %2346 = vmatprep.subr.mxu0 0.0
  %2347 = vmatpush1.msra.mxu0 0.0
  %2348 = vmatprep.subr.mxu0 0.0
  %2349 = vmatpush1.msra.mxu0 0.0
  %2350 = vmatprep.subr.mxu0 0.0
  %2351 = vmatpush1.msra.mxu0 0.0
  %2352 = vmatprep.subr.mxu0 0.0
  %2353 = vmatpush1.msra.mxu0 0.0
  %2354 = vmatprep.subr.mxu0 0.0
  %2355 = vmatpush1.msra.mxu0 0.0
  %2356 = vmatprep.subr.mxu0 0.0
  %2357 = vmatpush1.msra.mxu0 0.0
  %2358 = vmatprep.subr.mxu0 0.0
  %2359 = vmatpush1.msra.mxu0 0.0
  %2360 = vmatprep.subr.mxu0 0.0
  %2361 = vmatpush1.msra.mxu0 0.0
  %2362 = vmatprep.subr.mxu0 0.0
  %2363 = vmatpush1.msra.mxu0 0.0
  %2364 = vmatprep.subr.mxu0 0.0
  %2365 = vmatpush1.msra.mxu0 0.0
  %2366 = vmatprep.subr.mxu0 0.0
  %2367 = vmatpush1.msra.mxu0 0.0
  %2368 = vmatprep.subr.mxu0 0.0
  %2369 = vmatpush1.msra.mxu0 0.0
  %2370 = vmatprep.subr.mxu0 0.0
  %2371 = vmatpush1.msra.mxu0 0.0
  %2372 = vmatprep.subr.mxu0 0.0
  %2373 = vmatpush1.msra.mxu0 0.0
  %2374 = vmatprep.subr.mxu0 0.0
  %2375 = vmatpush1.msra.mxu0 0.0
  %2376 = vmatprep.subr.mxu0 0.0
  %2377 = vmatpush1.msra.mxu0 0.0
  %2378 = vmatprep.subr.mxu0 0.0
  %2379 = vmatpush1.msra.mxu0 0.0
  %2380 = vmatprep.subr.mxu0 0.0
  %2381 = vmatpush1.msra.mxu0 0.0
  %2382 = vmatprep.subr.mxu0 0.0
  %2383 = vmatpush1.msra.mxu0 0.0
  %2384 = vmatprep.subr.mxu0 0.0
  %2385 = vmatpush1.msra.mxu0 0.0
  %2386 = vmatprep.subr.mxu0 0.0
  %2387 = vmatpush1.msra.mxu0 0.0
  %2388 = vmatprep.subr.mxu0 0.0
  %2389 = vmatpush1.msra.mxu0 0.0
  %2390 = vmatprep.subr.mxu0 0.0
  %2391 = vmatpush1.msra.mxu0 0.0
  %2392 = vmatprep.subr.mxu0 0.0
  %2393 = vmatpush1.msra.mxu0 0.0
  %2394 = vmatprep.subr.mxu0 0.0
  %2395 = vmatpush1.msra.mxu0 0.0
  %2396 = vmatprep.mubr.f32.mxu0 0.0
  %2397 = vmatmul.mubr.f32.gmra.mrb[0].mxu0 %v2220
  %v2398 = vpop.f32.mrb[0].mxu0
  %v2399 = vadd.f32 0.0, %v2398
  %v2400 = vpop.f32.mrb[0].mxu0
  %v2401 = vadd.f32 0.0, %v2400
  %2402 = vmatprep.mubr.f32.mxu0 0.0
  %2403 = vmatmul.mubr.f32.gmra.mrb[0].mxu0 %v2223
  %v2404 = vpop.f32.mrb[0].mxu0
  %v2405 = vadd.f32 0.0, %v2404
  %v2406 = vpop.f32.mrb[0].mxu0
  %v2407 = vadd.f32 0.0, %v2406
  %2408 = vdwg.mxu0
  %2409 = vmatprep.subr.mxu0 %v2241
  %2410 = vmatpush1.msra.mxu0 %v2238
  %2411 = vmatprep.subr.mxu0 0.0
  %2412 = vmatpush1.msra.mxu0 0.0
  %2413 = vmatprep.subr.mxu0 0.0
  %2414 = vmatpush1.msra.mxu0 0.0
  %2415 = vmatprep.subr.mxu0 0.0
  %2416 = vmatpush1.msra.mxu0 0.0
  %2417 = vmatprep.subr.mxu0 0.0
  %2418 = vmatpush1.msra.mxu0 0.0
  %2419 = vmatprep.subr.mxu0 0.0
  %2420 = vmatpush1.msra.mxu0 0.0
  %2421 = vmatprep.subr.mxu0 0.0
  %2422 = vmatpush1.msra.mxu0 0.0
  %2423 = vmatprep.subr.mxu0 0.0
  %2424 = vmatpush1.msra.mxu0 0.0
  %2425 = vmatprep.subr.mxu0 0.0
  %2426 = vmatpush1.msra.mxu0 0.0
  %2427 = vmatprep.subr.mxu0 0.0
  %2428 = vmatpush1.msra.mxu0 0.0
  %2429 = vmatprep.subr.mxu0 0.0
  %2430 = vmatpush1.msra.mxu0 0.0
  %2431 = vmatprep.subr.mxu0 0.0
  %2432 = vmatpush1.msra.mxu0 0.0
  %2433 = vmatprep.subr.mxu0 0.0
  %2434 = vmatpush1.msra.mxu0 0.0
  %2435 = vmatprep.subr.mxu0 0.0
  %2436 = vmatpush1.msra.mxu0 0.0
  %2437 = vmatprep.subr.mxu0 0.0
  %2438 = vmatpush1.msra.mxu0 0.0
  %2439 = vmatprep.subr.mxu0 0.0
  %2440 = vmatpush1.msra.mxu0 0.0
  %2441 = vmatprep.subr.mxu0 0.0
  %2442 = vmatpush1.msra.mxu0 0.0
  %2443 = vmatprep.subr.mxu0 0.0
  %2444 = vmatpush1.msra.mxu0 0.0
  %2445 = vmatprep.subr.mxu0 0.0
  %2446 = vmatpush1.msra.mxu0 0.0
  %2447 = vmatprep.subr.mxu0 0.0
  %2448 = vmatpush1.msra.mxu0 0.0
  %2449 = vmatprep.subr.mxu0 0.0
  %2450 = vmatpush1.msra.mxu0 0.0
  %2451 = vmatprep.subr.mxu0 0.0
  %2452 = vmatpush1.msra.mxu0 0.0
  %2453 = vmatprep.subr.mxu0 0.0
  %2454 = vmatpush1.msra.mxu0 0.0
  %2455 = vmatprep.subr.mxu0 0.0
  %2456 = vmatpush1.msra.mxu0 0.0
  %2457 = vmatprep.subr.mxu0 0.0
  %2458 = vmatpush1.msra.mxu0 0.0
  %2459 = vmatprep.subr.mxu0 0.0
  %2460 = vmatpush1.msra.mxu0 0.0
  %2461 = vmatprep.subr.mxu0 0.0
  %2462 = vmatpush1.msra.mxu0 0.0
  %2463 = vmatprep.subr.mxu0 0.0
  %2464 = vmatpush1.msra.mxu0 0.0
  %2465 = vmatprep.subr.mxu0 0.0
  %2466 = vmatpush1.msra.mxu0 0.0
  %2467 = vmatprep.subr.mxu0 0.0
  %2468 = vmatpush1.msra.mxu0 0.0
  %2469 = vmatprep.subr.mxu0 0.0
  %2470 = vmatpush1.msra.mxu0 0.0
  %2471 = vmatprep.subr.mxu0 0.0
  %2472 = vmatpush1.msra.mxu0 0.0
  %2473 = vmatprep.mubr.f32.mxu0 0.0
  %2474 = vmatmul.mubr.f32.gmra.mrb[0].mxu0 %v2220
  %v2475 = vpop.f32.mrb[0].mxu0
  %v2476 = vadd.f32 0.0, %v2475
  %v2477 = vpop.f32.mrb[0].mxu0
  %v2478 = vadd.f32 0.0, %v2477
  %2479 = vmatprep.mubr.f32.mxu0 0.0
  %2480 = vmatmul.mubr.f32.gmra.mrb[0].mxu0 %v2223
  %v2481 = vpop.f32.mrb[0].mxu0
  %v2482 = vadd.f32 0.0, %v2481
  %v2483 = vpop.f32.mrb[0].mxu0
  %v2484 = vadd.f32 0.0, %v2483
  %2485 = vdwg.mxu0
  %2486 = vmatprep.subr.mxu0 %v2247
  %2487 = vmatpush1.msra.mxu0 %v2244
  %2488 = vmatprep.subr.mxu0 0.0
  %2489 = vmatpush1.msra.mxu0 0.0
  %2490 = vmatprep.subr.mxu0 0.0
  %2491 = vmatpush1.msra.mxu0 0.0
  %2492 = vmatprep.subr.mxu0 0.0
  %2493 = vmatpush1.msra.mxu0 0.0
  %2494 = vmatprep.subr.mxu0 0.0
  %2495 = vmatpush1.msra.mxu0 0.0
  %2496 = vmatprep.subr.mxu0 0.0
  %2497 = vmatpush1.msra.mxu0 0.0
  %2498 = vmatprep.subr.mxu0 0.0
  %2499 = vmatpush1.msra.mxu0 0.0
  %2500 = vmatprep.subr.mxu0 0.0
  %2501 = vmatpush1.msra.mxu0 0.0
  %2502 = vmatprep.subr.mxu0 0.0
  %2503 = vmatpush1.msra.mxu0 0.0
  %2504 = vmatprep.subr.mxu0 0.0
  %2505 = vmatpush1.msra.mxu0 0.0
  %2506 = vmatprep.subr.mxu0 0.0
  %2507 = vmatpush1.msra.mxu0 0.0
  %2508 = vmatprep.subr.mxu0 0.0
  %2509 = vmatpush1.msra.mxu0 0.0
  %2510 = vmatprep.subr.mxu0 0.0
  %2511 = vmatpush1.msra.mxu0 0.0
  %2512 = vmatprep.subr.mxu0 0.0
  %2513 = vmatpush1.msra.mxu0 0.0
  %2514 = vmatprep.subr.mxu0 0.0
  %2515 = vmatpush1.msra.mxu0 0.0
  %2516 = vmatprep.subr.mxu0 0.0
  %2517 = vmatpush1.msra.mxu0 0.0
  %2518 = vmatprep.subr.mxu0 0.0
  %2519 = vmatpush1.msra.mxu0 0.0
  %2520 = vmatprep.subr.mxu0 0.0
  %2521 = vmatpush1.msra.mxu0 0.0
  %2522 = vmatprep.subr.mxu0 0.0
  %2523 = vmatpush1.msra.mxu0 0.0
  %2524 = vmatprep.subr.mxu0 0.0
  %2525 = vmatpush1.msra.mxu0 0.0
  %2526 = vmatprep.subr.mxu0 0.0
  %2527 = vmatpush1.msra.mxu0 0.0
  %2528 = vmatprep.subr.mxu0 0.0
  %2529 = vmatpush1.msra.mxu0 0.0
  %2530 = vmatprep.subr.mxu0 0.0
  %2531 = vmatpush1.msra.mxu0 0.0
  %2532 = vmatprep.subr.mxu0 0.0
  %2533 = vmatpush1.msra.mxu0 0.0
  %2534 = vmatprep.subr.mxu0 0.0
  %2535 = vmatpush1.msra.mxu0 0.0
  %2536 = vmatprep.subr.mxu0 0.0
  %2537 = vmatpush1.msra.mxu0 0.0
  %2538 = vmatprep.subr.mxu0 0.0
  %2539 = vmatpush1.msra.mxu0 0.0
  %2540 = vmatprep.subr.mxu0 0.0
  %2541 = vmatpush1.msra.mxu0 0.0
  %2542 = vmatprep.subr.mxu0 0.0
  %2543 = vmatpush1.msra.mxu0 0.0
  %2544 = vmatprep.subr.mxu0 0.0
  %2545 = vmatpush1.msra.mxu0 0.0
  %2546 = vmatprep.subr.mxu0 0.0
  %2547 = vmatpush1.msra.mxu0 0.0
  %2548 = vmatprep.subr.mxu0 0.0
  %2549 = vmatpush1.msra.mxu0 0.0
  %2550 = vmatprep.mubr.f32.mxu0 0.0
  %2551 = vmatmul.mubr.f32.gmra.mrb[0].mxu0 %v2220
  %v2552 = vpop.f32.mrb[0].mxu0
  %v2553 = vadd.f32 0.0, %v2552
  %v2554 = vpop.f32.mrb[0].mxu0
  %v2555 = vadd.f32 0.0, %v2554
  %2556 = vmatprep.mubr.f32.mxu0 0.0
  %2557 = vmatmul.mubr.f32.gmra.mrb[0].mxu0 %v2223
  %v2558 = vpop.f32.mrb[0].mxu0
  %v2559 = vadd.f32 0.0, %v2558
  %v2560 = vpop.f32.mrb[0].mxu0
  %v2561 = vadd.f32 0.0, %v2560
  %2562 = vdwg.mxu0
  %2563 = vmatprep.subr.mxu0 %v2253
  %2564 = vmatpush1.msra.mxu0 %v2250
  %2565 = vmatprep.subr.mxu0 0.0
  %2566 = vmatpush1.msra.mxu0 0.0
  %2567 = vmatprep.subr.mxu0 0.0
  %2568 = vmatpush1.msra.mxu0 0.0
  %2569 = vmatprep.subr.mxu0 0.0
  %2570 = vmatpush1.msra.mxu0 0.0
  %2571 = vmatprep.subr.mxu0 0.0
  %2572 = vmatpush1.msra.mxu0 0.0
  %2573 = vmatprep.subr.mxu0 0.0
  %2574 = vmatpush1.msra.mxu0 0.0
  %2575 = vmatprep.subr.mxu0 0.0
  %2576 = vmatpush1.msra.mxu0 0.0
  %2577 = vmatprep.subr.mxu0 0.0
  %2578 = vmatpush1.msra.mxu0 0.0
  %2579 = vmatprep.subr.mxu0 0.0
  %2580 = vmatpush1.msra.mxu0 0.0
  %2581 = vmatprep.subr.mxu0 0.0
  %2582 = vmatpush1.msra.mxu0 0.0
  %2583 = vmatprep.subr.mxu0 0.0
  %2584 = vmatpush1.msra.mxu0 0.0
  %2585 = vmatprep.subr.mxu0 0.0
  %2586 = vmatpush1.msra.mxu0 0.0
  %2587 = vmatprep.subr.mxu0 0.0
  %2588 = vmatpush1.msra.mxu0 0.0
  %2589 = vmatprep.subr.mxu0 0.0
  %2590 = vmatpush1.msra.mxu0 0.0
  %2591 = vmatprep.subr.mxu0 0.0
  %2592 = vmatpush1.msra.mxu0 0.0
  %2593 = vmatprep.subr.mxu0 0.0
  %2594 = vmatpush1.msra.mxu0 0.0
  %2595 = vmatprep.subr.mxu0 0.0
  %2596 = vmatpush1.msra.mxu0 0.0
  %2597 = vmatprep.subr.mxu0 0.0
  %2598 = vmatpush1.msra.mxu0 0.0
  %2599 = vmatprep.subr.mxu0 0.0
  %2600 = vmatpush1.msra.mxu0 0.0
  %2601 = vmatprep.subr.mxu0 0.0
  %2602 = vmatpush1.msra.mxu0 0.0
  %2603 = vmatprep.subr.mxu0 0.0
  %2604 = vmatpush1.msra.mxu0 0.0
  %2605 = vmatprep.subr.mxu0 0.0
  %2606 = vmatpush1.msra.mxu0 0.0
  %2607 = vmatprep.subr.mxu0 0.0
  %2608 = vmatpush1.msra.mxu0 0.0
  %2609 = vmatprep.subr.mxu0 0.0
  %2610 = vmatpush1.msra.mxu0 0.0
  %2611 = vmatprep.subr.mxu0 0.0
  %2612 = vmatpush1.msra.mxu0 0.0
  %2613 = vmatprep.subr.mxu0 0.0
  %2614 = vmatpush1.msra.mxu0 0.0
  %2615 = vmatprep.subr.mxu0 0.0
  %2616 = vmatpush1.msra.mxu0 0.0
  %2617 = vmatprep.subr.mxu0 0.0
  %2618 = vmatpush1.msra.mxu0 0.0
  %2619 = vmatprep.subr.mxu0 0.0
  %2620 = vmatpush1.msra.mxu0 0.0
  %2621 = vmatprep.subr.mxu0 0.0
  %2622 = vmatpush1.msra.mxu0 0.0
  %2623 = vmatprep.subr.mxu0 0.0
  %2624 = vmatpush1.msra.mxu0 0.0
  %2625 = vmatprep.subr.mxu0 0.0
  %2626 = vmatpush1.msra.mxu0 0.0
  %2627 = vmatprep.mubr.f32.mxu0 0.0
  %2628 = vmatmul.mubr.f32.gmra.mrb[0].mxu0 %v2220
  %v2629 = vpop.f32.mrb[0].mxu0
  %v2630 = vadd.f32 %v293, %v2629
  %v2631 = vpop.f32.mrb[0].mxu0
  %v2632 = vadd.f32 %v294, %v2631
  %2633 = vmatprep.mubr.f32.mxu0 0.0
  %2634 = vmatmul.mubr.f32.gmra.mrb[0].mxu0 %v2223
  %v2635 = vpop.f32.mrb[0].mxu0
  %v2636 = vadd.f32 %v293, %v2635
  %v2637 = vpop.f32.mrb[0].mxu0
  %v2638 = vadd.f32 %v294, %v2637
  %2639 = vdwg.mxu0
  %v2640 = vcombine.low %v2322, %v2399
  %v2641 = vcombine.high %v2322, %v2399
  %v2643 = vunpack.c.l.s4 1983009808
  %v2644 = vunpack.c.0.s8 %v2643
  %v2645 = vlaneseq
  %v2646 = vshrl.u32 %v2645, 7
  %v2647 = vsub.s32 %v2644, %v2646
  %v2648 = vrot.slane %v2640, %v2647
  %v2650 = vunpack.c.l.s4 1983009808
  %v2651 = vunpack.c.0.s8 %v2650
  %v2652 = vlaneseq
  %v2653 = vshrl.u32 %v2652, 7
  %v2654 = vsub.s32 %v2651, %v2653
  %v2655 = vrot.slane %v2641, %v2654
  %v2656 = vcombine.low %v2324, %v2401
  %v2657 = vcombine.high %v2324, %v2401
  %v2659 = vunpack.c.l.s4 1983009808
  %v2660 = vunpack.c.0.s8 %v2659
  %v2661 = vlaneseq
  %v2662 = vshrl.u32 %v2661, 7
  %v2663 = vsub.s32 %v2660, %v2662
  %v2664 = vrot.slane %v2656, %v2663
  %v2666 = vunpack.c.l.s4 1983009808
  %v2667 = vunpack.c.0.s8 %v2666
  %v2668 = vlaneseq
  %v2669 = vshrl.u32 %v2668, 7
  %v2670 = vsub.s32 %v2667, %v2669
  %v2671 = vrot.slane %v2657, %v2670
  %v2672 = vcombine.low %v2476, %v2553
  %v2673 = vcombine.high %v2476, %v2553
  %v2675 = vunpack.c.l.s4 1983009808
  %v2676 = vunpack.c.0.s8 %v2675
  %v2677 = vlaneseq
  %v2678 = vshrl.u32 %v2677, 7
  %v2679 = vsub.s32 %v2676, %v2678
  %v2680 = vrot.slane %v2672, %v2679
  %v2682 = vunpack.c.l.s4 1983009808
  %v2683 = vunpack.c.0.s8 %v2682
  %v2684 = vlaneseq
  %v2685 = vshrl.u32 %v2684, 7
  %v2686 = vsub.s32 %v2683, %v2685
  %v2687 = vrot.slane %v2673, %v2686
  %v2688 = vcombine.low %v2478, %v2555
  %v2689 = vcombine.high %v2478, %v2555
  %v2691 = vunpack.c.l.s4 1983009808
  %v2692 = vunpack.c.0.s8 %v2691
  %v2693 = vlaneseq
  %v2694 = vshrl.u32 %v2693, 7
  %v2695 = vsub.s32 %v2692, %v2694
  %v2696 = vrot.slane %v2688, %v2695
  %v2698 = vunpack.c.l.s4 1983009808
  %v2699 = vunpack.c.0.s8 %v2698
  %v2700 = vlaneseq
  %v2701 = vshrl.u32 %v2700, 7
  %v2702 = vsub.s32 %v2699, %v2701
  %v2703 = vrot.slane %v2689, %v2702
  %v2704 = vcombine.low %v2648, %v2664
  %v2705 = vcombine.high %v2648, %v2664
  %v2707 = vunpack.c.l.s4 1934713408
  %v2708 = vunpack.c.0.s8 %v2707
  %v2709 = vlaneseq
  %v2710 = vshrl.u32 %v2709, 7
  %v2711 = vsub.s32 %v2708, %v2710
  %v2712 = vrot.slane %v2704, %v2711
  %v2714 = vunpack.c.l.s4 1934713408
  %v2715 = vunpack.c.0.s8 %v2714
  %v2716 = vlaneseq
  %v2717 = vshrl.u32 %v2716, 7
  %v2718 = vsub.s32 %v2715, %v2717
  %v2719 = vrot.slane %v2705, %v2718
  %v2720 = vcombine.low %v2655, %v2671
  %v2721 = vcombine.high %v2655, %v2671
  %v2723 = vunpack.c.l.s4 1934713408
  %v2724 = vunpack.c.0.s8 %v2723
  %v2725 = vlaneseq
  %v2726 = vshrl.u32 %v2725, 7
  %v2727 = vsub.s32 %v2724, %v2726
  %v2728 = vrot.slane %v2720, %v2727
  %v2730 = vunpack.c.l.s4 1934713408
  %v2731 = vunpack.c.0.s8 %v2730
  %v2732 = vlaneseq
  %v2733 = vshrl.u32 %v2732, 7
  %v2734 = vsub.s32 %v2731, %v2733
  %v2735 = vrot.slane %v2721, %v2734
  %v2736 = vcombine.low %v2680, %v2696
  %v2737 = vcombine.high %v2680, %v2696
  %v2739 = vunpack.c.l.s4 1934713408
  %v2740 = vunpack.c.0.s8 %v2739
  %v2741 = vlaneseq
  %v2742 = vshrl.u32 %v2741, 7
  %v2743 = vsub.s32 %v2740, %v2742
  %v2744 = vrot.slane %v2736, %v2743
  %v2746 = vunpack.c.l.s4 1934713408
  %v2747 = vunpack.c.0.s8 %v2746
  %v2748 = vlaneseq
  %v2749 = vshrl.u32 %v2748, 7
  %v2750 = vsub.s32 %v2747, %v2749
  %v2751 = vrot.slane %v2737, %v2750
  %v2752 = vcombine.low %v2687, %v2703
  %v2753 = vcombine.high %v2687, %v2703
  %v2755 = vunpack.c.l.s4 1934713408
  %v2756 = vunpack.c.0.s8 %v2755
  %v2757 = vlaneseq
  %v2758 = vshrl.u32 %v2757, 7
  %v2759 = vsub.s32 %v2756, %v2758
  %v2760 = vrot.slane %v2752, %v2759
  %v2762 = vunpack.c.l.s4 1934713408
  %v2763 = vunpack.c.0.s8 %v2762
  %v2764 = vlaneseq
  %v2765 = vshrl.u32 %v2764, 7
  %v2766 = vsub.s32 %v2763, %v2765
  %v2767 = vrot.slane %v2753, %v2766
  %v2768 = vcombine.low %v2712, %v2744
  %v2769 = vcombine.high %v2712, %v2744
  %v2770 = vcombine.low %v2719, %v2751
  %v2771 = vcombine.high %v2719, %v2751
  %v2772 = vcombine.low %v2728, %v2760
  %v2773 = vcombine.high %v2728, %v2760
  %v2774 = vcombine.low %v2735, %v2767
  %v2775 = vcombine.high %v2735, %v2767
  %v2776 = vcombine.high %v2630, 0.0
  %v2778 = vunpack.c.l.s4 1983009808
  %v2779 = vunpack.c.0.s8 %v2778
  %v2780 = vlaneseq
  %v2781 = vshrl.u32 %v2780, 7
  %v2782 = vsub.s32 %v2779, %v2781
  %v2783 = vrot.slane %v2630, %v2782
  %v2785 = vunpack.c.l.s4 1983009808
  %v2786 = vunpack.c.0.s8 %v2785
  %v2787 = vlaneseq
  %v2788 = vshrl.u32 %v2787, 7
  %v2789 = vsub.s32 %v2786, %v2788
  %v2790 = vrot.slane %v2776, %v2789
  %v2791 = vcombine.high %v2632, 0.0
  %v2793 = vunpack.c.l.s4 1983009808
  %v2794 = vunpack.c.0.s8 %v2793
  %v2795 = vlaneseq
  %v2796 = vshrl.u32 %v2795, 7
  %v2797 = vsub.s32 %v2794, %v2796
  %v2798 = vrot.slane %v2632, %v2797
  %v2800 = vunpack.c.l.s4 1983009808
  %v2801 = vunpack.c.0.s8 %v2800
  %v2802 = vlaneseq
  %v2803 = vshrl.u32 %v2802, 7
  %v2804 = vsub.s32 %v2801, %v2803
  %v2805 = vrot.slane %v2791, %v2804
  %v2806 = vcombine.low %v2783, %v2798
  %v2807 = vcombine.high %v2783, %v2798
  %v2809 = vunpack.c.l.s4 1934713408
  %v2810 = vunpack.c.0.s8 %v2809
  %v2811 = vlaneseq
  %v2812 = vshrl.u32 %v2811, 7
  %v2813 = vsub.s32 %v2810, %v2812
  %v2814 = vrot.slane %v2806, %v2813
  %v2816 = vunpack.c.l.s4 1934713408
  %v2817 = vunpack.c.0.s8 %v2816
  %v2818 = vlaneseq
  %v2819 = vshrl.u32 %v2818, 7
  %v2820 = vsub.s32 %v2817, %v2819
  %v2821 = vrot.slane %v2807, %v2820
  %v2822 = vcombine.low %v2790, %v2805
  %v2823 = vcombine.high %v2790, %v2805
  %v2825 = vunpack.c.l.s4 1934713408
  %v2826 = vunpack.c.0.s8 %v2825
  %v2827 = vlaneseq
  %v2828 = vshrl.u32 %v2827, 7
  %v2829 = vsub.s32 %v2826, %v2828
  %v2830 = vrot.slane %v2822, %v2829
  %v2832 = vunpack.c.l.s4 1934713408
  %v2833 = vunpack.c.0.s8 %v2832
  %v2834 = vlaneseq
  %v2835 = vshrl.u32 %v2834, 7
  %v2836 = vsub.s32 %v2833, %v2835
  %v2837 = vrot.slane %v2823, %v2836
  %v2838 = vcombine.high %v2814, 0.0
  %v2839 = vcombine.high %v2821, 0.0
  %v2840 = vcombine.high %v2830, 0.0
  %v2841 = vcombine.high %v2837, 0.0
  %v2842 = vcombine.low %v2328, %v2405
  %v2843 = vcombine.high %v2328, %v2405
  %v2845 = vunpack.c.l.s4 1983009808
  %v2846 = vunpack.c.0.s8 %v2845
  %v2847 = vlaneseq
  %v2848 = vshrl.u32 %v2847, 7
  %v2849 = vsub.s32 %v2846, %v2848
  %v2850 = vrot.slane %v2842, %v2849
  %v2852 = vunpack.c.l.s4 1983009808
  %v2853 = vunpack.c.0.s8 %v2852
  %v2854 = vlaneseq
  %v2855 = vshrl.u32 %v2854, 7
  %v2856 = vsub.s32 %v2853, %v2855
  %v2857 = vrot.slane %v2843, %v2856
  %v2858 = vcombine.low %v2330, %v2407
  %v2859 = vcombine.high %v2330, %v2407
  %v2861 = vunpack.c.l.s4 1983009808
  %v2862 = vunpack.c.0.s8 %v2861
  %v2863 = vlaneseq
  %v2864 = vshrl.u32 %v2863, 7
  %v2865 = vsub.s32 %v2862, %v2864
  %v2866 = vrot.slane %v2858, %v2865
  %v2868 = vunpack.c.l.s4 1983009808
  %v2869 = vunpack.c.0.s8 %v2868
  %v2870 = vlaneseq
  %v2871 = vshrl.u32 %v2870, 7
  %v2872 = vsub.s32 %v2869, %v2871
  %v2873 = vrot.slane %v2859, %v2872
  %v2874 = vcombine.low %v2482, %v2559
  %v2875 = vcombine.high %v2482, %v2559
  %v2877 = vunpack.c.l.s4 1983009808
  %v2878 = vunpack.c.0.s8 %v2877
  %v2879 = vlaneseq
  %v2880 = vshrl.u32 %v2879, 7
  %v2881 = vsub.s32 %v2878, %v2880
  %v2882 = vrot.slane %v2874, %v2881
  %v2884 = vunpack.c.l.s4 1983009808
  %v2885 = vunpack.c.0.s8 %v2884
  %v2886 = vlaneseq
  %v2887 = vshrl.u32 %v2886, 7
  %v2888 = vsub.s32 %v2885, %v2887
  %v2889 = vrot.slane %v2875, %v2888
  %v2890 = vcombine.low %v2484, %v2561
  %v2891 = vcombine.high %v2484, %v2561
  %v2893 = vunpack.c.l.s4 1983009808
  %v2894 = vunpack.c.0.s8 %v2893
  %v2895 = vlaneseq
  %v2896 = vshrl.u32 %v2895, 7
  %v2897 = vsub.s32 %v2894, %v2896
  %v2898 = vrot.slane %v2890, %v2897
  %v2900 = vunpack.c.l.s4 1983009808
  %v2901 = vunpack.c.0.s8 %v2900
  %v2902 = vlaneseq
  %v2903 = vshrl.u32 %v2902, 7
  %v2904 = vsub.s32 %v2901, %v2903
  %v2905 = vrot.slane %v2891, %v2904
  %v2906 = vcombine.low %v2850, %v2866
  %v2907 = vcombine.high %v2850, %v2866
  %v2909 = vunpack.c.l.s4 1934713408
  %v2910 = vunpack.c.0.s8 %v2909
  %v2911 = vlaneseq
  %v2912 = vshrl.u32 %v2911, 7
  %v2913 = vsub.s32 %v2910, %v2912
  %v2914 = vrot.slane %v2906, %v2913
  %v2916 = vunpack.c.l.s4 1934713408
  %v2917 = vunpack.c.0.s8 %v2916
  %v2918 = vlaneseq
  %v2919 = vshrl.u32 %v2918, 7
  %v2920 = vsub.s32 %v2917, %v2919
  %v2921 = vrot.slane %v2907, %v2920
  %v2922 = vcombine.low %v2857, %v2873
  %v2923 = vcombine.high %v2857, %v2873
  %v2925 = vunpack.c.l.s4 1934713408
  %v2926 = vunpack.c.0.s8 %v2925
  %v2927 = vlaneseq
  %v2928 = vshrl.u32 %v2927, 7
  %v2929 = vsub.s32 %v2926, %v2928
  %v2930 = vrot.slane %v2922, %v2929
  %v2932 = vunpack.c.l.s4 1934713408
  %v2933 = vunpack.c.0.s8 %v2932
  %v2934 = vlaneseq
  %v2935 = vshrl.u32 %v2934, 7
  %v2936 = vsub.s32 %v2933, %v2935
  %v2937 = vrot.slane %v2923, %v2936
  %v2938 = vcombine.low %v2882, %v2898
  %v2939 = vcombine.high %v2882, %v2898
  %v2941 = vunpack.c.l.s4 1934713408
  %v2942 = vunpack.c.0.s8 %v2941
  %v2943 = vlaneseq
  %v2944 = vshrl.u32 %v2943, 7
  %v2945 = vsub.s32 %v2942, %v2944
  %v2946 = vrot.slane %v2938, %v2945
  %v2948 = vunpack.c.l.s4 1934713408
  %v2949 = vunpack.c.0.s8 %v2948
  %v2950 = vlaneseq
  %v2951 = vshrl.u32 %v2950, 7
  %v2952 = vsub.s32 %v2949, %v2951
  %v2953 = vrot.slane %v2939, %v2952
  %v2954 = vcombine.low %v2889, %v2905
  %v2955 = vcombine.high %v2889, %v2905
  %v2957 = vunpack.c.l.s4 1934713408
  %v2958 = vunpack.c.0.s8 %v2957
  %v2959 = vlaneseq
  %v2960 = vshrl.u32 %v2959, 7
  %v2961 = vsub.s32 %v2958, %v2960
  %v2962 = vrot.slane %v2954, %v2961
  %v2964 = vunpack.c.l.s4 1934713408
  %v2965 = vunpack.c.0.s8 %v2964
  %v2966 = vlaneseq
  %v2967 = vshrl.u32 %v2966, 7
  %v2968 = vsub.s32 %v2965, %v2967
  %v2969 = vrot.slane %v2955, %v2968
  %v2970 = vcombine.low %v2914, %v2946
  %v2971 = vcombine.high %v2914, %v2946
  %v2972 = vcombine.low %v2921, %v2953
  %v2973 = vcombine.high %v2921, %v2953
  %v2974 = vcombine.low %v2930, %v2962
  %v2975 = vcombine.high %v2930, %v2962
  %v2976 = vcombine.low %v2937, %v2969
  %v2977 = vcombine.high %v2937, %v2969
  %v2978 = vcombine.high %v2636, 0.0
  %v2980 = vunpack.c.l.s4 1983009808
  %v2981 = vunpack.c.0.s8 %v2980
  %v2982 = vlaneseq
  %v2983 = vshrl.u32 %v2982, 7
  %v2984 = vsub.s32 %v2981, %v2983
  %v2985 = vrot.slane %v2636, %v2984
  %v2987 = vunpack.c.l.s4 1983009808
  %v2988 = vunpack.c.0.s8 %v2987
  %v2989 = vlaneseq
  %v2990 = vshrl.u32 %v2989, 7
  %v2991 = vsub.s32 %v2988, %v2990
  %v2992 = vrot.slane %v2978, %v2991
  %v2993 = vcombine.high %v2638, 0.0
  %v2995 = vunpack.c.l.s4 1983009808
  %v2996 = vunpack.c.0.s8 %v2995
  %v2997 = vlaneseq
  %v2998 = vshrl.u32 %v2997, 7
  %v2999 = vsub.s32 %v2996, %v2998
  %v3000 = vrot.slane %v2638, %v2999
  %v3002 = vunpack.c.l.s4 1983009808
  %v3003 = vunpack.c.0.s8 %v3002
  %v3004 = vlaneseq
  %v3005 = vshrl.u32 %v3004, 7
  %v3006 = vsub.s32 %v3003, %v3005
  %v3007 = vrot.slane %v2993, %v3006
  %v3008 = vcombine.low %v2985, %v3000
  %v3009 = vcombine.high %v2985, %v3000
  %v3011 = vunpack.c.l.s4 1934713408
  %v3012 = vunpack.c.0.s8 %v3011
  %v3013 = vlaneseq
  %v3014 = vshrl.u32 %v3013, 7
  %v3015 = vsub.s32 %v3012, %v3014
  %v3016 = vrot.slane %v3008, %v3015
  %v3018 = vunpack.c.l.s4 1934713408
  %v3019 = vunpack.c.0.s8 %v3018
  %v3020 = vlaneseq
  %v3021 = vshrl.u32 %v3020, 7
  %v3022 = vsub.s32 %v3019, %v3021
  %v3023 = vrot.slane %v3009, %v3022
  %v3024 = vcombine.low %v2992, %v3007
  %v3025 = vcombine.high %v2992, %v3007
  %v3027 = vunpack.c.l.s4 1934713408
  %v3028 = vunpack.c.0.s8 %v3027
  %v3029 = vlaneseq
  %v3030 = vshrl.u32 %v3029, 7
  %v3031 = vsub.s32 %v3028, %v3030
  %v3032 = vrot.slane %v3024, %v3031
  %v3034 = vunpack.c.l.s4 1934713408
  %v3035 = vunpack.c.0.s8 %v3034
  %v3036 = vlaneseq
  %v3037 = vshrl.u32 %v3036, 7
  %v3038 = vsub.s32 %v3035, %v3037
  %v3039 = vrot.slane %v3025, %v3038
  %v3040 = vcombine.high %v3016, 0.0
  %v3041 = vcombine.high %v3023, 0.0
  %v3042 = vcombine.high %v3032, 0.0
  %v3043 = vcombine.high %v3039, 0.0
  %v3044 = vadd.f32 %v2083, %v2768
  %v3045 = vadd.f32 %v2084, %v2814
  %v3046 = vadd.f32 %v2085, %v2769
  %v3047 = vadd.f32 %v2086, %v2838
  %v3048 = vadd.f32 %v2087, %v2770
  %v3049 = vadd.f32 %v2088, %v2821
  %v3050 = vadd.f32 %v2089, %v2771
  %v3051 = vadd.f32 %v2090, %v2839
  %v3052 = vadd.f32 %v2091, %v2772
  %v3053 = vadd.f32 %v2092, %v2830
  %v3054 = vadd.f32 %v2093, %v2773
  %v3055 = vadd.f32 %v2094, %v2840
  %v3056 = vadd.f32 %v2095, %v2774
  %v3057 = vadd.f32 %v2096, %v2837
  %v3058 = vadd.f32 %v2097, %v2775
  %v3059 = vadd.f32 %v2098, %v2841
  %v3060 = vadd.f32 %v2099, %v2970
  %v3061 = vadd.f32 %v2100, %v3016
  %v3062 = vadd.f32 %v2101, %v2971
  %v3063 = vadd.f32 %v2102, %v3040
  %v3064 = vadd.f32 %v2103, %v2972
  %v3065 = vadd.f32 %v2104, %v3023
  %v3066 = vadd.f32 %v2105, %v2973
  %v3067 = vadd.f32 %v2106, %v3041
  %v3068 = vadd.f32 %v2107, %v2974
  %v3069 = vadd.f32 %v2108, %v3032
  %v3070 = vadd.f32 %v2109, %v2975
  %v3071 = vadd.f32 %v2110, %v3042
  %v3072 = vadd.f32 %v2111, %v2976
  %v3073 = vadd.f32 %v2112, %v3039
  %v3074 = vadd.f32 %v2113, %v2977
  %v3075 = vadd.f32 %v2114, %v3043
  %v3076 = vxor.u32 %v3060, 2147483648
  %v3077 = vxor.u32 %v3061, 2147483648
  %v3078 = vxor.u32 %v3062, 2147483648
  %v3079 = vxor.u32 %v3063, 2147483648
  %v3080 = vxor.u32 %v3064, 2147483648
  %v3081 = vxor.u32 %v3065, 2147483648
  %v3082 = vxor.u32 %v3066, 2147483648
  %v3083 = vxor.u32 %v3067, 2147483648
  %v3084 = vxor.u32 %v3068, 2147483648
  %v3085 = vxor.u32 %v3069, 2147483648
  %v3086 = vxor.u32 %v3070, 2147483648
  %v3087 = vxor.u32 %v3071, 2147483648
  %v3088 = vxor.u32 %v3072, 2147483648
  %v3089 = vxor.u32 %v3073, 2147483648
  %v3090 = vxor.u32 %v3074, 2147483648
  %v3091 = vxor.u32 %v3075, 2147483648
  %v3092 = vmul.f32 %v3076, 1.442695
  %v3093 = vpow.pop %v3092
  %v3094 = vmul.f32 %v3077, 1.442695
  %v3095 = vpow.pop %v3094
  %v3096 = vmul.f32 %v3078, 1.442695
  %v3097 = vpow.pop %v3096
  %v3098 = vmul.f32 %v3079, 1.442695
  %v3099 = vpow.pop %v3098
  %v3100 = vmul.f32 %v3080, 1.442695
  %v3101 = vpow.pop %v3100
  %v3102 = vmul.f32 %v3081, 1.442695
  %v3103 = vpow.pop %v3102
  %v3104 = vmul.f32 %v3082, 1.442695
  %v3105 = vpow.pop %v3104
  %v3106 = vmul.f32 %v3083, 1.442695
  %v3107 = vpow.pop %v3106
  %v3108 = vmul.f32 %v3084, 1.442695
  %v3109 = vpow.pop %v3108
  %v3110 = vmul.f32 %v3085, 1.442695
  %v3111 = vpow.pop %v3110
  %v3112 = vmul.f32 %v3086, 1.442695
  %v3113 = vpow.pop %v3112
  %v3114 = vmul.f32 %v3087, 1.442695
  %v3115 = vpow.pop %v3114
  %v3116 = vmul.f32 %v3088, 1.442695
  %v3117 = vpow.pop %v3116
  %v3118 = vmul.f32 %v3089, 1.442695
  %v3119 = vpow.pop %v3118
  %v3120 = vmul.f32 %v3090, 1.442695
  %v3121 = vpow.pop %v3120
  %v3122 = vmul.f32 %v3091, 1.442695
  %v3123 = vpow.pop %v3122
  %v3124 = vadd.f32 %v3093, 1.0
  %v3125 = vadd.f32 %v3095, 1.0
  %v3126 = vadd.f32 %v3097, 1.0
  %v3127 = vadd.f32 %v3099, 1.0
  %v3128 = vadd.f32 %v3101, 1.0
  %v3129 = vadd.f32 %v3103, 1.0
  %v3130 = vadd.f32 %v3105, 1.0
  %v3131 = vadd.f32 %v3107, 1.0
  %v3132 = vadd.f32 %v3109, 1.0
  %v3133 = vadd.f32 %v3111, 1.0
  %v3134 = vadd.f32 %v3113, 1.0
  %v3135 = vadd.f32 %v3115, 1.0
  %v3136 = vadd.f32 %v3117, 1.0
  %v3137 = vadd.f32 %v3119, 1.0
  %v3138 = vadd.f32 %v3121, 1.0
  %v3139 = vadd.f32 %v3123, 1.0
  %v3140 = vrcp.pop %v3124
  %v3141 = vmul.f32 1.0, %v3140
  %v3142 = vrcp.pop %v3125
  %v3143 = vmul.f32 1.0, %v3142
  %v3144 = vrcp.pop %v3126
  %v3145 = vmul.f32 1.0, %v3144
  %v3146 = vrcp.pop %v3127
  %v3147 = vmul.f32 1.0, %v3146
  %v3148 = vrcp.pop %v3128
  %v3149 = vmul.f32 1.0, %v3148
  %v3150 = vrcp.pop %v3129
  %v3151 = vmul.f32 1.0, %v3150
  %v3152 = vrcp.pop %v3130
  %v3153 = vmul.f32 1.0, %v3152
  %v3154 = vrcp.pop %v3131
  %v3155 = vmul.f32 1.0, %v3154
  %v3156 = vrcp.pop %v3132
  %v3157 = vmul.f32 1.0, %v3156
  %v3158 = vrcp.pop %v3133
  %v3159 = vmul.f32 1.0, %v3158
  %v3160 = vrcp.pop %v3134
  %v3161 = vmul.f32 1.0, %v3160
  %v3162 = vrcp.pop %v3135
  %v3163 = vmul.f32 1.0, %v3162
  %v3164 = vrcp.pop %v3136
  %v3165 = vmul.f32 1.0, %v3164
  %v3166 = vrcp.pop %v3137
  %v3167 = vmul.f32 1.0, %v3166
  %v3168 = vrcp.pop %v3138
  %v3169 = vmul.f32 1.0, %v3168
  %v3170 = vrcp.pop %v3139
  %v3171 = vmul.f32 1.0, %v3170
  %v3172 = vmul.f32 %v3044, %v3141
  %v3173 = vmul.f32 %v3045, %v3143
  %v3174 = vmul.f32 %v3046, %v3145
  %v3175 = vmul.f32 %v3047, %v3147
  %v3176 = vmul.f32 %v3048, %v3149
  %v3177 = vmul.f32 %v3049, %v3151
  %v3178 = vmul.f32 %v3050, %v3153
  %v3179 = vmul.f32 %v3051, %v3155
  %v3180 = vmul.f32 %v3052, %v3157
  %v3181 = vmul.f32 %v3053, %v3159
  %v3182 = vmul.f32 %v3054, %v3161
  %v3183 = vmul.f32 %v3055, %v3163
  %v3184 = vmul.f32 %v3056, %v3165
  %v3185 = vmul.f32 %v3057, %v3167
  %v3186 = vmul.f32 %v3058, %v3169
  %v3187 = vmul.f32 %v3059, %v3171
  %3188 = vst [vmem:[%s3] sm:$0xff] %v3172
  %3189 = vst [vmem:[%s3 + $0x8] sm:$0x3] %v3173
  %3190 = vst [vmem:[%s3 + $0x10] sm:$0xff] %v3174
  %3191 = vst [vmem:[%s3 + $0x18] sm:$0x3] %v3175
  %3192 = vst [vmem:[%s3 + $0x20] sm:$0xff] %v3176
  %3193 = vst [vmem:[%s3 + $0x28] sm:$0x3] %v3177
  %3194 = vst [vmem:[%s3 + $0x30] sm:$0xff] %v3178
  %3195 = vst [vmem:[%s3 + $0x38] sm:$0x3] %v3179
  %3196 = vst [vmem:[%s3 + $0x40] sm:$0xff] %v3180
  %3197 = vst [vmem:[%s3 + $0x48] sm:$0x3] %v3181
  %3198 = vst [vmem:[%s3 + $0x50] sm:$0xff] %v3182
  %3199 = vst [vmem:[%s3 + $0x58] sm:$0x3] %v3183
  %3200 = vst [vmem:[%s3 + $0x60] sm:$0xff] %v3184
  %3201 = vst [vmem:[%s3 + $0x68] sm:$0x3] %v3185
  %3202 = vst [vmem:[%s3 + $0x70] sm:$0xff] %v3186
  %3203 = vst [vmem:[%s3 + $0x78] sm:$0x3] %v3187
  %v3204 = vld [vmem:[%s1] sm:$0xff]
  %v3205 = vld [vmem:[%s1 + $0x8] sm:$0xff]
  %s3206 = scalar_lea.vmem %s0, 64
  %v3207 = vld [vmem:[%s3206] sm:$0xff]
  %v3208 = vld [vmem:[%s3206 + $0x8] sm:$0x3]
  %v3209 = vld [vmem:[%s3206 + $0x10] sm:$0xff]
  %v3210 = vld [vmem:[%s3206 + $0x18] sm:$0x3]
  %v3211 = vld [vmem:[%s3206 + $0x20] sm:$0xff]
  %v3212 = vld [vmem:[%s3206 + $0x28] sm:$0x3]
  %v3213 = vld [vmem:[%s3206 + $0x30] sm:$0xff]
  %v3214 = vld [vmem:[%s3206 + $0x38] sm:$0x3]
  %v3215 = vcombine.low %v3207, %v3211
  %v3216 = vcombine.high %v3207, %v3211
  %v3218 = vunpack.c.l.s4 1983009808
  %v3219 = vunpack.c.0.s8 %v3218
  %v3220 = vlaneseq
  %v3221 = vshrl.u32 %v3220, 7
  %v3222 = vsub.s32 %v3219, %v3221
  %v3223 = vrot.slane %v3215, %v3222
  %v3225 = vunpack.c.l.s4 1983009808
  %v3226 = vunpack.c.0.s8 %v3225
  %v3227 = vlaneseq
  %v3228 = vshrl.u32 %v3227, 7
  %v3229 = vsub.s32 %v3226, %v3228
  %v3230 = vrot.slane %v3216, %v3229
  %v3231 = vcombine.low %v3209, %v3213
  %v3232 = vcombine.high %v3209, %v3213
  %v3234 = vunpack.c.l.s4 1983009808
  %v3235 = vunpack.c.0.s8 %v3234
  %v3236 = vlaneseq
  %v3237 = vshrl.u32 %v3236, 7
  %v3238 = vsub.s32 %v3235, %v3237
  %v3239 = vrot.slane %v3231, %v3238
  %v3241 = vunpack.c.l.s4 1983009808
  %v3242 = vunpack.c.0.s8 %v3241
  %v3243 = vlaneseq
  %v3244 = vshrl.u32 %v3243, 7
  %v3245 = vsub.s32 %v3242, %v3244
  %v3246 = vrot.slane %v3232, %v3245
  %v3247 = vcombine.low %v3223, %v3239
  %v3248 = vcombine.high %v3223, %v3239
  %v3250 = vunpack.c.l.s4 1934713408
  %v3251 = vunpack.c.0.s8 %v3250
  %v3252 = vlaneseq
  %v3253 = vshrl.u32 %v3252, 7
  %v3254 = vsub.s32 %v3251, %v3253
  %v3255 = vrot.slane %v3247, %v3254
  %v3257 = vunpack.c.l.s4 1934713408
  %v3258 = vunpack.c.0.s8 %v3257
  %v3259 = vlaneseq
  %v3260 = vshrl.u32 %v3259, 7
  %v3261 = vsub.s32 %v3258, %v3260
  %v3262 = vrot.slane %v3248, %v3261
  %v3263 = vcombine.low %v3230, %v3246
  %v3264 = vcombine.high %v3230, %v3246
  %v3266 = vunpack.c.l.s4 1934713408
  %v3267 = vunpack.c.0.s8 %v3266
  %v3268 = vlaneseq
  %v3269 = vshrl.u32 %v3268, 7
  %v3270 = vsub.s32 %v3267, %v3269
  %v3271 = vrot.slane %v3263, %v3270
  %v3273 = vunpack.c.l.s4 1934713408
  %v3274 = vunpack.c.0.s8 %v3273
  %v3275 = vlaneseq
  %v3276 = vshrl.u32 %v3275, 7
  %v3277 = vsub.s32 %v3274, %v3276
  %v3278 = vrot.slane %v3264, %v3277
  %v3279 = vcombine.high %v3255, 0.0
  %v3280 = vcombine.high %v3262, 0.0
  %v3281 = vcombine.high %v3271, 0.0
  %v3282 = vcombine.high %v3278, 0.0
  %v3283 = vcombine.low %v3208, %v3212
  %v3285 = vunpack.c.l.s4 1983009808
  %v3286 = vunpack.c.0.s8 %v3285
  %v3287 = vlaneseq
  %v3288 = vshrl.u32 %v3287, 7
  %v3289 = vsub.s32 %v3286, %v3288
  %v3290 = vrot.slane %v3283, %v3289
  %v3291 = vcombine.low %v3210, %v3214
  %v3293 = vunpack.c.l.s4 1983009808
  %v3294 = vunpack.c.0.s8 %v3293
  %v3295 = vlaneseq
  %v3296 = vshrl.u32 %v3295, 7
  %v3297 = vsub.s32 %v3294, %v3296
  %v3298 = vrot.slane %v3291, %v3297
  %v3299 = vcombine.low %v3290, %v3298
  %v3301 = vunpack.c.l.s4 1934713408
  %v3302 = vunpack.c.0.s8 %v3301
  %v3303 = vlaneseq
  %v3304 = vshrl.u32 %v3303, 7
  %v3305 = vsub.s32 %v3302, %v3304
  %v3306 = vrot.slane %v3299, %v3305
  %v3307 = vcombine.high %v3306, 0.0
  %v3309 = vsel %vm295, %v3204, 0
  %v3312 = vsel %vm295, %v3205, 0
  %v3315 = vsel %vm302, %v3255, 0
  %v3318 = vsel %vm302, %v3279, 0
  %v3321 = vsel %vm302, %v3262, 0
  %v3324 = vsel %vm302, %v3280, 0
  %v3327 = vsel %vm302, %v3271, 0
  %v3330 = vsel %vm302, %v3281, 0
  %v3333 = vsel %vm302, %v3278, 0
  %v3336 = vsel %vm302, %v3282, 0
  %v3339 = vsel %vm302, %v3306, 0
  %v3342 = vsel %vm302, %v3307, 0
  %3344 = vmatprep.subr.mxu0 %v3318
  %3345 = vmatpush1.msra.mxu0 %v3315
  %3346 = vmatprep.subr.mxu0 0.0
  %3347 = vmatpush1.msra.mxu0 0.0
  %3348 = vmatprep.subr.mxu0 0.0
  %3349 = vmatpush1.msra.mxu0 0.0
  %3350 = vmatprep.subr.mxu0 0.0
  %3351 = vmatpush1.msra.mxu0 0.0
  %3352 = vmatprep.subr.mxu0 0.0
  %3353 = vmatpush1.msra.mxu0 0.0
  %3354 = vmatprep.subr.mxu0 0.0
  %3355 = vmatpush1.msra.mxu0 0.0
  %3356 = vmatprep.subr.mxu0 0.0
  %3357 = vmatpush1.msra.mxu0 0.0
  %3358 = vmatprep.subr.mxu0 0.0
  %3359 = vmatpush1.msra.mxu0 0.0
  %3360 = vmatprep.subr.mxu0 0.0
  %3361 = vmatpush1.msra.mxu0 0.0
  %3362 = vmatprep.subr.mxu0 0.0
  %3363 = vmatpush1.msra.mxu0 0.0
  %3364 = vmatprep.subr.mxu0 0.0
  %3365 = vmatpush1.msra.mxu0 0.0
  %3366 = vmatprep.subr.mxu0 0.0
  %3367 = vmatpush1.msra.mxu0 0.0
  %3368 = vmatprep.subr.mxu0 0.0
  %3369 = vmatpush1.msra.mxu0 0.0
  %3370 = vmatprep.subr.mxu0 0.0
  %3371 = vmatpush1.msra.mxu0 0.0
  %3372 = vmatprep.subr.mxu0 0.0
  %3373 = vmatpush1.msra.mxu0 0.0
  %3374 = vmatprep.subr.mxu0 0.0
  %3375 = vmatpush1.msra.mxu0 0.0
  %3376 = vmatprep.subr.mxu0 0.0
  %3377 = vmatpush1.msra.mxu0 0.0
  %3378 = vmatprep.subr.mxu0 0.0
  %3379 = vmatpush1.msra.mxu0 0.0
  %3380 = vmatprep.subr.mxu0 0.0
  %3381 = vmatpush1.msra.mxu0 0.0
  %3382 = vmatprep.subr.mxu0 0.0
  %3383 = vmatpush1.msra.mxu0 0.0
  %3384 = vmatprep.subr.mxu0 0.0
  %3385 = vmatpush1.msra.mxu0 0.0
  %3386 = vmatprep.subr.mxu0 0.0
  %3387 = vmatpush1.msra.mxu0 0.0
  %3388 = vmatprep.subr.mxu0 0.0
  %3389 = vmatpush1.msra.mxu0 0.0
  %3390 = vmatprep.subr.mxu0 0.0
  %3391 = vmatpush1.msra.mxu0 0.0
  %3392 = vmatprep.subr.mxu0 0.0
  %3393 = vmatpush1.msra.mxu0 0.0
  %3394 = vmatprep.subr.mxu0 0.0
  %3395 = vmatpush1.msra.mxu0 0.0
  %3396 = vmatprep.subr.mxu0 0.0
  %3397 = vmatpush1.msra.mxu0 0.0
  %3398 = vmatprep.subr.mxu0 0.0
  %3399 = vmatpush1.msra.mxu0 0.0
  %3400 = vmatprep.subr.mxu0 0.0
  %3401 = vmatpush1.msra.mxu0 0.0
  %3402 = vmatprep.subr.mxu0 0.0
  %3403 = vmatpush1.msra.mxu0 0.0
  %3404 = vmatprep.subr.mxu0 0.0
  %3405 = vmatpush1.msra.mxu0 0.0
  %3406 = vmatprep.subr.mxu0 0.0
  %3407 = vmatpush1.msra.mxu0 0.0
  %3408 = vmatprep.mubr.f32.mxu0 0.0
  %3409 = vmatmul.mubr.f32.gmra.mrb[0].mxu0 %v3309
  %v3410 = vpop.f32.mrb[0].mxu0
  %v3411 = vadd.f32 %v293, %v3410
  %v3412 = vpop.f32.mrb[0].mxu0
  %v3413 = vadd.f32 %v294, %v3412
  %3414 = vmatprep.mubr.f32.mxu0 0.0
  %3415 = vmatmul.mubr.f32.gmra.mrb[0].mxu0 %v3312
  %v3416 = vpop.f32.mrb[0].mxu0
  %v3417 = vadd.f32 %v293, %v3416
  %v3418 = vpop.f32.mrb[0].mxu0
  %v3419 = vadd.f32 %v294, %v3418
  %3420 = vdwg.mxu0
  %3421 = vmatprep.subr.mxu0 %v3324
  %3422 = vmatpush1.msra.mxu0 %v3321
  %3423 = vmatprep.subr.mxu0 0.0
  %3424 = vmatpush1.msra.mxu0 0.0
  %3425 = vmatprep.subr.mxu0 0.0
  %3426 = vmatpush1.msra.mxu0 0.0
  %3427 = vmatprep.subr.mxu0 0.0
  %3428 = vmatpush1.msra.mxu0 0.0
  %3429 = vmatprep.subr.mxu0 0.0
  %3430 = vmatpush1.msra.mxu0 0.0
  %3431 = vmatprep.subr.mxu0 0.0
  %3432 = vmatpush1.msra.mxu0 0.0
  %3433 = vmatprep.subr.mxu0 0.0
  %3434 = vmatpush1.msra.mxu0 0.0
  %3435 = vmatprep.subr.mxu0 0.0
  %3436 = vmatpush1.msra.mxu0 0.0
  %3437 = vmatprep.subr.mxu0 0.0
  %3438 = vmatpush1.msra.mxu0 0.0
  %3439 = vmatprep.subr.mxu0 0.0
  %3440 = vmatpush1.msra.mxu0 0.0
  %3441 = vmatprep.subr.mxu0 0.0
  %3442 = vmatpush1.msra.mxu0 0.0
  %3443 = vmatprep.subr.mxu0 0.0
  %3444 = vmatpush1.msra.mxu0 0.0
  %3445 = vmatprep.subr.mxu0 0.0
  %3446 = vmatpush1.msra.mxu0 0.0
  %3447 = vmatprep.subr.mxu0 0.0
  %3448 = vmatpush1.msra.mxu0 0.0
  %3449 = vmatprep.subr.mxu0 0.0
  %3450 = vmatpush1.msra.mxu0 0.0
  %3451 = vmatprep.subr.mxu0 0.0
  %3452 = vmatpush1.msra.mxu0 0.0
  %3453 = vmatprep.subr.mxu0 0.0
  %3454 = vmatpush1.msra.mxu0 0.0
  %3455 = vmatprep.subr.mxu0 0.0
  %3456 = vmatpush1.msra.mxu0 0.0
  %3457 = vmatprep.subr.mxu0 0.0
  %3458 = vmatpush1.msra.mxu0 0.0
  %3459 = vmatprep.subr.mxu0 0.0
  %3460 = vmatpush1.msra.mxu0 0.0
  %3461 = vmatprep.subr.mxu0 0.0
  %3462 = vmatpush1.msra.mxu0 0.0
  %3463 = vmatprep.subr.mxu0 0.0
  %3464 = vmatpush1.msra.mxu0 0.0
  %3465 = vmatprep.subr.mxu0 0.0
  %3466 = vmatpush1.msra.mxu0 0.0
  %3467 = vmatprep.subr.mxu0 0.0
  %3468 = vmatpush1.msra.mxu0 0.0
  %3469 = vmatprep.subr.mxu0 0.0
  %3470 = vmatpush1.msra.mxu0 0.0
  %3471 = vmatprep.subr.mxu0 0.0
  %3472 = vmatpush1.msra.mxu0 0.0
  %3473 = vmatprep.subr.mxu0 0.0
  %3474 = vmatpush1.msra.mxu0 0.0
  %3475 = vmatprep.subr.mxu0 0.0
  %3476 = vmatpush1.msra.mxu0 0.0
  %3477 = vmatprep.subr.mxu0 0.0
  %3478 = vmatpush1.msra.mxu0 0.0
  %3479 = vmatprep.subr.mxu0 0.0
  %3480 = vmatpush1.msra.mxu0 0.0
  %3481 = vmatprep.subr.mxu0 0.0
  %3482 = vmatpush1.msra.mxu0 0.0
  %3483 = vmatprep.subr.mxu0 0.0
  %3484 = vmatpush1.msra.mxu0 0.0
  %3485 = vmatprep.mubr.f32.mxu0 0.0
  %3486 = vmatmul.mubr.f32.gmra.mrb[0].mxu0 %v3309
  %v3487 = vpop.f32.mrb[0].mxu0
  %v3488 = vadd.f32 0.0, %v3487
  %v3489 = vpop.f32.mrb[0].mxu0
  %v3490 = vadd.f32 0.0, %v3489
  %3491 = vmatprep.mubr.f32.mxu0 0.0
  %3492 = vmatmul.mubr.f32.gmra.mrb[0].mxu0 %v3312
  %v3493 = vpop.f32.mrb[0].mxu0
  %v3494 = vadd.f32 0.0, %v3493
  %v3495 = vpop.f32.mrb[0].mxu0
  %v3496 = vadd.f32 0.0, %v3495
  %3497 = vdwg.mxu0
  %3498 = vmatprep.subr.mxu0 %v3330
  %3499 = vmatpush1.msra.mxu0 %v3327
  %3500 = vmatprep.subr.mxu0 0.0
  %3501 = vmatpush1.msra.mxu0 0.0
  %3502 = vmatprep.subr.mxu0 0.0
  %3503 = vmatpush1.msra.mxu0 0.0
  %3504 = vmatprep.subr.mxu0 0.0
  %3505 = vmatpush1.msra.mxu0 0.0
  %3506 = vmatprep.subr.mxu0 0.0
  %3507 = vmatpush1.msra.mxu0 0.0
  %3508 = vmatprep.subr.mxu0 0.0
  %3509 = vmatpush1.msra.mxu0 0.0
  %3510 = vmatprep.subr.mxu0 0.0
  %3511 = vmatpush1.msra.mxu0 0.0
  %3512 = vmatprep.subr.mxu0 0.0
  %3513 = vmatpush1.msra.mxu0 0.0
  %3514 = vmatprep.subr.mxu0 0.0
  %3515 = vmatpush1.msra.mxu0 0.0
  %3516 = vmatprep.subr.mxu0 0.0
  %3517 = vmatpush1.msra.mxu0 0.0
  %3518 = vmatprep.subr.mxu0 0.0
  %3519 = vmatpush1.msra.mxu0 0.0
  %3520 = vmatprep.subr.mxu0 0.0
  %3521 = vmatpush1.msra.mxu0 0.0
  %3522 = vmatprep.subr.mxu0 0.0
  %3523 = vmatpush1.msra.mxu0 0.0
  %3524 = vmatprep.subr.mxu0 0.0
  %3525 = vmatpush1.msra.mxu0 0.0
  %3526 = vmatprep.subr.mxu0 0.0
  %3527 = vmatpush1.msra.mxu0 0.0
  %3528 = vmatprep.subr.mxu0 0.0
  %3529 = vmatpush1.msra.mxu0 0.0
  %3530 = vmatprep.subr.mxu0 0.0
  %3531 = vmatpush1.msra.mxu0 0.0
  %3532 = vmatprep.subr.mxu0 0.0
  %3533 = vmatpush1.msra.mxu0 0.0
  %3534 = vmatprep.subr.mxu0 0.0
  %3535 = vmatpush1.msra.mxu0 0.0
  %3536 = vmatprep.subr.mxu0 0.0
  %3537 = vmatpush1.msra.mxu0 0.0
  %3538 = vmatprep.subr.mxu0 0.0
  %3539 = vmatpush1.msra.mxu0 0.0
  %3540 = vmatprep.subr.mxu0 0.0
  %3541 = vmatpush1.msra.mxu0 0.0
  %3542 = vmatprep.subr.mxu0 0.0
  %3543 = vmatpush1.msra.mxu0 0.0
  %3544 = vmatprep.subr.mxu0 0.0
  %3545 = vmatpush1.msra.mxu0 0.0
  %3546 = vmatprep.subr.mxu0 0.0
  %3547 = vmatpush1.msra.mxu0 0.0
  %3548 = vmatprep.subr.mxu0 0.0
  %3549 = vmatpush1.msra.mxu0 0.0
  %3550 = vmatprep.subr.mxu0 0.0
  %3551 = vmatpush1.msra.mxu0 0.0
  %3552 = vmatprep.subr.mxu0 0.0
  %3553 = vmatpush1.msra.mxu0 0.0
  %3554 = vmatprep.subr.mxu0 0.0
  %3555 = vmatpush1.msra.mxu0 0.0
  %3556 = vmatprep.subr.mxu0 0.0
  %3557 = vmatpush1.msra.mxu0 0.0
  %3558 = vmatprep.subr.mxu0 0.0
  %3559 = vmatpush1.msra.mxu0 0.0
  %3560 = vmatprep.subr.mxu0 0.0
  %3561 = vmatpush1.msra.mxu0 0.0
  %3562 = vmatprep.mubr.f32.mxu0 0.0
  %3563 = vmatmul.mubr.f32.gmra.mrb[0].mxu0 %v3309
  %v3564 = vpop.f32.mrb[0].mxu0
  %v3565 = vadd.f32 0.0, %v3564
  %v3566 = vpop.f32.mrb[0].mxu0
  %v3567 = vadd.f32 0.0, %v3566
  %3568 = vmatprep.mubr.f32.mxu0 0.0
  %3569 = vmatmul.mubr.f32.gmra.mrb[0].mxu0 %v3312
  %v3570 = vpop.f32.mrb[0].mxu0
  %v3571 = vadd.f32 0.0, %v3570
  %v3572 = vpop.f32.mrb[0].mxu0
  %v3573 = vadd.f32 0.0, %v3572
  %3574 = vdwg.mxu0
  %3575 = vmatprep.subr.mxu0 %v3336
  %3576 = vmatpush1.msra.mxu0 %v3333
  %3577 = vmatprep.subr.mxu0 0.0
  %3578 = vmatpush1.msra.mxu0 0.0
  %3579 = vmatprep.subr.mxu0 0.0
  %3580 = vmatpush1.msra.mxu0 0.0
  %3581 = vmatprep.subr.mxu0 0.0
  %3582 = vmatpush1.msra.mxu0 0.0
  %3583 = vmatprep.subr.mxu0 0.0
  %3584 = vmatpush1.msra.mxu0 0.0
  %3585 = vmatprep.subr.mxu0 0.0
  %3586 = vmatpush1.msra.mxu0 0.0
  %3587 = vmatprep.subr.mxu0 0.0
  %3588 = vmatpush1.msra.mxu0 0.0
  %3589 = vmatprep.subr.mxu0 0.0
  %3590 = vmatpush1.msra.mxu0 0.0
  %3591 = vmatprep.subr.mxu0 0.0
  %3592 = vmatpush1.msra.mxu0 0.0
  %3593 = vmatprep.subr.mxu0 0.0
  %3594 = vmatpush1.msra.mxu0 0.0
  %3595 = vmatprep.subr.mxu0 0.0
  %3596 = vmatpush1.msra.mxu0 0.0
  %3597 = vmatprep.subr.mxu0 0.0
  %3598 = vmatpush1.msra.mxu0 0.0
  %3599 = vmatprep.subr.mxu0 0.0
  %3600 = vmatpush1.msra.mxu0 0.0
  %3601 = vmatprep.subr.mxu0 0.0
  %3602 = vmatpush1.msra.mxu0 0.0
  %3603 = vmatprep.subr.mxu0 0.0
  %3604 = vmatpush1.msra.mxu0 0.0
  %3605 = vmatprep.subr.mxu0 0.0
  %3606 = vmatpush1.msra.mxu0 0.0
  %3607 = vmatprep.subr.mxu0 0.0
  %3608 = vmatpush1.msra.mxu0 0.0
  %3609 = vmatprep.subr.mxu0 0.0
  %3610 = vmatpush1.msra.mxu0 0.0
  %3611 = vmatprep.subr.mxu0 0.0
  %3612 = vmatpush1.msra.mxu0 0.0
  %3613 = vmatprep.subr.mxu0 0.0
  %3614 = vmatpush1.msra.mxu0 0.0
  %3615 = vmatprep.subr.mxu0 0.0
  %3616 = vmatpush1.msra.mxu0 0.0
  %3617 = vmatprep.subr.mxu0 0.0
  %3618 = vmatpush1.msra.mxu0 0.0
  %3619 = vmatprep.subr.mxu0 0.0
  %3620 = vmatpush1.msra.mxu0 0.0
  %3621 = vmatprep.subr.mxu0 0.0
  %3622 = vmatpush1.msra.mxu0 0.0
  %3623 = vmatprep.subr.mxu0 0.0
  %3624 = vmatpush1.msra.mxu0 0.0
  %3625 = vmatprep.subr.mxu0 0.0
  %3626 = vmatpush1.msra.mxu0 0.0
  %3627 = vmatprep.subr.mxu0 0.0
  %3628 = vmatpush1.msra.mxu0 0.0
  %3629 = vmatprep.subr.mxu0 0.0
  %3630 = vmatpush1.msra.mxu0 0.0
  %3631 = vmatprep.subr.mxu0 0.0
  %3632 = vmatpush1.msra.mxu0 0.0
  %3633 = vmatprep.subr.mxu0 0.0
  %3634 = vmatpush1.msra.mxu0 0.0
  %3635 = vmatprep.subr.mxu0 0.0
  %3636 = vmatpush1.msra.mxu0 0.0
  %3637 = vmatprep.subr.mxu0 0.0
  %3638 = vmatpush1.msra.mxu0 0.0
  %3639 = vmatprep.mubr.f32.mxu0 0.0
  %3640 = vmatmul.mubr.f32.gmra.mrb[0].mxu0 %v3309
  %v3641 = vpop.f32.mrb[0].mxu0
  %v3642 = vadd.f32 0.0, %v3641
  %v3643 = vpop.f32.mrb[0].mxu0
  %v3644 = vadd.f32 0.0, %v3643
  %3645 = vmatprep.mubr.f32.mxu0 0.0
  %3646 = vmatmul.mubr.f32.gmra.mrb[0].mxu0 %v3312
  %v3647 = vpop.f32.mrb[0].mxu0
  %v3648 = vadd.f32 0.0, %v3647
  %v3649 = vpop.f32.mrb[0].mxu0
  %v3650 = vadd.f32 0.0, %v3649
  %3651 = vdwg.mxu0
  %3652 = vmatprep.subr.mxu0 %v3342
  %3653 = vmatpush1.msra.mxu0 %v3339
  %3654 = vmatprep.subr.mxu0 0.0
  %3655 = vmatpush1.msra.mxu0 0.0
  %3656 = vmatprep.subr.mxu0 0.0
  %3657 = vmatpush1.msra.mxu0 0.0
  %3658 = vmatprep.subr.mxu0 0.0
  %3659 = vmatpush1.msra.mxu0 0.0
  %3660 = vmatprep.subr.mxu0 0.0
  %3661 = vmatpush1.msra.mxu0 0.0
  %3662 = vmatprep.subr.mxu0 0.0
  %3663 = vmatpush1.msra.mxu0 0.0
  %3664 = vmatprep.subr.mxu0 0.0
  %3665 = vmatpush1.msra.mxu0 0.0
  %3666 = vmatprep.subr.mxu0 0.0
  %3667 = vmatpush1.msra.mxu0 0.0
  %3668 = vmatprep.subr.mxu0 0.0
  %3669 = vmatpush1.msra.mxu0 0.0
  %3670 = vmatprep.subr.mxu0 0.0
  %3671 = vmatpush1.msra.mxu0 0.0
  %3672 = vmatprep.subr.mxu0 0.0
  %3673 = vmatpush1.msra.mxu0 0.0
  %3674 = vmatprep.subr.mxu0 0.0
  %3675 = vmatpush1.msra.mxu0 0.0
  %3676 = vmatprep.subr.mxu0 0.0
  %3677 = vmatpush1.msra.mxu0 0.0
  %3678 = vmatprep.subr.mxu0 0.0
  %3679 = vmatpush1.msra.mxu0 0.0
  %3680 = vmatprep.subr.mxu0 0.0
  %3681 = vmatpush1.msra.mxu0 0.0
  %3682 = vmatprep.subr.mxu0 0.0
  %3683 = vmatpush1.msra.mxu0 0.0
  %3684 = vmatprep.subr.mxu0 0.0
  %3685 = vmatpush1.msra.mxu0 0.0
  %3686 = vmatprep.subr.mxu0 0.0
  %3687 = vmatpush1.msra.mxu0 0.0
  %3688 = vmatprep.subr.mxu0 0.0
  %3689 = vmatpush1.msra.mxu0 0.0
  %3690 = vmatprep.subr.mxu0 0.0
  %3691 = vmatpush1.msra.mxu0 0.0
  %3692 = vmatprep.subr.mxu0 0.0
  %3693 = vmatpush1.msra.mxu0 0.0
  %3694 = vmatprep.subr.mxu0 0.0
  %3695 = vmatpush1.msra.mxu0 0.0
  %3696 = vmatprep.subr.mxu0 0.0
  %3697 = vmatpush1.msra.mxu0 0.0
  %3698 = vmatprep.subr.mxu0 0.0
  %3699 = vmatpush1.msra.mxu0 0.0
  %3700 = vmatprep.subr.mxu0 0.0
  %3701 = vmatpush1.msra.mxu0 0.0
  %3702 = vmatprep.subr.mxu0 0.0
  %3703 = vmatpush1.msra.mxu0 0.0
  %3704 = vmatprep.subr.mxu0 0.0
  %3705 = vmatpush1.msra.mxu0 0.0
  %3706 = vmatprep.subr.mxu0 0.0
  %3707 = vmatpush1.msra.mxu0 0.0
  %3708 = vmatprep.subr.mxu0 0.0
  %3709 = vmatpush1.msra.mxu0 0.0
  %3710 = vmatprep.subr.mxu0 0.0
  %3711 = vmatpush1.msra.mxu0 0.0
  %3712 = vmatprep.subr.mxu0 0.0
  %3713 = vmatpush1.msra.mxu0 0.0
  %3714 = vmatprep.subr.mxu0 0.0
  %3715 = vmatpush1.msra.mxu0 0.0
  %3716 = vmatprep.mubr.f32.mxu0 0.0
  %3717 = vmatmul.mubr.f32.gmra.mrb[0].mxu0 %v3309
  %v3718 = vpop.f32.mrb[0].mxu0
  %v3719 = vadd.f32 %v293, %v3718
  %v3720 = vpop.f32.mrb[0].mxu0
  %v3721 = vadd.f32 %v294, %v3720
  %3722 = vmatprep.mubr.f32.mxu0 0.0
  %3723 = vmatmul.mubr.f32.gmra.mrb[0].mxu0 %v3312
  %v3724 = vpop.f32.mrb[0].mxu0
  %v3725 = vadd.f32 %v293, %v3724
  %v3726 = vpop.f32.mrb[0].mxu0
  %v3727 = vadd.f32 %v294, %v3726
  %3728 = vdwg.mxu0
  %v3729 = vcombine.low %v3411, %v3488
  %v3730 = vcombine.high %v3411, %v3488
  %v3732 = vunpack.c.l.s4 1983009808
  %v3733 = vunpack.c.0.s8 %v3732
  %v3734 = vlaneseq
  %v3735 = vshrl.u32 %v3734, 7
  %v3736 = vsub.s32 %v3733, %v3735
  %v3737 = vrot.slane %v3729, %v3736
  %v3739 = vunpack.c.l.s4 1983009808
  %v3740 = vunpack.c.0.s8 %v3739
  %v3741 = vlaneseq
  %v3742 = vshrl.u32 %v3741, 7
  %v3743 = vsub.s32 %v3740, %v3742
  %v3744 = vrot.slane %v3730, %v3743
  %v3745 = vcombine.low %v3413, %v3490
  %v3746 = vcombine.high %v3413, %v3490
  %v3748 = vunpack.c.l.s4 1983009808
  %v3749 = vunpack.c.0.s8 %v3748
  %v3750 = vlaneseq
  %v3751 = vshrl.u32 %v3750, 7
  %v3752 = vsub.s32 %v3749, %v3751
  %v3753 = vrot.slane %v3745, %v3752
  %v3755 = vunpack.c.l.s4 1983009808
  %v3756 = vunpack.c.0.s8 %v3755
  %v3757 = vlaneseq
  %v3758 = vshrl.u32 %v3757, 7
  %v3759 = vsub.s32 %v3756, %v3758
  %v3760 = vrot.slane %v3746, %v3759
  %v3761 = vcombine.low %v3565, %v3642
  %v3762 = vcombine.high %v3565, %v3642
  %v3764 = vunpack.c.l.s4 1983009808
  %v3765 = vunpack.c.0.s8 %v3764
  %v3766 = vlaneseq
  %v3767 = vshrl.u32 %v3766, 7
  %v3768 = vsub.s32 %v3765, %v3767
  %v3769 = vrot.slane %v3761, %v3768
  %v3771 = vunpack.c.l.s4 1983009808
  %v3772 = vunpack.c.0.s8 %v3771
  %v3773 = vlaneseq
  %v3774 = vshrl.u32 %v3773, 7
  %v3775 = vsub.s32 %v3772, %v3774
  %v3776 = vrot.slane %v3762, %v3775
  %v3777 = vcombine.low %v3567, %v3644
  %v3778 = vcombine.high %v3567, %v3644
  %v3780 = vunpack.c.l.s4 1983009808
  %v3781 = vunpack.c.0.s8 %v3780
  %v3782 = vlaneseq
  %v3783 = vshrl.u32 %v3782, 7
  %v3784 = vsub.s32 %v3781, %v3783
  %v3785 = vrot.slane %v3777, %v3784
  %v3787 = vunpack.c.l.s4 1983009808
  %v3788 = vunpack.c.0.s8 %v3787
  %v3789 = vlaneseq
  %v3790 = vshrl.u32 %v3789, 7
  %v3791 = vsub.s32 %v3788, %v3790
  %v3792 = vrot.slane %v3778, %v3791
  %v3793 = vcombine.low %v3737, %v3753
  %v3794 = vcombine.high %v3737, %v3753
  %v3796 = vunpack.c.l.s4 1934713408
  %v3797 = vunpack.c.0.s8 %v3796
  %v3798 = vlaneseq
  %v3799 = vshrl.u32 %v3798, 7
  %v3800 = vsub.s32 %v3797, %v3799
  %v3801 = vrot.slane %v3793, %v3800
  %v3803 = vunpack.c.l.s4 1934713408
  %v3804 = vunpack.c.0.s8 %v3803
  %v3805 = vlaneseq
  %v3806 = vshrl.u32 %v3805, 7
  %v3807 = vsub.s32 %v3804, %v3806
  %v3808 = vrot.slane %v3794, %v3807
  %v3809 = vcombine.low %v3744, %v3760
  %v3810 = vcombine.high %v3744, %v3760
  %v3812 = vunpack.c.l.s4 1934713408
  %v3813 = vunpack.c.0.s8 %v3812
  %v3814 = vlaneseq
  %v3815 = vshrl.u32 %v3814, 7
  %v3816 = vsub.s32 %v3813, %v3815
  %v3817 = vrot.slane %v3809, %v3816
  %v3819 = vunpack.c.l.s4 1934713408
  %v3820 = vunpack.c.0.s8 %v3819
  %v3821 = vlaneseq
  %v3822 = vshrl.u32 %v3821, 7
  %v3823 = vsub.s32 %v3820, %v3822
  %v3824 = vrot.slane %v3810, %v3823
  %v3825 = vcombine.low %v3769, %v3785
  %v3826 = vcombine.high %v3769, %v3785
  %v3828 = vunpack.c.l.s4 1934713408
  %v3829 = vunpack.c.0.s8 %v3828
  %v3830 = vlaneseq
  %v3831 = vshrl.u32 %v3830, 7
  %v3832 = vsub.s32 %v3829, %v3831
  %v3833 = vrot.slane %v3825, %v3832
  %v3835 = vunpack.c.l.s4 1934713408
  %v3836 = vunpack.c.0.s8 %v3835
  %v3837 = vlaneseq
  %v3838 = vshrl.u32 %v3837, 7
  %v3839 = vsub.s32 %v3836, %v3838
  %v3840 = vrot.slane %v3826, %v3839
  %v3841 = vcombine.low %v3776, %v3792
  %v3842 = vcombine.high %v3776, %v3792
  %v3844 = vunpack.c.l.s4 1934713408
  %v3845 = vunpack.c.0.s8 %v3844
  %v3846 = vlaneseq
  %v3847 = vshrl.u32 %v3846, 7
  %v3848 = vsub.s32 %v3845, %v3847
  %v3849 = vrot.slane %v3841, %v3848
  %v3851 = vunpack.c.l.s4 1934713408
  %v3852 = vunpack.c.0.s8 %v3851
  %v3853 = vlaneseq
  %v3854 = vshrl.u32 %v3853, 7
  %v3855 = vsub.s32 %v3852, %v3854
  %v3856 = vrot.slane %v3842, %v3855
  %v3857 = vcombine.low %v3801, %v3833
  %v3858 = vcombine.high %v3801, %v3833
  %v3859 = vcombine.low %v3808, %v3840
  %v3860 = vcombine.high %v3808, %v3840
  %v3861 = vcombine.low %v3817, %v3849
  %v3862 = vcombine.high %v3817, %v3849
  %v3863 = vcombine.low %v3824, %v3856
  %v3864 = vcombine.high %v3824, %v3856
  %v3865 = vcombine.high %v3719, 0.0
  %v3867 = vunpack.c.l.s4 1983009808
  %v3868 = vunpack.c.0.s8 %v3867
  %v3869 = vlaneseq
  %v3870 = vshrl.u32 %v3869, 7
  %v3871 = vsub.s32 %v3868, %v3870
  %v3872 = vrot.slane %v3719, %v3871
  %v3874 = vunpack.c.l.s4 1983009808
  %v3875 = vunpack.c.0.s8 %v3874
  %v3876 = vlaneseq
  %v3877 = vshrl.u32 %v3876, 7
  %v3878 = vsub.s32 %v3875, %v3877
  %v3879 = vrot.slane %v3865, %v3878
  %v3880 = vcombine.high %v3721, 0.0
  %v3882 = vunpack.c.l.s4 1983009808
  %v3883 = vunpack.c.0.s8 %v3882
  %v3884 = vlaneseq
  %v3885 = vshrl.u32 %v3884, 7
  %v3886 = vsub.s32 %v3883, %v3885
  %v3887 = vrot.slane %v3721, %v3886
  %v3889 = vunpack.c.l.s4 1983009808
  %v3890 = vunpack.c.0.s8 %v3889
  %v3891 = vlaneseq
  %v3892 = vshrl.u32 %v3891, 7
  %v3893 = vsub.s32 %v3890, %v3892
  %v3894 = vrot.slane %v3880, %v3893
  %v3895 = vcombine.low %v3872, %v3887
  %v3896 = vcombine.high %v3872, %v3887
  %v3898 = vunpack.c.l.s4 1934713408
  %v3899 = vunpack.c.0.s8 %v3898
  %v3900 = vlaneseq
  %v3901 = vshrl.u32 %v3900, 7
  %v3902 = vsub.s32 %v3899, %v3901
  %v3903 = vrot.slane %v3895, %v3902
  %v3905 = vunpack.c.l.s4 1934713408
  %v3906 = vunpack.c.0.s8 %v3905
  %v3907 = vlaneseq
  %v3908 = vshrl.u32 %v3907, 7
  %v3909 = vsub.s32 %v3906, %v3908
  %v3910 = vrot.slane %v3896, %v3909
  %v3911 = vcombine.low %v3879, %v3894
  %v3912 = vcombine.high %v3879, %v3894
  %v3914 = vunpack.c.l.s4 1934713408
  %v3915 = vunpack.c.0.s8 %v3914
  %v3916 = vlaneseq
  %v3917 = vshrl.u32 %v3916, 7
  %v3918 = vsub.s32 %v3915, %v3917
  %v3919 = vrot.slane %v3911, %v3918
  %v3921 = vunpack.c.l.s4 1934713408
  %v3922 = vunpack.c.0.s8 %v3921
  %v3923 = vlaneseq
  %v3924 = vshrl.u32 %v3923, 7
  %v3925 = vsub.s32 %v3922, %v3924
  %v3926 = vrot.slane %v3912, %v3925
  %v3927 = vcombine.high %v3903, 0.0
  %v3928 = vcombine.high %v3910, 0.0
  %v3929 = vcombine.high %v3919, 0.0
  %v3930 = vcombine.high %v3926, 0.0
  %v3931 = vcombine.low %v3417, %v3494
  %v3932 = vcombine.high %v3417, %v3494
  %v3934 = vunpack.c.l.s4 1983009808
  %v3935 = vunpack.c.0.s8 %v3934
  %v3936 = vlaneseq
  %v3937 = vshrl.u32 %v3936, 7
  %v3938 = vsub.s32 %v3935, %v3937
  %v3939 = vrot.slane %v3931, %v3938
  %v3941 = vunpack.c.l.s4 1983009808
  %v3942 = vunpack.c.0.s8 %v3941
  %v3943 = vlaneseq
  %v3944 = vshrl.u32 %v3943, 7
  %v3945 = vsub.s32 %v3942, %v3944
  %v3946 = vrot.slane %v3932, %v3945
  %v3947 = vcombine.low %v3419, %v3496
  %v3948 = vcombine.high %v3419, %v3496
  %v3950 = vunpack.c.l.s4 1983009808
  %v3951 = vunpack.c.0.s8 %v3950
  %v3952 = vlaneseq
  %v3953 = vshrl.u32 %v3952, 7
  %v3954 = vsub.s32 %v3951, %v3953
  %v3955 = vrot.slane %v3947, %v3954
  %v3957 = vunpack.c.l.s4 1983009808
  %v3958 = vunpack.c.0.s8 %v3957
  %v3959 = vlaneseq
  %v3960 = vshrl.u32 %v3959, 7
  %v3961 = vsub.s32 %v3958, %v3960
  %v3962 = vrot.slane %v3948, %v3961
  %v3963 = vcombine.low %v3571, %v3648
  %v3964 = vcombine.high %v3571, %v3648
  %v3966 = vunpack.c.l.s4 1983009808
  %v3967 = vunpack.c.0.s8 %v3966
  %v3968 = vlaneseq
  %v3969 = vshrl.u32 %v3968, 7
  %v3970 = vsub.s32 %v3967, %v3969
  %v3971 = vrot.slane %v3963, %v3970
  %v3973 = vunpack.c.l.s4 1983009808
  %v3974 = vunpack.c.0.s8 %v3973
  %v3975 = vlaneseq
  %v3976 = vshrl.u32 %v3975, 7
  %v3977 = vsub.s32 %v3974, %v3976
  %v3978 = vrot.slane %v3964, %v3977
  %v3979 = vcombine.low %v3573, %v3650
  %v3980 = vcombine.high %v3573, %v3650
  %v3982 = vunpack.c.l.s4 1983009808
  %v3983 = vunpack.c.0.s8 %v3982
  %v3984 = vlaneseq
  %v3985 = vshrl.u32 %v3984, 7
  %v3986 = vsub.s32 %v3983, %v3985
  %v3987 = vrot.slane %v3979, %v3986
  %v3989 = vunpack.c.l.s4 1983009808
  %v3990 = vunpack.c.0.s8 %v3989
  %v3991 = vlaneseq
  %v3992 = vshrl.u32 %v3991, 7
  %v3993 = vsub.s32 %v3990, %v3992
  %v3994 = vrot.slane %v3980, %v3993
  %v3995 = vcombine.low %v3939, %v3955
  %v3996 = vcombine.high %v3939, %v3955
  %v3998 = vunpack.c.l.s4 1934713408
  %v3999 = vunpack.c.0.s8 %v3998
  %v4000 = vlaneseq
  %v4001 = vshrl.u32 %v4000, 7
  %v4002 = vsub.s32 %v3999, %v4001
  %v4003 = vrot.slane %v3995, %v4002
  %v4005 = vunpack.c.l.s4 1934713408
  %v4006 = vunpack.c.0.s8 %v4005
  %v4007 = vlaneseq
  %v4008 = vshrl.u32 %v4007, 7
  %v4009 = vsub.s32 %v4006, %v4008
  %v4010 = vrot.slane %v3996, %v4009
  %v4011 = vcombine.low %v3946, %v3962
  %v4012 = vcombine.high %v3946, %v3962
  %v4014 = vunpack.c.l.s4 1934713408
  %v4015 = vunpack.c.0.s8 %v4014
  %v4016 = vlaneseq
  %v4017 = vshrl.u32 %v4016, 7
  %v4018 = vsub.s32 %v4015, %v4017
  %v4019 = vrot.slane %v4011, %v4018
  %v4021 = vunpack.c.l.s4 1934713408
  %v4022 = vunpack.c.0.s8 %v4021
  %v4023 = vlaneseq
  %v4024 = vshrl.u32 %v4023, 7
  %v4025 = vsub.s32 %v4022, %v4024
  %v4026 = vrot.slane %v4012, %v4025
  %v4027 = vcombine.low %v3971, %v3987
  %v4028 = vcombine.high %v3971, %v3987
  %v4030 = vunpack.c.l.s4 1934713408
  %v4031 = vunpack.c.0.s8 %v4030
  %v4032 = vlaneseq
  %v4033 = vshrl.u32 %v4032, 7
  %v4034 = vsub.s32 %v4031, %v4033
  %v4035 = vrot.slane %v4027, %v4034
  %v4037 = vunpack.c.l.s4 1934713408
  %v4038 = vunpack.c.0.s8 %v4037
  %v4039 = vlaneseq
  %v4040 = vshrl.u32 %v4039, 7
  %v4041 = vsub.s32 %v4038, %v4040
  %v4042 = vrot.slane %v4028, %v4041
  %v4043 = vcombine.low %v3978, %v3994
  %v4044 = vcombine.high %v3978, %v3994
  %v4046 = vunpack.c.l.s4 1934713408
  %v4047 = vunpack.c.0.s8 %v4046
  %v4048 = vlaneseq
  %v4049 = vshrl.u32 %v4048, 7
  %v4050 = vsub.s32 %v4047, %v4049
  %v4051 = vrot.slane %v4043, %v4050
  %v4053 = vunpack.c.l.s4 1934713408
  %v4054 = vunpack.c.0.s8 %v4053
  %v4055 = vlaneseq
  %v4056 = vshrl.u32 %v4055, 7
  %v4057 = vsub.s32 %v4054, %v4056
  %v4058 = vrot.slane %v4044, %v4057
  %v4059 = vcombine.low %v4003, %v4035
  %v4060 = vcombine.high %v4003, %v4035
  %v4061 = vcombine.low %v4010, %v4042
  %v4062 = vcombine.high %v4010, %v4042
  %v4063 = vcombine.low %v4019, %v4051
  %v4064 = vcombine.high %v4019, %v4051
  %v4065 = vcombine.low %v4026, %v4058
  %v4066 = vcombine.high %v4026, %v4058
  %v4067 = vcombine.high %v3725, 0.0
  %v4069 = vunpack.c.l.s4 1983009808
  %v4070 = vunpack.c.0.s8 %v4069
  %v4071 = vlaneseq
  %v4072 = vshrl.u32 %v4071, 7
  %v4073 = vsub.s32 %v4070, %v4072
  %v4074 = vrot.slane %v3725, %v4073
  %v4076 = vunpack.c.l.s4 1983009808
  %v4077 = vunpack.c.0.s8 %v4076
  %v4078 = vlaneseq
  %v4079 = vshrl.u32 %v4078, 7
  %v4080 = vsub.s32 %v4077, %v4079
  %v4081 = vrot.slane %v4067, %v4080
  %v4082 = vcombine.high %v3727, 0.0
  %v4084 = vunpack.c.l.s4 1983009808
  %v4085 = vunpack.c.0.s8 %v4084
  %v4086 = vlaneseq
  %v4087 = vshrl.u32 %v4086, 7
  %v4088 = vsub.s32 %v4085, %v4087
  %v4089 = vrot.slane %v3727, %v4088
  %v4091 = vunpack.c.l.s4 1983009808
  %v4092 = vunpack.c.0.s8 %v4091
  %v4093 = vlaneseq
  %v4094 = vshrl.u32 %v4093, 7
  %v4095 = vsub.s32 %v4092, %v4094
  %v4096 = vrot.slane %v4082, %v4095
  %v4097 = vcombine.low %v4074, %v4089
  %v4098 = vcombine.high %v4074, %v4089
  %v4100 = vunpack.c.l.s4 1934713408
  %v4101 = vunpack.c.0.s8 %v4100
  %v4102 = vlaneseq
  %v4103 = vshrl.u32 %v4102, 7
  %v4104 = vsub.s32 %v4101, %v4103
  %v4105 = vrot.slane %v4097, %v4104
  %v4107 = vunpack.c.l.s4 1934713408
  %v4108 = vunpack.c.0.s8 %v4107
  %v4109 = vlaneseq
  %v4110 = vshrl.u32 %v4109, 7
  %v4111 = vsub.s32 %v4108, %v4110
  %v4112 = vrot.slane %v4098, %v4111
  %v4113 = vcombine.low %v4081, %v4096
  %v4114 = vcombine.high %v4081, %v4096
  %v4116 = vunpack.c.l.s4 1934713408
  %v4117 = vunpack.c.0.s8 %v4116
  %v4118 = vlaneseq
  %v4119 = vshrl.u32 %v4118, 7
  %v4120 = vsub.s32 %v4117, %v4119
  %v4121 = vrot.slane %v4113, %v4120
  %v4123 = vunpack.c.l.s4 1934713408
  %v4124 = vunpack.c.0.s8 %v4123
  %v4125 = vlaneseq
  %v4126 = vshrl.u32 %v4125, 7
  %v4127 = vsub.s32 %v4124, %v4126
  %v4128 = vrot.slane %v4114, %v4127
  %v4129 = vcombine.high %v4105, 0.0
  %v4130 = vcombine.high %v4112, 0.0
  %v4131 = vcombine.high %v4121, 0.0
  %v4132 = vcombine.high %v4128, 0.0
  %v4133 = vadd.f32 %v112, %v3857
  %v4134 = vadd.f32 %v112, %v3903
  %v4135 = vadd.f32 %v116, %v3858
  %v4136 = vadd.f32 %v116, %v3927
  %v4137 = vadd.f32 %v120, %v3859
  %v4138 = vadd.f32 %v120, %v3910
  %v4139 = vadd.f32 %v124, %v3860
  %v4140 = vadd.f32 %v124, %v3928
  %v4141 = vadd.f32 %v128, %v3861
  %v4142 = vadd.f32 %v128, %v3919
  %v4143 = vadd.f32 %v132, %v3862
  %v4144 = vadd.f32 %v132, %v3929
  %v4145 = vadd.f32 %v136, %v3863
  %v4146 = vadd.f32 %v136, %v3926
  %v4147 = vadd.f32 %v140, %v3864
  %v4148 = vadd.f32 %v140, %v3930
  %v4149 = vadd.f32 %v144, %v4059
  %v4150 = vadd.f32 %v144, %v4105
  %v4151 = vadd.f32 %v148, %v4060
  %v4152 = vadd.f32 %v148, %v4129
  %v4153 = vadd.f32 %v152, %v4061
  %v4154 = vadd.f32 %v152, %v4112
  %v4155 = vadd.f32 %v156, %v4062
  %v4156 = vadd.f32 %v156, %v4130
  %v4157 = vadd.f32 %v160, %v4063
  %v4158 = vadd.f32 %v160, %v4121
  %v4159 = vadd.f32 %v164, %v4064
  %v4160 = vadd.f32 %v164, %v4131
  %v4161 = vadd.f32 %v168, %v4065
  %v4162 = vadd.f32 %v168, %v4128
  %v4163 = vadd.f32 %v172, %v4066
  %v4164 = vadd.f32 %v172, %v4132
  %v4165 = vld [vmem:[%s1154] sm:$0xff]
  %v4166 = vld [vmem:[%s1154 + $0x8] sm:$0xff]
  %v4167 = vld [vmem:[%s3206 + $0x1] sm:$0xff]
  %v4168 = vld [vmem:[%s3206 + $0x9] sm:$0x3]
  %v4169 = vld [vmem:[%s3206 + $0x11] sm:$0xff]
  %v4170 = vld [vmem:[%s3206 + $0x19] sm:$0x3]
  %v4171 = vld [vmem:[%s3206 + $0x21] sm:$0xff]
  %v4172 = vld [vmem:[%s3206 + $0x29] sm:$0x3]
  %v4173 = vld [vmem:[%s3206 + $0x31] sm:$0xff]
  %v4174 = vld [vmem:[%s3206 + $0x39] sm:$0x3]
  %v4175 = vcombine.low %v4167, %v4171
  %v4176 = vcombine.high %v4167, %v4171
  %v4178 = vunpack.c.l.s4 1983009808
  %v4179 = vunpack.c.0.s8 %v4178
  %v4180 = vlaneseq
  %v4181 = vshrl.u32 %v4180, 7
  %v4182 = vsub.s32 %v4179, %v4181
  %v4183 = vrot.slane %v4175, %v4182
  %v4185 = vunpack.c.l.s4 1983009808
  %v4186 = vunpack.c.0.s8 %v4185
  %v4187 = vlaneseq
  %v4188 = vshrl.u32 %v4187, 7
  %v4189 = vsub.s32 %v4186, %v4188
  %v4190 = vrot.slane %v4176, %v4189
  %v4191 = vcombine.low %v4169, %v4173
  %v4192 = vcombine.high %v4169, %v4173
  %v4194 = vunpack.c.l.s4 1983009808
  %v4195 = vunpack.c.0.s8 %v4194
  %v4196 = vlaneseq
  %v4197 = vshrl.u32 %v4196, 7
  %v4198 = vsub.s32 %v4195, %v4197
  %v4199 = vrot.slane %v4191, %v4198
  %v4201 = vunpack.c.l.s4 1983009808
  %v4202 = vunpack.c.0.s8 %v4201
  %v4203 = vlaneseq
  %v4204 = vshrl.u32 %v4203, 7
  %v4205 = vsub.s32 %v4202, %v4204
  %v4206 = vrot.slane %v4192, %v4205
  %v4207 = vcombine.low %v4183, %v4199
  %v4208 = vcombine.high %v4183, %v4199
  %v4210 = vunpack.c.l.s4 1934713408
  %v4211 = vunpack.c.0.s8 %v4210
  %v4212 = vlaneseq
  %v4213 = vshrl.u32 %v4212, 7
  %v4214 = vsub.s32 %v4211, %v4213
  %v4215 = vrot.slane %v4207, %v4214
  %v4217 = vunpack.c.l.s4 1934713408
  %v4218 = vunpack.c.0.s8 %v4217
  %v4219 = vlaneseq
  %v4220 = vshrl.u32 %v4219, 7
  %v4221 = vsub.s32 %v4218, %v4220
  %v4222 = vrot.slane %v4208, %v4221
  %v4223 = vcombine.low %v4190, %v4206
  %v4224 = vcombine.high %v4190, %v4206
  %v4226 = vunpack.c.l.s4 1934713408
  %v4227 = vunpack.c.0.s8 %v4226
  %v4228 = vlaneseq
  %v4229 = vshrl.u32 %v4228, 7
  %v4230 = vsub.s32 %v4227, %v4229
  %v4231 = vrot.slane %v4223, %v4230
  %v4233 = vunpack.c.l.s4 1934713408
  %v4234 = vunpack.c.0.s8 %v4233
  %v4235 = vlaneseq
  %v4236 = vshrl.u32 %v4235, 7
  %v4237 = vsub.s32 %v4234, %v4236
  %v4238 = vrot.slane %v4224, %v4237
  %v4239 = vcombine.high %v4215, 0.0
  %v4240 = vcombine.high %v4222, 0.0
  %v4241 = vcombine.high %v4231, 0.0
  %v4242 = vcombine.high %v4238, 0.0
  %v4243 = vcombine.low %v4168, %v4172
  %v4245 = vunpack.c.l.s4 1983009808
  %v4246 = vunpack.c.0.s8 %v4245
  %v4247 = vlaneseq
  %v4248 = vshrl.u32 %v4247, 7
  %v4249 = vsub.s32 %v4246, %v4248
  %v4250 = vrot.slane %v4243, %v4249
  %v4251 = vcombine.low %v4170, %v4174
  %v4253 = vunpack.c.l.s4 1983009808
  %v4254 = vunpack.c.0.s8 %v4253
  %v4255 = vlaneseq
  %v4256 = vshrl.u32 %v4255, 7
  %v4257 = vsub.s32 %v4254, %v4256
  %v4258 = vrot.slane %v4251, %v4257
  %v4259 = vcombine.low %v4250, %v4258
  %v4261 = vunpack.c.l.s4 1934713408
  %v4262 = vunpack.c.0.s8 %v4261
  %v4263 = vlaneseq
  %v4264 = vshrl.u32 %v4263, 7
  %v4265 = vsub.s32 %v4262, %v4264
  %v4266 = vrot.slane %v4259, %v4265
  %v4267 = vcombine.high %v4266, 0.0
  %v4269 = vsel %vm295, %v4165, 0
  %v4272 = vsel %vm295, %v4166, 0
  %v4275 = vsel %vm302, %v4215, 0
  %v4278 = vsel %vm302, %v4239, 0
  %v4281 = vsel %vm302, %v4222, 0
  %v4284 = vsel %vm302, %v4240, 0
  %v4287 = vsel %vm302, %v4231, 0
  %v4290 = vsel %vm302, %v4241, 0
  %v4293 = vsel %vm302, %v4238, 0
  %v4296 = vsel %vm302, %v4242, 0
  %v4299 = vsel %vm302, %v4266, 0
  %v4302 = vsel %vm302, %v4267, 0
  %4304 = vmatprep.subr.mxu0 %v4278
  %4305 = vmatpush1.msra.mxu0 %v4275
  %4306 = vmatprep.subr.mxu0 0.0
  %4307 = vmatpush1.msra.mxu0 0.0
  %4308 = vmatprep.subr.mxu0 0.0
  %4309 = vmatpush1.msra.mxu0 0.0
  %4310 = vmatprep.subr.mxu0 0.0
  %4311 = vmatpush1.msra.mxu0 0.0
  %4312 = vmatprep.subr.mxu0 0.0
  %4313 = vmatpush1.msra.mxu0 0.0
  %4314 = vmatprep.subr.mxu0 0.0
  %4315 = vmatpush1.msra.mxu0 0.0
  %4316 = vmatprep.subr.mxu0 0.0
  %4317 = vmatpush1.msra.mxu0 0.0
  %4318 = vmatprep.subr.mxu0 0.0
  %4319 = vmatpush1.msra.mxu0 0.0
  %4320 = vmatprep.subr.mxu0 0.0
  %4321 = vmatpush1.msra.mxu0 0.0
  %4322 = vmatprep.subr.mxu0 0.0
  %4323 = vmatpush1.msra.mxu0 0.0
  %4324 = vmatprep.subr.mxu0 0.0
  %4325 = vmatpush1.msra.mxu0 0.0
  %4326 = vmatprep.subr.mxu0 0.0
  %4327 = vmatpush1.msra.mxu0 0.0
  %4328 = vmatprep.subr.mxu0 0.0
  %4329 = vmatpush1.msra.mxu0 0.0
  %4330 = vmatprep.subr.mxu0 0.0
  %4331 = vmatpush1.msra.mxu0 0.0
  %4332 = vmatprep.subr.mxu0 0.0
  %4333 = vmatpush1.msra.mxu0 0.0
  %4334 = vmatprep.subr.mxu0 0.0
  %4335 = vmatpush1.msra.mxu0 0.0
  %4336 = vmatprep.subr.mxu0 0.0
  %4337 = vmatpush1.msra.mxu0 0.0
  %4338 = vmatprep.subr.mxu0 0.0
  %4339 = vmatpush1.msra.mxu0 0.0
  %4340 = vmatprep.subr.mxu0 0.0
  %4341 = vmatpush1.msra.mxu0 0.0
  %4342 = vmatprep.subr.mxu0 0.0
  %4343 = vmatpush1.msra.mxu0 0.0
  %4344 = vmatprep.subr.mxu0 0.0
  %4345 = vmatpush1.msra.mxu0 0.0
  %4346 = vmatprep.subr.mxu0 0.0
  %4347 = vmatpush1.msra.mxu0 0.0
  %4348 = vmatprep.subr.mxu0 0.0
  %4349 = vmatpush1.msra.mxu0 0.0
  %4350 = vmatprep.subr.mxu0 0.0
  %4351 = vmatpush1.msra.mxu0 0.0
  %4352 = vmatprep.subr.mxu0 0.0
  %4353 = vmatpush1.msra.mxu0 0.0
  %4354 = vmatprep.subr.mxu0 0.0
  %4355 = vmatpush1.msra.mxu0 0.0
  %4356 = vmatprep.subr.mxu0 0.0
  %4357 = vmatpush1.msra.mxu0 0.0
  %4358 = vmatprep.subr.mxu0 0.0
  %4359 = vmatpush1.msra.mxu0 0.0
  %4360 = vmatprep.subr.mxu0 0.0
  %4361 = vmatpush1.msra.mxu0 0.0
  %4362 = vmatprep.subr.mxu0 0.0
  %4363 = vmatpush1.msra.mxu0 0.0
  %4364 = vmatprep.subr.mxu0 0.0
  %4365 = vmatpush1.msra.mxu0 0.0
  %4366 = vmatprep.subr.mxu0 0.0
  %4367 = vmatpush1.msra.mxu0 0.0
  %4368 = vmatprep.mubr.f32.mxu0 0.0
  %4369 = vmatmul.mubr.f32.gmra.mrb[0].mxu0 %v4269
  %v4370 = vpop.f32.mrb[0].mxu0
  %v4371 = vadd.f32 %v293, %v4370
  %v4372 = vpop.f32.mrb[0].mxu0
  %v4373 = vadd.f32 %v294, %v4372
  %4374 = vmatprep.mubr.f32.mxu0 0.0
  %4375 = vmatmul.mubr.f32.gmra.mrb[0].mxu0 %v4272
  %v4376 = vpop.f32.mrb[0].mxu0
  %v4377 = vadd.f32 %v293, %v4376
  %v4378 = vpop.f32.mrb[0].mxu0
  %v4379 = vadd.f32 %v294, %v4378
  %4380 = vdwg.mxu0
  %4381 = vmatprep.subr.mxu0 %v4284
  %4382 = vmatpush1.msra.mxu0 %v4281
  %4383 = vmatprep.subr.mxu0 0.0
  %4384 = vmatpush1.msra.mxu0 0.0
  %4385 = vmatprep.subr.mxu0 0.0
  %4386 = vmatpush1.msra.mxu0 0.0
  %4387 = vmatprep.subr.mxu0 0.0
  %4388 = vmatpush1.msra.mxu0 0.0
  %4389 = vmatprep.subr.mxu0 0.0
  %4390 = vmatpush1.msra.mxu0 0.0
  %4391 = vmatprep.subr.mxu0 0.0
  %4392 = vmatpush1.msra.mxu0 0.0
  %4393 = vmatprep.subr.mxu0 0.0
  %4394 = vmatpush1.msra.mxu0 0.0
  %4395 = vmatprep.subr.mxu0 0.0
  %4396 = vmatpush1.msra.mxu0 0.0
  %4397 = vmatprep.subr.mxu0 0.0
  %4398 = vmatpush1.msra.mxu0 0.0
  %4399 = vmatprep.subr.mxu0 0.0
  %4400 = vmatpush1.msra.mxu0 0.0
  %4401 = vmatprep.subr.mxu0 0.0
  %4402 = vmatpush1.msra.mxu0 0.0
  %4403 = vmatprep.subr.mxu0 0.0
  %4404 = vmatpush1.msra.mxu0 0.0
  %4405 = vmatprep.subr.mxu0 0.0
  %4406 = vmatpush1.msra.mxu0 0.0
  %4407 = vmatprep.subr.mxu0 0.0
  %4408 = vmatpush1.msra.mxu0 0.0
  %4409 = vmatprep.subr.mxu0 0.0
  %4410 = vmatpush1.msra.mxu0 0.0
  %4411 = vmatprep.subr.mxu0 0.0
  %4412 = vmatpush1.msra.mxu0 0.0
  %4413 = vmatprep.subr.mxu0 0.0
  %4414 = vmatpush1.msra.mxu0 0.0
  %4415 = vmatprep.subr.mxu0 0.0
  %4416 = vmatpush1.msra.mxu0 0.0
  %4417 = vmatprep.subr.mxu0 0.0
  %4418 = vmatpush1.msra.mxu0 0.0
  %4419 = vmatprep.subr.mxu0 0.0
  %4420 = vmatpush1.msra.mxu0 0.0
  %4421 = vmatprep.subr.mxu0 0.0
  %4422 = vmatpush1.msra.mxu0 0.0
  %4423 = vmatprep.subr.mxu0 0.0
  %4424 = vmatpush1.msra.mxu0 0.0
  %4425 = vmatprep.subr.mxu0 0.0
  %4426 = vmatpush1.msra.mxu0 0.0
  %4427 = vmatprep.subr.mxu0 0.0
  %4428 = vmatpush1.msra.mxu0 0.0
  %4429 = vmatprep.subr.mxu0 0.0
  %4430 = vmatpush1.msra.mxu0 0.0
  %4431 = vmatprep.subr.mxu0 0.0
  %4432 = vmatpush1.msra.mxu0 0.0
  %4433 = vmatprep.subr.mxu0 0.0
  %4434 = vmatpush1.msra.mxu0 0.0
  %4435 = vmatprep.subr.mxu0 0.0
  %4436 = vmatpush1.msra.mxu0 0.0
  %4437 = vmatprep.subr.mxu0 0.0
  %4438 = vmatpush1.msra.mxu0 0.0
  %4439 = vmatprep.subr.mxu0 0.0
  %4440 = vmatpush1.msra.mxu0 0.0
  %4441 = vmatprep.subr.mxu0 0.0
  %4442 = vmatpush1.msra.mxu0 0.0
  %4443 = vmatprep.subr.mxu0 0.0
  %4444 = vmatpush1.msra.mxu0 0.0
  %4445 = vmatprep.mubr.f32.mxu0 0.0
  %4446 = vmatmul.mubr.f32.gmra.mrb[0].mxu0 %v4269
  %v4447 = vpop.f32.mrb[0].mxu0
  %v4448 = vadd.f32 0.0, %v4447
  %v4449 = vpop.f32.mrb[0].mxu0
  %v4450 = vadd.f32 0.0, %v4449
  %4451 = vmatprep.mubr.f32.mxu0 0.0
  %4452 = vmatmul.mubr.f32.gmra.mrb[0].mxu0 %v4272
  %v4453 = vpop.f32.mrb[0].mxu0
  %v4454 = vadd.f32 0.0, %v4453
  %v4455 = vpop.f32.mrb[0].mxu0
  %v4456 = vadd.f32 0.0, %v4455
  %4457 = vdwg.mxu0
  %4458 = vmatprep.subr.mxu0 %v4290
  %4459 = vmatpush1.msra.mxu0 %v4287
  %4460 = vmatprep.subr.mxu0 0.0
  %4461 = vmatpush1.msra.mxu0 0.0
  %4462 = vmatprep.subr.mxu0 0.0
  %4463 = vmatpush1.msra.mxu0 0.0
  %4464 = vmatprep.subr.mxu0 0.0
  %4465 = vmatpush1.msra.mxu0 0.0
  %4466 = vmatprep.subr.mxu0 0.0
  %4467 = vmatpush1.msra.mxu0 0.0
  %4468 = vmatprep.subr.mxu0 0.0
  %4469 = vmatpush1.msra.mxu0 0.0
  %4470 = vmatprep.subr.mxu0 0.0
  %4471 = vmatpush1.msra.mxu0 0.0
  %4472 = vmatprep.subr.mxu0 0.0
  %4473 = vmatpush1.msra.mxu0 0.0
  %4474 = vmatprep.subr.mxu0 0.0
  %4475 = vmatpush1.msra.mxu0 0.0
  %4476 = vmatprep.subr.mxu0 0.0
  %4477 = vmatpush1.msra.mxu0 0.0
  %4478 = vmatprep.subr.mxu0 0.0
  %4479 = vmatpush1.msra.mxu0 0.0
  %4480 = vmatprep.subr.mxu0 0.0
  %4481 = vmatpush1.msra.mxu0 0.0
  %4482 = vmatprep.subr.mxu0 0.0
  %4483 = vmatpush1.msra.mxu0 0.0
  %4484 = vmatprep.subr.mxu0 0.0
  %4485 = vmatpush1.msra.mxu0 0.0
  %4486 = vmatprep.subr.mxu0 0.0
  %4487 = vmatpush1.msra.mxu0 0.0
  %4488 = vmatprep.subr.mxu0 0.0
  %4489 = vmatpush1.msra.mxu0 0.0
  %4490 = vmatprep.subr.mxu0 0.0
  %4491 = vmatpush1.msra.mxu0 0.0
  %4492 = vmatprep.subr.mxu0 0.0
  %4493 = vmatpush1.msra.mxu0 0.0
  %4494 = vmatprep.subr.mxu0 0.0
  %4495 = vmatpush1.msra.mxu0 0.0
  %4496 = vmatprep.subr.mxu0 0.0
  %4497 = vmatpush1.msra.mxu0 0.0
  %4498 = vmatprep.subr.mxu0 0.0
  %4499 = vmatpush1.msra.mxu0 0.0
  %4500 = vmatprep.subr.mxu0 0.0
  %4501 = vmatpush1.msra.mxu0 0.0
  %4502 = vmatprep.subr.mxu0 0.0
  %4503 = vmatpush1.msra.mxu0 0.0
  %4504 = vmatprep.subr.mxu0 0.0
  %4505 = vmatpush1.msra.mxu0 0.0
  %4506 = vmatprep.subr.mxu0 0.0
  %4507 = vmatpush1.msra.mxu0 0.0
  %4508 = vmatprep.subr.mxu0 0.0
  %4509 = vmatpush1.msra.mxu0 0.0
  %4510 = vmatprep.subr.mxu0 0.0
  %4511 = vmatpush1.msra.mxu0 0.0
  %4512 = vmatprep.subr.mxu0 0.0
  %4513 = vmatpush1.msra.mxu0 0.0
  %4514 = vmatprep.subr.mxu0 0.0
  %4515 = vmatpush1.msra.mxu0 0.0
  %4516 = vmatprep.subr.mxu0 0.0
  %4517 = vmatpush1.msra.mxu0 0.0
  %4518 = vmatprep.subr.mxu0 0.0
  %4519 = vmatpush1.msra.mxu0 0.0
  %4520 = vmatprep.subr.mxu0 0.0
  %4521 = vmatpush1.msra.mxu0 0.0
  %4522 = vmatprep.mubr.f32.mxu0 0.0
  %4523 = vmatmul.mubr.f32.gmra.mrb[0].mxu0 %v4269
  %v4524 = vpop.f32.mrb[0].mxu0
  %v4525 = vadd.f32 0.0, %v4524
  %v4526 = vpop.f32.mrb[0].mxu0
  %v4527 = vadd.f32 0.0, %v4526
  %4528 = vmatprep.mubr.f32.mxu0 0.0
  %4529 = vmatmul.mubr.f32.gmra.mrb[0].mxu0 %v4272
  %v4530 = vpop.f32.mrb[0].mxu0
  %v4531 = vadd.f32 0.0, %v4530
  %v4532 = vpop.f32.mrb[0].mxu0
  %v4533 = vadd.f32 0.0, %v4532
  %4534 = vdwg.mxu0
  %4535 = vmatprep.subr.mxu0 %v4296
  %4536 = vmatpush1.msra.mxu0 %v4293
  %4537 = vmatprep.subr.mxu0 0.0
  %4538 = vmatpush1.msra.mxu0 0.0
  %4539 = vmatprep.subr.mxu0 0.0
  %4540 = vmatpush1.msra.mxu0 0.0
  %4541 = vmatprep.subr.mxu0 0.0
  %4542 = vmatpush1.msra.mxu0 0.0
  %4543 = vmatprep.subr.mxu0 0.0
  %4544 = vmatpush1.msra.mxu0 0.0
  %4545 = vmatprep.subr.mxu0 0.0
  %4546 = vmatpush1.msra.mxu0 0.0
  %4547 = vmatprep.subr.mxu0 0.0
  %4548 = vmatpush1.msra.mxu0 0.0
  %4549 = vmatprep.subr.mxu0 0.0
  %4550 = vmatpush1.msra.mxu0 0.0
  %4551 = vmatprep.subr.mxu0 0.0
  %4552 = vmatpush1.msra.mxu0 0.0
  %4553 = vmatprep.subr.mxu0 0.0
  %4554 = vmatpush1.msra.mxu0 0.0
  %4555 = vmatprep.subr.mxu0 0.0
  %4556 = vmatpush1.msra.mxu0 0.0
  %4557 = vmatprep.subr.mxu0 0.0
  %4558 = vmatpush1.msra.mxu0 0.0
  %4559 = vmatprep.subr.mxu0 0.0
  %4560 = vmatpush1.msra.mxu0 0.0
  %4561 = vmatprep.subr.mxu0 0.0
  %4562 = vmatpush1.msra.mxu0 0.0
  %4563 = vmatprep.subr.mxu0 0.0
  %4564 = vmatpush1.msra.mxu0 0.0
  %4565 = vmatprep.subr.mxu0 0.0
  %4566 = vmatpush1.msra.mxu0 0.0
  %4567 = vmatprep.subr.mxu0 0.0
  %4568 = vmatpush1.msra.mxu0 0.0
  %4569 = vmatprep.subr.mxu0 0.0
  %4570 = vmatpush1.msra.mxu0 0.0
  %4571 = vmatprep.subr.mxu0 0.0
  %4572 = vmatpush1.msra.mxu0 0.0
  %4573 = vmatprep.subr.mxu0 0.0
  %4574 = vmatpush1.msra.mxu0 0.0
  %4575 = vmatprep.subr.mxu0 0.0
  %4576 = vmatpush1.msra.mxu0 0.0
  %4577 = vmatprep.subr.mxu0 0.0
  %4578 = vmatpush1.msra.mxu0 0.0
  %4579 = vmatprep.subr.mxu0 0.0
  %4580 = vmatpush1.msra.mxu0 0.0
  %4581 = vmatprep.subr.mxu0 0.0
  %4582 = vmatpush1.msra.mxu0 0.0
  %4583 = vmatprep.subr.mxu0 0.0
  %4584 = vmatpush1.msra.mxu0 0.0
  %4585 = vmatprep.subr.mxu0 0.0
  %4586 = vmatpush1.msra.mxu0 0.0
  %4587 = vmatprep.subr.mxu0 0.0
  %4588 = vmatpush1.msra.mxu0 0.0
  %4589 = vmatprep.subr.mxu0 0.0
  %4590 = vmatpush1.msra.mxu0 0.0
  %4591 = vmatprep.subr.mxu0 0.0
  %4592 = vmatpush1.msra.mxu0 0.0
  %4593 = vmatprep.subr.mxu0 0.0
  %4594 = vmatpush1.msra.mxu0 0.0
  %4595 = vmatprep.subr.mxu0 0.0
  %4596 = vmatpush1.msra.mxu0 0.0
  %4597 = vmatprep.subr.mxu0 0.0
  %4598 = vmatpush1.msra.mxu0 0.0
  %4599 = vmatprep.mubr.f32.mxu0 0.0
  %4600 = vmatmul.mubr.f32.gmra.mrb[0].mxu0 %v4269
  %v4601 = vpop.f32.mrb[0].mxu0
  %v4602 = vadd.f32 0.0, %v4601
  %v4603 = vpop.f32.mrb[0].mxu0
  %v4604 = vadd.f32 0.0, %v4603
  %4605 = vmatprep.mubr.f32.mxu0 0.0
  %4606 = vmatmul.mubr.f32.gmra.mrb[0].mxu0 %v4272
  %v4607 = vpop.f32.mrb[0].mxu0
  %v4608 = vadd.f32 0.0, %v4607
  %v4609 = vpop.f32.mrb[0].mxu0
  %v4610 = vadd.f32 0.0, %v4609
  %4611 = vdwg.mxu0
  %4612 = vmatprep.subr.mxu0 %v4302
  %4613 = vmatpush1.msra.mxu0 %v4299
  %4614 = vmatprep.subr.mxu0 0.0
  %4615 = vmatpush1.msra.mxu0 0.0
  %4616 = vmatprep.subr.mxu0 0.0
  %4617 = vmatpush1.msra.mxu0 0.0
  %4618 = vmatprep.subr.mxu0 0.0
  %4619 = vmatpush1.msra.mxu0 0.0
  %4620 = vmatprep.subr.mxu0 0.0
  %4621 = vmatpush1.msra.mxu0 0.0
  %4622 = vmatprep.subr.mxu0 0.0
  %4623 = vmatpush1.msra.mxu0 0.0
  %4624 = vmatprep.subr.mxu0 0.0
  %4625 = vmatpush1.msra.mxu0 0.0
  %4626 = vmatprep.subr.mxu0 0.0
  %4627 = vmatpush1.msra.mxu0 0.0
  %4628 = vmatprep.subr.mxu0 0.0
  %4629 = vmatpush1.msra.mxu0 0.0
  %4630 = vmatprep.subr.mxu0 0.0
  %4631 = vmatpush1.msra.mxu0 0.0
  %4632 = vmatprep.subr.mxu0 0.0
  %4633 = vmatpush1.msra.mxu0 0.0
  %4634 = vmatprep.subr.mxu0 0.0
  %4635 = vmatpush1.msra.mxu0 0.0
  %4636 = vmatprep.subr.mxu0 0.0
  %4637 = vmatpush1.msra.mxu0 0.0
  %4638 = vmatprep.subr.mxu0 0.0
  %4639 = vmatpush1.msra.mxu0 0.0
  %4640 = vmatprep.subr.mxu0 0.0
  %4641 = vmatpush1.msra.mxu0 0.0
  %4642 = vmatprep.subr.mxu0 0.0
  %4643 = vmatpush1.msra.mxu0 0.0
  %4644 = vmatprep.subr.mxu0 0.0
  %4645 = vmatpush1.msra.mxu0 0.0
  %4646 = vmatprep.subr.mxu0 0.0
  %4647 = vmatpush1.msra.mxu0 0.0
  %4648 = vmatprep.subr.mxu0 0.0
  %4649 = vmatpush1.msra.mxu0 0.0
  %4650 = vmatprep.subr.mxu0 0.0
  %4651 = vmatpush1.msra.mxu0 0.0
  %4652 = vmatprep.subr.mxu0 0.0
  %4653 = vmatpush1.msra.mxu0 0.0
  %4654 = vmatprep.subr.mxu0 0.0
  %4655 = vmatpush1.msra.mxu0 0.0
  %4656 = vmatprep.subr.mxu0 0.0
  %4657 = vmatpush1.msra.mxu0 0.0
  %4658 = vmatprep.subr.mxu0 0.0
  %4659 = vmatpush1.msra.mxu0 0.0
  %4660 = vmatprep.subr.mxu0 0.0
  %4661 = vmatpush1.msra.mxu0 0.0
  %4662 = vmatprep.subr.mxu0 0.0
  %4663 = vmatpush1.msra.mxu0 0.0
  %4664 = vmatprep.subr.mxu0 0.0
  %4665 = vmatpush1.msra.mxu0 0.0
  %4666 = vmatprep.subr.mxu0 0.0
  %4667 = vmatpush1.msra.mxu0 0.0
  %4668 = vmatprep.subr.mxu0 0.0
  %4669 = vmatpush1.msra.mxu0 0.0
  %4670 = vmatprep.subr.mxu0 0.0
  %4671 = vmatpush1.msra.mxu0 0.0
  %4672 = vmatprep.subr.mxu0 0.0
  %4673 = vmatpush1.msra.mxu0 0.0
  %4674 = vmatprep.subr.mxu0 0.0
  %4675 = vmatpush1.msra.mxu0 0.0
  %4676 = vmatprep.mubr.f32.mxu0 0.0
  %4677 = vmatmul.mubr.f32.gmra.mrb[0].mxu0 %v4269
  %v4678 = vpop.f32.mrb[0].mxu0
  %v4679 = vadd.f32 %v293, %v4678
  %v4680 = vpop.f32.mrb[0].mxu0
  %v4681 = vadd.f32 %v294, %v4680
  %4682 = vmatprep.mubr.f32.mxu0 0.0
  %4683 = vmatmul.mubr.f32.gmra.mrb[0].mxu0 %v4272
  %v4684 = vpop.f32.mrb[0].mxu0
  %v4685 = vadd.f32 %v293, %v4684
  %v4686 = vpop.f32.mrb[0].mxu0
  %v4687 = vadd.f32 %v294, %v4686
  %4688 = vdwg.mxu0
  %v4689 = vcombine.low %v4371, %v4448
  %v4690 = vcombine.high %v4371, %v4448
  %v4692 = vunpack.c.l.s4 1983009808
  %v4693 = vunpack.c.0.s8 %v4692
  %v4694 = vlaneseq
  %v4695 = vshrl.u32 %v4694, 7
  %v4696 = vsub.s32 %v4693, %v4695
  %v4697 = vrot.slane %v4689, %v4696
  %v4699 = vunpack.c.l.s4 1983009808
  %v4700 = vunpack.c.0.s8 %v4699
  %v4701 = vlaneseq
  %v4702 = vshrl.u32 %v4701, 7
  %v4703 = vsub.s32 %v4700, %v4702
  %v4704 = vrot.slane %v4690, %v4703
  %v4705 = vcombine.low %v4373, %v4450
  %v4706 = vcombine.high %v4373, %v4450
  %v4708 = vunpack.c.l.s4 1983009808
  %v4709 = vunpack.c.0.s8 %v4708
  %v4710 = vlaneseq
  %v4711 = vshrl.u32 %v4710, 7
  %v4712 = vsub.s32 %v4709, %v4711
  %v4713 = vrot.slane %v4705, %v4712
  %v4715 = vunpack.c.l.s4 1983009808
  %v4716 = vunpack.c.0.s8 %v4715
  %v4717 = vlaneseq
  %v4718 = vshrl.u32 %v4717, 7
  %v4719 = vsub.s32 %v4716, %v4718
  %v4720 = vrot.slane %v4706, %v4719
  %v4721 = vcombine.low %v4525, %v4602
  %v4722 = vcombine.high %v4525, %v4602
  %v4724 = vunpack.c.l.s4 1983009808
  %v4725 = vunpack.c.0.s8 %v4724
  %v4726 = vlaneseq
  %v4727 = vshrl.u32 %v4726, 7
  %v4728 = vsub.s32 %v4725, %v4727
  %v4729 = vrot.slane %v4721, %v4728
  %v4731 = vunpack.c.l.s4 1983009808
  %v4732 = vunpack.c.0.s8 %v4731
  %v4733 = vlaneseq
  %v4734 = vshrl.u32 %v4733, 7
  %v4735 = vsub.s32 %v4732, %v4734
  %v4736 = vrot.slane %v4722, %v4735
  %v4737 = vcombine.low %v4527, %v4604
  %v4738 = vcombine.high %v4527, %v4604
  %v4740 = vunpack.c.l.s4 1983009808
  %v4741 = vunpack.c.0.s8 %v4740
  %v4742 = vlaneseq
  %v4743 = vshrl.u32 %v4742, 7
  %v4744 = vsub.s32 %v4741, %v4743
  %v4745 = vrot.slane %v4737, %v4744
  %v4747 = vunpack.c.l.s4 1983009808
  %v4748 = vunpack.c.0.s8 %v4747
  %v4749 = vlaneseq
  %v4750 = vshrl.u32 %v4749, 7
  %v4751 = vsub.s32 %v4748, %v4750
  %v4752 = vrot.slane %v4738, %v4751
  %v4753 = vcombine.low %v4697, %v4713
  %v4754 = vcombine.high %v4697, %v4713
  %v4756 = vunpack.c.l.s4 1934713408
  %v4757 = vunpack.c.0.s8 %v4756
  %v4758 = vlaneseq
  %v4759 = vshrl.u32 %v4758, 7
  %v4760 = vsub.s32 %v4757, %v4759
  %v4761 = vrot.slane %v4753, %v4760
  %v4763 = vunpack.c.l.s4 1934713408
  %v4764 = vunpack.c.0.s8 %v4763
  %v4765 = vlaneseq
  %v4766 = vshrl.u32 %v4765, 7
  %v4767 = vsub.s32 %v4764, %v4766
  %v4768 = vrot.slane %v4754, %v4767
  %v4769 = vcombine.low %v4704, %v4720
  %v4770 = vcombine.high %v4704, %v4720
  %v4772 = vunpack.c.l.s4 1934713408
  %v4773 = vunpack.c.0.s8 %v4772
  %v4774 = vlaneseq
  %v4775 = vshrl.u32 %v4774, 7
  %v4776 = vsub.s32 %v4773, %v4775
  %v4777 = vrot.slane %v4769, %v4776
  %v4779 = vunpack.c.l.s4 1934713408
  %v4780 = vunpack.c.0.s8 %v4779
  %v4781 = vlaneseq
  %v4782 = vshrl.u32 %v4781, 7
  %v4783 = vsub.s32 %v4780, %v4782
  %v4784 = vrot.slane %v4770, %v4783
  %v4785 = vcombine.low %v4729, %v4745
  %v4786 = vcombine.high %v4729, %v4745
  %v4788 = vunpack.c.l.s4 1934713408
  %v4789 = vunpack.c.0.s8 %v4788
  %v4790 = vlaneseq
  %v4791 = vshrl.u32 %v4790, 7
  %v4792 = vsub.s32 %v4789, %v4791
  %v4793 = vrot.slane %v4785, %v4792
  %v4795 = vunpack.c.l.s4 1934713408
  %v4796 = vunpack.c.0.s8 %v4795
  %v4797 = vlaneseq
  %v4798 = vshrl.u32 %v4797, 7
  %v4799 = vsub.s32 %v4796, %v4798
  %v4800 = vrot.slane %v4786, %v4799
  %v4801 = vcombine.low %v4736, %v4752
  %v4802 = vcombine.high %v4736, %v4752
  %v4804 = vunpack.c.l.s4 1934713408
  %v4805 = vunpack.c.0.s8 %v4804
  %v4806 = vlaneseq
  %v4807 = vshrl.u32 %v4806, 7
  %v4808 = vsub.s32 %v4805, %v4807
  %v4809 = vrot.slane %v4801, %v4808
  %v4811 = vunpack.c.l.s4 1934713408
  %v4812 = vunpack.c.0.s8 %v4811
  %v4813 = vlaneseq
  %v4814 = vshrl.u32 %v4813, 7
  %v4815 = vsub.s32 %v4812, %v4814
  %v4816 = vrot.slane %v4802, %v4815
  %v4817 = vcombine.low %v4761, %v4793
  %v4818 = vcombine.high %v4761, %v4793
  %v4819 = vcombine.low %v4768, %v4800
  %v4820 = vcombine.high %v4768, %v4800
  %v4821 = vcombine.low %v4777, %v4809
  %v4822 = vcombine.high %v4777, %v4809
  %v4823 = vcombine.low %v4784, %v4816
  %v4824 = vcombine.high %v4784, %v4816
  %v4825 = vcombine.high %v4679, 0.0
  %v4827 = vunpack.c.l.s4 1983009808
  %v4828 = vunpack.c.0.s8 %v4827
  %v4829 = vlaneseq
  %v4830 = vshrl.u32 %v4829, 7
  %v4831 = vsub.s32 %v4828, %v4830
  %v4832 = vrot.slane %v4679, %v4831
  %v4834 = vunpack.c.l.s4 1983009808
  %v4835 = vunpack.c.0.s8 %v4834
  %v4836 = vlaneseq
  %v4837 = vshrl.u32 %v4836, 7
  %v4838 = vsub.s32 %v4835, %v4837
  %v4839 = vrot.slane %v4825, %v4838
  %v4840 = vcombine.high %v4681, 0.0
  %v4842 = vunpack.c.l.s4 1983009808
  %v4843 = vunpack.c.0.s8 %v4842
  %v4844 = vlaneseq
  %v4845 = vshrl.u32 %v4844, 7
  %v4846 = vsub.s32 %v4843, %v4845
  %v4847 = vrot.slane %v4681, %v4846
  %v4849 = vunpack.c.l.s4 1983009808
  %v4850 = vunpack.c.0.s8 %v4849
  %v4851 = vlaneseq
  %v4852 = vshrl.u32 %v4851, 7
  %v4853 = vsub.s32 %v4850, %v4852
  %v4854 = vrot.slane %v4840, %v4853
  %v4855 = vcombine.low %v4832, %v4847
  %v4856 = vcombine.high %v4832, %v4847
  %v4858 = vunpack.c.l.s4 1934713408
  %v4859 = vunpack.c.0.s8 %v4858
  %v4860 = vlaneseq
  %v4861 = vshrl.u32 %v4860, 7
  %v4862 = vsub.s32 %v4859, %v4861
  %v4863 = vrot.slane %v4855, %v4862
  %v4865 = vunpack.c.l.s4 1934713408
  %v4866 = vunpack.c.0.s8 %v4865
  %v4867 = vlaneseq
  %v4868 = vshrl.u32 %v4867, 7
  %v4869 = vsub.s32 %v4866, %v4868
  %v4870 = vrot.slane %v4856, %v4869
  %v4871 = vcombine.low %v4839, %v4854
  %v4872 = vcombine.high %v4839, %v4854
  %v4874 = vunpack.c.l.s4 1934713408
  %v4875 = vunpack.c.0.s8 %v4874
  %v4876 = vlaneseq
  %v4877 = vshrl.u32 %v4876, 7
  %v4878 = vsub.s32 %v4875, %v4877
  %v4879 = vrot.slane %v4871, %v4878
  %v4881 = vunpack.c.l.s4 1934713408
  %v4882 = vunpack.c.0.s8 %v4881
  %v4883 = vlaneseq
  %v4884 = vshrl.u32 %v4883, 7
  %v4885 = vsub.s32 %v4882, %v4884
  %v4886 = vrot.slane %v4872, %v4885
  %v4887 = vcombine.high %v4863, 0.0
  %v4888 = vcombine.high %v4870, 0.0
  %v4889 = vcombine.high %v4879, 0.0
  %v4890 = vcombine.high %v4886, 0.0
  %v4891 = vcombine.low %v4377, %v4454
  %v4892 = vcombine.high %v4377, %v4454
  %v4894 = vunpack.c.l.s4 1983009808
  %v4895 = vunpack.c.0.s8 %v4894
  %v4896 = vlaneseq
  %v4897 = vshrl.u32 %v4896, 7
  %v4898 = vsub.s32 %v4895, %v4897
  %v4899 = vrot.slane %v4891, %v4898
  %v4901 = vunpack.c.l.s4 1983009808
  %v4902 = vunpack.c.0.s8 %v4901
  %v4903 = vlaneseq
  %v4904 = vshrl.u32 %v4903, 7
  %v4905 = vsub.s32 %v4902, %v4904
  %v4906 = vrot.slane %v4892, %v4905
  %v4907 = vcombine.low %v4379, %v4456
  %v4908 = vcombine.high %v4379, %v4456
  %v4910 = vunpack.c.l.s4 1983009808
  %v4911 = vunpack.c.0.s8 %v4910
  %v4912 = vlaneseq
  %v4913 = vshrl.u32 %v4912, 7
  %v4914 = vsub.s32 %v4911, %v4913
  %v4915 = vrot.slane %v4907, %v4914
  %v4917 = vunpack.c.l.s4 1983009808
  %v4918 = vunpack.c.0.s8 %v4917
  %v4919 = vlaneseq
  %v4920 = vshrl.u32 %v4919, 7
  %v4921 = vsub.s32 %v4918, %v4920
  %v4922 = vrot.slane %v4908, %v4921
  %v4923 = vcombine.low %v4531, %v4608
  %v4924 = vcombine.high %v4531, %v4608
  %v4926 = vunpack.c.l.s4 1983009808
  %v4927 = vunpack.c.0.s8 %v4926
  %v4928 = vlaneseq
  %v4929 = vshrl.u32 %v4928, 7
  %v4930 = vsub.s32 %v4927, %v4929
  %v4931 = vrot.slane %v4923, %v4930
  %v4933 = vunpack.c.l.s4 1983009808
  %v4934 = vunpack.c.0.s8 %v4933
  %v4935 = vlaneseq
  %v4936 = vshrl.u32 %v4935, 7
  %v4937 = vsub.s32 %v4934, %v4936
  %v4938 = vrot.slane %v4924, %v4937
  %v4939 = vcombine.low %v4533, %v4610
  %v4940 = vcombine.high %v4533, %v4610
  %v4942 = vunpack.c.l.s4 1983009808
  %v4943 = vunpack.c.0.s8 %v4942
  %v4944 = vlaneseq
  %v4945 = vshrl.u32 %v4944, 7
  %v4946 = vsub.s32 %v4943, %v4945
  %v4947 = vrot.slane %v4939, %v4946
  %v4949 = vunpack.c.l.s4 1983009808
  %v4950 = vunpack.c.0.s8 %v4949
  %v4951 = vlaneseq
  %v4952 = vshrl.u32 %v4951, 7
  %v4953 = vsub.s32 %v4950, %v4952
  %v4954 = vrot.slane %v4940, %v4953
  %v4955 = vcombine.low %v4899, %v4915
  %v4956 = vcombine.high %v4899, %v4915
  %v4958 = vunpack.c.l.s4 1934713408
  %v4959 = vunpack.c.0.s8 %v4958
  %v4960 = vlaneseq
  %v4961 = vshrl.u32 %v4960, 7
  %v4962 = vsub.s32 %v4959, %v4961
  %v4963 = vrot.slane %v4955, %v4962
  %v4965 = vunpack.c.l.s4 1934713408
  %v4966 = vunpack.c.0.s8 %v4965
  %v4967 = vlaneseq
  %v4968 = vshrl.u32 %v4967, 7
  %v4969 = vsub.s32 %v4966, %v4968
  %v4970 = vrot.slane %v4956, %v4969
  %v4971 = vcombine.low %v4906, %v4922
  %v4972 = vcombine.high %v4906, %v4922
  %v4974 = vunpack.c.l.s4 1934713408
  %v4975 = vunpack.c.0.s8 %v4974
  %v4976 = vlaneseq
  %v4977 = vshrl.u32 %v4976, 7
  %v4978 = vsub.s32 %v4975, %v4977
  %v4979 = vrot.slane %v4971, %v4978
  %v4981 = vunpack.c.l.s4 1934713408
  %v4982 = vunpack.c.0.s8 %v4981
  %v4983 = vlaneseq
  %v4984 = vshrl.u32 %v4983, 7
  %v4985 = vsub.s32 %v4982, %v4984
  %v4986 = vrot.slane %v4972, %v4985
  %v4987 = vcombine.low %v4931, %v4947
  %v4988 = vcombine.high %v4931, %v4947
  %v4990 = vunpack.c.l.s4 1934713408
  %v4991 = vunpack.c.0.s8 %v4990
  %v4992 = vlaneseq
  %v4993 = vshrl.u32 %v4992, 7
  %v4994 = vsub.s32 %v4991, %v4993
  %v4995 = vrot.slane %v4987, %v4994
  %v4997 = vunpack.c.l.s4 1934713408
  %v4998 = vunpack.c.0.s8 %v4997
  %v4999 = vlaneseq
  %v5000 = vshrl.u32 %v4999, 7
  %v5001 = vsub.s32 %v4998, %v5000
  %v5002 = vrot.slane %v4988, %v5001
  %v5003 = vcombine.low %v4938, %v4954
  %v5004 = vcombine.high %v4938, %v4954
  %v5006 = vunpack.c.l.s4 1934713408
  %v5007 = vunpack.c.0.s8 %v5006
  %v5008 = vlaneseq
  %v5009 = vshrl.u32 %v5008, 7
  %v5010 = vsub.s32 %v5007, %v5009
  %v5011 = vrot.slane %v5003, %v5010
  %v5013 = vunpack.c.l.s4 1934713408
  %v5014 = vunpack.c.0.s8 %v5013
  %v5015 = vlaneseq
  %v5016 = vshrl.u32 %v5015, 7
  %v5017 = vsub.s32 %v5014, %v5016
  %v5018 = vrot.slane %v5004, %v5017
  %v5019 = vcombine.low %v4963, %v4995
  %v5020 = vcombine.high %v4963, %v4995
  %v5021 = vcombine.low %v4970, %v5002
  %v5022 = vcombine.high %v4970, %v5002
  %v5023 = vcombine.low %v4979, %v5011
  %v5024 = vcombine.high %v4979, %v5011
  %v5025 = vcombine.low %v4986, %v5018
  %v5026 = vcombine.high %v4986, %v5018
  %v5027 = vcombine.high %v4685, 0.0
  %v5029 = vunpack.c.l.s4 1983009808
  %v5030 = vunpack.c.0.s8 %v5029
  %v5031 = vlaneseq
  %v5032 = vshrl.u32 %v5031, 7
  %v5033 = vsub.s32 %v5030, %v5032
  %v5034 = vrot.slane %v4685, %v5033
  %v5036 = vunpack.c.l.s4 1983009808
  %v5037 = vunpack.c.0.s8 %v5036
  %v5038 = vlaneseq
  %v5039 = vshrl.u32 %v5038, 7
  %v5040 = vsub.s32 %v5037, %v5039
  %v5041 = vrot.slane %v5027, %v5040
  %v5042 = vcombine.high %v4687, 0.0
  %v5044 = vunpack.c.l.s4 1983009808
  %v5045 = vunpack.c.0.s8 %v5044
  %v5046 = vlaneseq
  %v5047 = vshrl.u32 %v5046, 7
  %v5048 = vsub.s32 %v5045, %v5047
  %v5049 = vrot.slane %v4687, %v5048
  %v5051 = vunpack.c.l.s4 1983009808
  %v5052 = vunpack.c.0.s8 %v5051
  %v5053 = vlaneseq
  %v5054 = vshrl.u32 %v5053, 7
  %v5055 = vsub.s32 %v5052, %v5054
  %v5056 = vrot.slane %v5042, %v5055
  %v5057 = vcombine.low %v5034, %v5049
  %v5058 = vcombine.high %v5034, %v5049
  %v5060 = vunpack.c.l.s4 1934713408
  %v5061 = vunpack.c.0.s8 %v5060
  %v5062 = vlaneseq
  %v5063 = vshrl.u32 %v5062, 7
  %v5064 = vsub.s32 %v5061, %v5063
  %v5065 = vrot.slane %v5057, %v5064
  %v5067 = vunpack.c.l.s4 1934713408
  %v5068 = vunpack.c.0.s8 %v5067
  %v5069 = vlaneseq
  %v5070 = vshrl.u32 %v5069, 7
  %v5071 = vsub.s32 %v5068, %v5070
  %v5072 = vrot.slane %v5058, %v5071
  %v5073 = vcombine.low %v5041, %v5056
  %v5074 = vcombine.high %v5041, %v5056
  %v5076 = vunpack.c.l.s4 1934713408
  %v5077 = vunpack.c.0.s8 %v5076
  %v5078 = vlaneseq
  %v5079 = vshrl.u32 %v5078, 7
  %v5080 = vsub.s32 %v5077, %v5079
  %v5081 = vrot.slane %v5073, %v5080
  %v5083 = vunpack.c.l.s4 1934713408
  %v5084 = vunpack.c.0.s8 %v5083
  %v5085 = vlaneseq
  %v5086 = vshrl.u32 %v5085, 7
  %v5087 = vsub.s32 %v5084, %v5086
  %v5088 = vrot.slane %v5074, %v5087
  %v5089 = vcombine.high %v5065, 0.0
  %v5090 = vcombine.high %v5072, 0.0
  %v5091 = vcombine.high %v5081, 0.0
  %v5092 = vcombine.high %v5088, 0.0
  %v5093 = vadd.f32 %v4133, %v4817
  %v5094 = vadd.f32 %v4134, %v4863
  %v5095 = vadd.f32 %v4135, %v4818
  %v5096 = vadd.f32 %v4136, %v4887
  %v5097 = vadd.f32 %v4137, %v4819
  %v5098 = vadd.f32 %v4138, %v4870
  %v5099 = vadd.f32 %v4139, %v4820
  %v5100 = vadd.f32 %v4140, %v4888
  %v5101 = vadd.f32 %v4141, %v4821
  %v5102 = vadd.f32 %v4142, %v4879
  %v5103 = vadd.f32 %v4143, %v4822
  %v5104 = vadd.f32 %v4144, %v4889
  %v5105 = vadd.f32 %v4145, %v4823
  %v5106 = vadd.f32 %v4146, %v4886
  %v5107 = vadd.f32 %v4147, %v4824
  %v5108 = vadd.f32 %v4148, %v4890
  %v5109 = vadd.f32 %v4149, %v5019
  %v5110 = vadd.f32 %v4150, %v5065
  %v5111 = vadd.f32 %v4151, %v5020
  %v5112 = vadd.f32 %v4152, %v5089
  %v5113 = vadd.f32 %v4153, %v5021
  %v5114 = vadd.f32 %v4154, %v5072
  %v5115 = vadd.f32 %v4155, %v5022
  %v5116 = vadd.f32 %v4156, %v5090
  %v5117 = vadd.f32 %v4157, %v5023
  %v5118 = vadd.f32 %v4158, %v5081
  %v5119 = vadd.f32 %v4159, %v5024
  %v5120 = vadd.f32 %v4160, %v5091
  %v5121 = vadd.f32 %v4161, %v5025
  %v5122 = vadd.f32 %v4162, %v5088
  %v5123 = vadd.f32 %v4163, %v5026
  %v5124 = vadd.f32 %v4164, %v5092
  %v5125 = vld [vmem:[%s2115] sm:$0xff]
  %v5126 = vld [vmem:[%s2115 + $0x8] sm:$0xff]
  %v5127 = vld [vmem:[%s3206 + $0x2] sm:$0xff]
  %v5128 = vld [vmem:[%s3206 + $0xa] sm:$0x3]
  %v5129 = vld [vmem:[%s3206 + $0x12] sm:$0xff]
  %v5130 = vld [vmem:[%s3206 + $0x1a] sm:$0x3]
  %v5131 = vld [vmem:[%s3206 + $0x22] sm:$0xff]
  %v5132 = vld [vmem:[%s3206 + $0x2a] sm:$0x3]
  %v5133 = vld [vmem:[%s3206 + $0x32] sm:$0xff]
  %v5134 = vld [vmem:[%s3206 + $0x3a] sm:$0x3]
  %v5135 = vcombine.low %v5127, %v5131
  %v5136 = vcombine.high %v5127, %v5131
  %v5138 = vunpack.c.l.s4 1983009808
  %v5139 = vunpack.c.0.s8 %v5138
  %v5140 = vlaneseq
  %v5141 = vshrl.u32 %v5140, 7
  %v5142 = vsub.s32 %v5139, %v5141
  %v5143 = vrot.slane %v5135, %v5142
  %v5145 = vunpack.c.l.s4 1983009808
  %v5146 = vunpack.c.0.s8 %v5145
  %v5147 = vlaneseq
  %v5148 = vshrl.u32 %v5147, 7
  %v5149 = vsub.s32 %v5146, %v5148
  %v5150 = vrot.slane %v5136, %v5149
  %v5151 = vcombine.low %v5129, %v5133
  %v5152 = vcombine.high %v5129, %v5133
  %v5154 = vunpack.c.l.s4 1983009808
  %v5155 = vunpack.c.0.s8 %v5154
  %v5156 = vlaneseq
  %v5157 = vshrl.u32 %v5156, 7
  %v5158 = vsub.s32 %v5155, %v5157
  %v5159 = vrot.slane %v5151, %v5158
  %v5161 = vunpack.c.l.s4 1983009808
  %v5162 = vunpack.c.0.s8 %v5161
  %v5163 = vlaneseq
  %v5164 = vshrl.u32 %v5163, 7
  %v5165 = vsub.s32 %v5162, %v5164
  %v5166 = vrot.slane %v5152, %v5165
  %v5167 = vcombine.low %v5143, %v5159
  %v5168 = vcombine.high %v5143, %v5159
  %v5170 = vunpack.c.l.s4 1934713408
  %v5171 = vunpack.c.0.s8 %v5170
  %v5172 = vlaneseq
  %v5173 = vshrl.u32 %v5172, 7
  %v5174 = vsub.s32 %v5171, %v5173
  %v5175 = vrot.slane %v5167, %v5174
  %v5177 = vunpack.c.l.s4 1934713408
  %v5178 = vunpack.c.0.s8 %v5177
  %v5179 = vlaneseq
  %v5180 = vshrl.u32 %v5179, 7
  %v5181 = vsub.s32 %v5178, %v5180
  %v5182 = vrot.slane %v5168, %v5181
  %v5183 = vcombine.low %v5150, %v5166
  %v5184 = vcombine.high %v5150, %v5166
  %v5186 = vunpack.c.l.s4 1934713408
  %v5187 = vunpack.c.0.s8 %v5186
  %v5188 = vlaneseq
  %v5189 = vshrl.u32 %v5188, 7
  %v5190 = vsub.s32 %v5187, %v5189
  %v5191 = vrot.slane %v5183, %v5190
  %v5193 = vunpack.c.l.s4 1934713408
  %v5194 = vunpack.c.0.s8 %v5193
  %v5195 = vlaneseq
  %v5196 = vshrl.u32 %v5195, 7
  %v5197 = vsub.s32 %v5194, %v5196
  %v5198 = vrot.slane %v5184, %v5197
  %v5199 = vcombine.high %v5175, 0.0
  %v5200 = vcombine.high %v5182, 0.0
  %v5201 = vcombine.high %v5191, 0.0
  %v5202 = vcombine.high %v5198, 0.0
  %v5203 = vcombine.low %v5128, %v5132
  %v5205 = vunpack.c.l.s4 1983009808
  %v5206 = vunpack.c.0.s8 %v5205
  %v5207 = vlaneseq
  %v5208 = vshrl.u32 %v5207, 7
  %v5209 = vsub.s32 %v5206, %v5208
  %v5210 = vrot.slane %v5203, %v5209
  %v5211 = vcombine.low %v5130, %v5134
  %v5213 = vunpack.c.l.s4 1983009808
  %v5214 = vunpack.c.0.s8 %v5213
  %v5215 = vlaneseq
  %v5216 = vshrl.u32 %v5215, 7
  %v5217 = vsub.s32 %v5214, %v5216
  %v5218 = vrot.slane %v5211, %v5217
  %v5219 = vcombine.low %v5210, %v5218
  %v5221 = vunpack.c.l.s4 1934713408
  %v5222 = vunpack.c.0.s8 %v5221
  %v5223 = vlaneseq
  %v5224 = vshrl.u32 %v5223, 7
  %v5225 = vsub.s32 %v5222, %v5224
  %v5226 = vrot.slane %v5219, %v5225
  %v5227 = vcombine.high %v5226, 0.0
  %v5229 = vsel %vm295, %v5125, 0
  %v5232 = vsel %vm295, %v5126, 0
  %v5235 = vsel %vm302, %v5175, 0
  %v5238 = vsel %vm302, %v5199, 0
  %v5241 = vsel %vm302, %v5182, 0
  %v5244 = vsel %vm302, %v5200, 0
  %v5247 = vsel %vm302, %v5191, 0
  %v5250 = vsel %vm302, %v5201, 0
  %v5253 = vsel %vm302, %v5198, 0
  %v5256 = vsel %vm302, %v5202, 0
  %v5259 = vsel %vm302, %v5226, 0
  %v5262 = vsel %vm302, %v5227, 0
  %5264 = vmatprep.subr.mxu0 %v5238
  %5265 = vmatpush1.msra.mxu0 %v5235
  %5266 = vmatprep.subr.mxu0 0.0
  %5267 = vmatpush1.msra.mxu0 0.0
  %5268 = vmatprep.subr.mxu0 0.0
  %5269 = vmatpush1.msra.mxu0 0.0
  %5270 = vmatprep.subr.mxu0 0.0
  %5271 = vmatpush1.msra.mxu0 0.0
  %5272 = vmatprep.subr.mxu0 0.0
  %5273 = vmatpush1.msra.mxu0 0.0
  %5274 = vmatprep.subr.mxu0 0.0
  %5275 = vmatpush1.msra.mxu0 0.0
  %5276 = vmatprep.subr.mxu0 0.0
  %5277 = vmatpush1.msra.mxu0 0.0
  %5278 = vmatprep.subr.mxu0 0.0
  %5279 = vmatpush1.msra.mxu0 0.0
  %5280 = vmatprep.subr.mxu0 0.0
  %5281 = vmatpush1.msra.mxu0 0.0
  %5282 = vmatprep.subr.mxu0 0.0
  %5283 = vmatpush1.msra.mxu0 0.0
  %5284 = vmatprep.subr.mxu0 0.0
  %5285 = vmatpush1.msra.mxu0 0.0
  %5286 = vmatprep.subr.mxu0 0.0
  %5287 = vmatpush1.msra.mxu0 0.0
  %5288 = vmatprep.subr.mxu0 0.0
  %5289 = vmatpush1.msra.mxu0 0.0
  %5290 = vmatprep.subr.mxu0 0.0
  %5291 = vmatpush1.msra.mxu0 0.0
  %5292 = vmatprep.subr.mxu0 0.0
  %5293 = vmatpush1.msra.mxu0 0.0
  %5294 = vmatprep.subr.mxu0 0.0
  %5295 = vmatpush1.msra.mxu0 0.0
  %5296 = vmatprep.subr.mxu0 0.0
  %5297 = vmatpush1.msra.mxu0 0.0
  %5298 = vmatprep.subr.mxu0 0.0
  %5299 = vmatpush1.msra.mxu0 0.0
  %5300 = vmatprep.subr.mxu0 0.0
  %5301 = vmatpush1.msra.mxu0 0.0
  %5302 = vmatprep.subr.mxu0 0.0
  %5303 = vmatpush1.msra.mxu0 0.0
  %5304 = vmatprep.subr.mxu0 0.0
  %5305 = vmatpush1.msra.mxu0 0.0
  %5306 = vmatprep.subr.mxu0 0.0
  %5307 = vmatpush1.msra.mxu0 0.0
  %5308 = vmatprep.subr.mxu0 0.0
  %5309 = vmatpush1.msra.mxu0 0.0
  %5310 = vmatprep.subr.mxu0 0.0
  %5311 = vmatpush1.msra.mxu0 0.0
  %5312 = vmatprep.subr.mxu0 0.0
  %5313 = vmatpush1.msra.mxu0 0.0
  %5314 = vmatprep.subr.mxu0 0.0
  %5315 = vmatpush1.msra.mxu0 0.0
  %5316 = vmatprep.subr.mxu0 0.0
  %5317 = vmatpush1.msra.mxu0 0.0
  %5318 = vmatprep.subr.mxu0 0.0
  %5319 = vmatpush1.msra.mxu0 0.0
  %5320 = vmatprep.subr.mxu0 0.0
  %5321 = vmatpush1.msra.mxu0 0.0
  %5322 = vmatprep.subr.mxu0 0.0
  %5323 = vmatpush1.msra.mxu0 0.0
  %5324 = vmatprep.subr.mxu0 0.0
  %5325 = vmatpush1.msra.mxu0 0.0
  %5326 = vmatprep.subr.mxu0 0.0
  %5327 = vmatpush1.msra.mxu0 0.0
  %5328 = vmatprep.mubr.f32.mxu0 0.0
  %5329 = vmatmul.mubr.f32.gmra.mrb[0].mxu0 %v5229
  %v5330 = vpop.f32.mrb[0].mxu0
  %v5331 = vadd.f32 %v293, %v5330
  %v5332 = vpop.f32.mrb[0].mxu0
  %v5333 = vadd.f32 %v294, %v5332
  %5334 = vmatprep.mubr.f32.mxu0 0.0
  %5335 = vmatmul.mubr.f32.gmra.mrb[0].mxu0 %v5232
  %v5336 = vpop.f32.mrb[0].mxu0
  %v5337 = vadd.f32 %v293, %v5336
  %v5338 = vpop.f32.mrb[0].mxu0
  %v5339 = vadd.f32 %v294, %v5338
  %5340 = vdwg.mxu0
  %5341 = vmatprep.subr.mxu0 %v5244
  %5342 = vmatpush1.msra.mxu0 %v5241
  %5343 = vmatprep.subr.mxu0 0.0
  %5344 = vmatpush1.msra.mxu0 0.0
  %5345 = vmatprep.subr.mxu0 0.0
  %5346 = vmatpush1.msra.mxu0 0.0
  %5347 = vmatprep.subr.mxu0 0.0
  %5348 = vmatpush1.msra.mxu0 0.0
  %5349 = vmatprep.subr.mxu0 0.0
  %5350 = vmatpush1.msra.mxu0 0.0
  %5351 = vmatprep.subr.mxu0 0.0
  %5352 = vmatpush1.msra.mxu0 0.0
  %5353 = vmatprep.subr.mxu0 0.0
  %5354 = vmatpush1.msra.mxu0 0.0
  %5355 = vmatprep.subr.mxu0 0.0
  %5356 = vmatpush1.msra.mxu0 0.0
  %5357 = vmatprep.subr.mxu0 0.0
  %5358 = vmatpush1.msra.mxu0 0.0
  %5359 = vmatprep.subr.mxu0 0.0
  %5360 = vmatpush1.msra.mxu0 0.0
  %5361 = vmatprep.subr.mxu0 0.0
  %5362 = vmatpush1.msra.mxu0 0.0
  %5363 = vmatprep.subr.mxu0 0.0
  %5364 = vmatpush1.msra.mxu0 0.0
  %5365 = vmatprep.subr.mxu0 0.0
  %5366 = vmatpush1.msra.mxu0 0.0
  %5367 = vmatprep.subr.mxu0 0.0
  %5368 = vmatpush1.msra.mxu0 0.0
  %5369 = vmatprep.subr.mxu0 0.0
  %5370 = vmatpush1.msra.mxu0 0.0
  %5371 = vmatprep.subr.mxu0 0.0
  %5372 = vmatpush1.msra.mxu0 0.0
  %5373 = vmatprep.subr.mxu0 0.0
  %5374 = vmatpush1.msra.mxu0 0.0
  %5375 = vmatprep.subr.mxu0 0.0
  %5376 = vmatpush1.msra.mxu0 0.0
  %5377 = vmatprep.subr.mxu0 0.0
  %5378 = vmatpush1.msra.mxu0 0.0
  %5379 = vmatprep.subr.mxu0 0.0
  %5380 = vmatpush1.msra.mxu0 0.0
  %5381 = vmatprep.subr.mxu0 0.0
  %5382 = vmatpush1.msra.mxu0 0.0
  %5383 = vmatprep.subr.mxu0 0.0
  %5384 = vmatpush1.msra.mxu0 0.0
  %5385 = vmatprep.subr.mxu0 0.0
  %5386 = vmatpush1.msra.mxu0 0.0
  %5387 = vmatprep.subr.mxu0 0.0
  %5388 = vmatpush1.msra.mxu0 0.0
  %5389 = vmatprep.subr.mxu0 0.0
  %5390 = vmatpush1.msra.mxu0 0.0
  %5391 = vmatprep.subr.mxu0 0.0
  %5392 = vmatpush1.msra.mxu0 0.0
  %5393 = vmatprep.subr.mxu0 0.0
  %5394 = vmatpush1.msra.mxu0 0.0
  %5395 = vmatprep.subr.mxu0 0.0
  %5396 = vmatpush1.msra.mxu0 0.0
  %5397 = vmatprep.subr.mxu0 0.0
  %5398 = vmatpush1.msra.mxu0 0.0
  %5399 = vmatprep.subr.mxu0 0.0
  %5400 = vmatpush1.msra.mxu0 0.0
  %5401 = vmatprep.subr.mxu0 0.0
  %5402 = vmatpush1.msra.mxu0 0.0
  %5403 = vmatprep.subr.mxu0 0.0
  %5404 = vmatpush1.msra.mxu0 0.0
  %5405 = vmatprep.mubr.f32.mxu0 0.0
  %5406 = vmatmul.mubr.f32.gmra.mrb[0].mxu0 %v5229
  %v5407 = vpop.f32.mrb[0].mxu0
  %v5408 = vadd.f32 0.0, %v5407
  %v5409 = vpop.f32.mrb[0].mxu0
  %v5410 = vadd.f32 0.0, %v5409
  %5411 = vmatprep.mubr.f32.mxu0 0.0
  %5412 = vmatmul.mubr.f32.gmra.mrb[0].mxu0 %v5232
  %v5413 = vpop.f32.mrb[0].mxu0
  %v5414 = vadd.f32 0.0, %v5413
  %v5415 = vpop.f32.mrb[0].mxu0
  %v5416 = vadd.f32 0.0, %v5415
  %5417 = vdwg.mxu0
  %5418 = vmatprep.subr.mxu0 %v5250
  %5419 = vmatpush1.msra.mxu0 %v5247
  %5420 = vmatprep.subr.mxu0 0.0
  %5421 = vmatpush1.msra.mxu0 0.0
  %5422 = vmatprep.subr.mxu0 0.0
  %5423 = vmatpush1.msra.mxu0 0.0
  %5424 = vmatprep.subr.mxu0 0.0
  %5425 = vmatpush1.msra.mxu0 0.0
  %5426 = vmatprep.subr.mxu0 0.0
  %5427 = vmatpush1.msra.mxu0 0.0
  %5428 = vmatprep.subr.mxu0 0.0
  %5429 = vmatpush1.msra.mxu0 0.0
  %5430 = vmatprep.subr.mxu0 0.0
  %5431 = vmatpush1.msra.mxu0 0.0
  %5432 = vmatprep.subr.mxu0 0.0
  %5433 = vmatpush1.msra.mxu0 0.0
  %5434 = vmatprep.subr.mxu0 0.0
  %5435 = vmatpush1.msra.mxu0 0.0
  %5436 = vmatprep.subr.mxu0 0.0
  %5437 = vmatpush1.msra.mxu0 0.0
  %5438 = vmatprep.subr.mxu0 0.0
  %5439 = vmatpush1.msra.mxu0 0.0
  %5440 = vmatprep.subr.mxu0 0.0
  %5441 = vmatpush1.msra.mxu0 0.0
  %5442 = vmatprep.subr.mxu0 0.0
  %5443 = vmatpush1.msra.mxu0 0.0
  %5444 = vmatprep.subr.mxu0 0.0
  %5445 = vmatpush1.msra.mxu0 0.0
  %5446 = vmatprep.subr.mxu0 0.0
  %5447 = vmatpush1.msra.mxu0 0.0
  %5448 = vmatprep.subr.mxu0 0.0
  %5449 = vmatpush1.msra.mxu0 0.0
  %5450 = vmatprep.subr.mxu0 0.0
  %5451 = vmatpush1.msra.mxu0 0.0
  %5452 = vmatprep.subr.mxu0 0.0
  %5453 = vmatpush1.msra.mxu0 0.0
  %5454 = vmatprep.subr.mxu0 0.0
  %5455 = vmatpush1.msra.mxu0 0.0
  %5456 = vmatprep.subr.mxu0 0.0
  %5457 = vmatpush1.msra.mxu0 0.0
  %5458 = vmatprep.subr.mxu0 0.0
  %5459 = vmatpush1.msra.mxu0 0.0
  %5460 = vmatprep.subr.mxu0 0.0
  %5461 = vmatpush1.msra.mxu0 0.0
  %5462 = vmatprep.subr.mxu0 0.0
  %5463 = vmatpush1.msra.mxu0 0.0
  %5464 = vmatprep.subr.mxu0 0.0
  %5465 = vmatpush1.msra.mxu0 0.0
  %5466 = vmatprep.subr.mxu0 0.0
  %5467 = vmatpush1.msra.mxu0 0.0
  %5468 = vmatprep.subr.mxu0 0.0
  %5469 = vmatpush1.msra.mxu0 0.0
  %5470 = vmatprep.subr.mxu0 0.0
  %5471 = vmatpush1.msra.mxu0 0.0
  %5472 = vmatprep.subr.mxu0 0.0
  %5473 = vmatpush1.msra.mxu0 0.0
  %5474 = vmatprep.subr.mxu0 0.0
  %5475 = vmatpush1.msra.mxu0 0.0
  %5476 = vmatprep.subr.mxu0 0.0
  %5477 = vmatpush1.msra.mxu0 0.0
  %5478 = vmatprep.subr.mxu0 0.0
  %5479 = vmatpush1.msra.mxu0 0.0
  %5480 = vmatprep.subr.mxu0 0.0
  %5481 = vmatpush1.msra.mxu0 0.0
  %5482 = vmatprep.mubr.f32.mxu0 0.0
  %5483 = vmatmul.mubr.f32.gmra.mrb[0].mxu0 %v5229
  %v5484 = vpop.f32.mrb[0].mxu0
  %v5485 = vadd.f32 0.0, %v5484
  %v5486 = vpop.f32.mrb[0].mxu0
  %v5487 = vadd.f32 0.0, %v5486
  %5488 = vmatprep.mubr.f32.mxu0 0.0
  %5489 = vmatmul.mubr.f32.gmra.mrb[0].mxu0 %v5232
  %v5490 = vpop.f32.mrb[0].mxu0
  %v5491 = vadd.f32 0.0, %v5490
  %v5492 = vpop.f32.mrb[0].mxu0
  %v5493 = vadd.f32 0.0, %v5492
  %5494 = vdwg.mxu0
  %5495 = vmatprep.subr.mxu0 %v5256
  %5496 = vmatpush1.msra.mxu0 %v5253
  %5497 = vmatprep.subr.mxu0 0.0
  %5498 = vmatpush1.msra.mxu0 0.0
  %5499 = vmatprep.subr.mxu0 0.0
  %5500 = vmatpush1.msra.mxu0 0.0
  %5501 = vmatprep.subr.mxu0 0.0
  %5502 = vmatpush1.msra.mxu0 0.0
  %5503 = vmatprep.subr.mxu0 0.0
  %5504 = vmatpush1.msra.mxu0 0.0
  %5505 = vmatprep.subr.mxu0 0.0
  %5506 = vmatpush1.msra.mxu0 0.0
  %5507 = vmatprep.subr.mxu0 0.0
  %5508 = vmatpush1.msra.mxu0 0.0
  %5509 = vmatprep.subr.mxu0 0.0
  %5510 = vmatpush1.msra.mxu0 0.0
  %5511 = vmatprep.subr.mxu0 0.0
  %5512 = vmatpush1.msra.mxu0 0.0
  %5513 = vmatprep.subr.mxu0 0.0
  %5514 = vmatpush1.msra.mxu0 0.0
  %5515 = vmatprep.subr.mxu0 0.0
  %5516 = vmatpush1.msra.mxu0 0.0
  %5517 = vmatprep.subr.mxu0 0.0
  %5518 = vmatpush1.msra.mxu0 0.0
  %5519 = vmatprep.subr.mxu0 0.0
  %5520 = vmatpush1.msra.mxu0 0.0
  %5521 = vmatprep.subr.mxu0 0.0
  %5522 = vmatpush1.msra.mxu0 0.0
  %5523 = vmatprep.subr.mxu0 0.0
  %5524 = vmatpush1.msra.mxu0 0.0
  %5525 = vmatprep.subr.mxu0 0.0
  %5526 = vmatpush1.msra.mxu0 0.0
  %5527 = vmatprep.subr.mxu0 0.0
  %5528 = vmatpush1.msra.mxu0 0.0
  %5529 = vmatprep.subr.mxu0 0.0
  %5530 = vmatpush1.msra.mxu0 0.0
  %5531 = vmatprep.subr.mxu0 0.0
  %5532 = vmatpush1.msra.mxu0 0.0
  %5533 = vmatprep.subr.mxu0 0.0
  %5534 = vmatpush1.msra.mxu0 0.0
  %5535 = vmatprep.subr.mxu0 0.0
  %5536 = vmatpush1.msra.mxu0 0.0
  %5537 = vmatprep.subr.mxu0 0.0
  %5538 = vmatpush1.msra.mxu0 0.0
  %5539 = vmatprep.subr.mxu0 0.0
  %5540 = vmatpush1.msra.mxu0 0.0
  %5541 = vmatprep.subr.mxu0 0.0
  %5542 = vmatpush1.msra.mxu0 0.0
  %5543 = vmatprep.subr.mxu0 0.0
  %5544 = vmatpush1.msra.mxu0 0.0
  %5545 = vmatprep.subr.mxu0 0.0
  %5546 = vmatpush1.msra.mxu0 0.0
  %5547 = vmatprep.subr.mxu0 0.0
  %5548 = vmatpush1.msra.mxu0 0.0
  %5549 = vmatprep.subr.mxu0 0.0
  %5550 = vmatpush1.msra.mxu0 0.0
  %5551 = vmatprep.subr.mxu0 0.0
  %5552 = vmatpush1.msra.mxu0 0.0
  %5553 = vmatprep.subr.mxu0 0.0
  %5554 = vmatpush1.msra.mxu0 0.0
  %5555 = vmatprep.subr.mxu0 0.0
  %5556 = vmatpush1.msra.mxu0 0.0
  %5557 = vmatprep.subr.mxu0 0.0
  %5558 = vmatpush1.msra.mxu0 0.0
  %5559 = vmatprep.mubr.f32.mxu0 0.0
  %5560 = vmatmul.mubr.f32.gmra.mrb[0].mxu0 %v5229
  %v5561 = vpop.f32.mrb[0].mxu0
  %v5562 = vadd.f32 0.0, %v5561
  %v5563 = vpop.f32.mrb[0].mxu0
  %v5564 = vadd.f32 0.0, %v5563
  %5565 = vmatprep.mubr.f32.mxu0 0.0
  %5566 = vmatmul.mubr.f32.gmra.mrb[0].mxu0 %v5232
  %v5567 = vpop.f32.mrb[0].mxu0
  %v5568 = vadd.f32 0.0, %v5567
  %v5569 = vpop.f32.mrb[0].mxu0
  %v5570 = vadd.f32 0.0, %v5569
  %5571 = vdwg.mxu0
  %5572 = vmatprep.subr.mxu0 %v5262
  %5573 = vmatpush1.msra.mxu0 %v5259
  %5574 = vmatprep.subr.mxu0 0.0
  %5575 = vmatpush1.msra.mxu0 0.0
  %5576 = vmatprep.subr.mxu0 0.0
  %5577 = vmatpush1.msra.mxu0 0.0
  %5578 = vmatprep.subr.mxu0 0.0
  %5579 = vmatpush1.msra.mxu0 0.0
  %5580 = vmatprep.subr.mxu0 0.0
  %5581 = vmatpush1.msra.mxu0 0.0
  %5582 = vmatprep.subr.mxu0 0.0
  %5583 = vmatpush1.msra.mxu0 0.0
  %5584 = vmatprep.subr.mxu0 0.0
  %5585 = vmatpush1.msra.mxu0 0.0
  %5586 = vmatprep.subr.mxu0 0.0
  %5587 = vmatpush1.msra.mxu0 0.0
  %5588 = vmatprep.subr.mxu0 0.0
  %5589 = vmatpush1.msra.mxu0 0.0
  %5590 = vmatprep.subr.mxu0 0.0
  %5591 = vmatpush1.msra.mxu0 0.0
  %5592 = vmatprep.subr.mxu0 0.0
  %5593 = vmatpush1.msra.mxu0 0.0
  %5594 = vmatprep.subr.mxu0 0.0
  %5595 = vmatpush1.msra.mxu0 0.0
  %5596 = vmatprep.subr.mxu0 0.0
  %5597 = vmatpush1.msra.mxu0 0.0
  %5598 = vmatprep.subr.mxu0 0.0
  %5599 = vmatpush1.msra.mxu0 0.0
  %5600 = vmatprep.subr.mxu0 0.0
  %5601 = vmatpush1.msra.mxu0 0.0
  %5602 = vmatprep.subr.mxu0 0.0
  %5603 = vmatpush1.msra.mxu0 0.0
  %5604 = vmatprep.subr.mxu0 0.0
  %5605 = vmatpush1.msra.mxu0 0.0
  %5606 = vmatprep.subr.mxu0 0.0
  %5607 = vmatpush1.msra.mxu0 0.0
  %5608 = vmatprep.subr.mxu0 0.0
  %5609 = vmatpush1.msra.mxu0 0.0
  %5610 = vmatprep.subr.mxu0 0.0
  %5611 = vmatpush1.msra.mxu0 0.0
  %5612 = vmatprep.subr.mxu0 0.0
  %5613 = vmatpush1.msra.mxu0 0.0
  %5614 = vmatprep.subr.mxu0 0.0
  %5615 = vmatpush1.msra.mxu0 0.0
  %5616 = vmatprep.subr.mxu0 0.0
  %5617 = vmatpush1.msra.mxu0 0.0
  %5618 = vmatprep.subr.mxu0 0.0
  %5619 = vmatpush1.msra.mxu0 0.0
  %5620 = vmatprep.subr.mxu0 0.0
  %5621 = vmatpush1.msra.mxu0 0.0
  %5622 = vmatprep.subr.mxu0 0.0
  %5623 = vmatpush1.msra.mxu0 0.0
  %5624 = vmatprep.subr.mxu0 0.0
  %5625 = vmatpush1.msra.mxu0 0.0
  %5626 = vmatprep.subr.mxu0 0.0
  %5627 = vmatpush1.msra.mxu0 0.0
  %5628 = vmatprep.subr.mxu0 0.0
  %5629 = vmatpush1.msra.mxu0 0.0
  %5630 = vmatprep.subr.mxu0 0.0
  %5631 = vmatpush1.msra.mxu0 0.0
  %5632 = vmatprep.subr.mxu0 0.0
  %5633 = vmatpush1.msra.mxu0 0.0
  %5634 = vmatprep.subr.mxu0 0.0
  %5635 = vmatpush1.msra.mxu0 0.0
  %5636 = vmatprep.mubr.f32.mxu0 0.0
  %5637 = vmatmul.mubr.f32.gmra.mrb[0].mxu0 %v5229
  %v5638 = vpop.f32.mrb[0].mxu0
  %v5639 = vadd.f32 %v293, %v5638
  %v5640 = vpop.f32.mrb[0].mxu0
  %v5641 = vadd.f32 %v294, %v5640
  %5642 = vmatprep.mubr.f32.mxu0 0.0
  %5643 = vmatmul.mubr.f32.gmra.mrb[0].mxu0 %v5232
  %v5644 = vpop.f32.mrb[0].mxu0
  %v5645 = vadd.f32 %v293, %v5644
  %v5646 = vpop.f32.mrb[0].mxu0
  %v5647 = vadd.f32 %v294, %v5646
  %5648 = vdwg.mxu0
  %v5649 = vcombine.low %v5331, %v5408
  %v5650 = vcombine.high %v5331, %v5408
  %v5652 = vunpack.c.l.s4 1983009808
  %v5653 = vunpack.c.0.s8 %v5652
  %v5654 = vlaneseq
  %v5655 = vshrl.u32 %v5654, 7
  %v5656 = vsub.s32 %v5653, %v5655
  %v5657 = vrot.slane %v5649, %v5656
  %v5659 = vunpack.c.l.s4 1983009808
  %v5660 = vunpack.c.0.s8 %v5659
  %v5661 = vlaneseq
  %v5662 = vshrl.u32 %v5661, 7
  %v5663 = vsub.s32 %v5660, %v5662
  %v5664 = vrot.slane %v5650, %v5663
  %v5665 = vcombine.low %v5333, %v5410
  %v5666 = vcombine.high %v5333, %v5410
  %v5668 = vunpack.c.l.s4 1983009808
  %v5669 = vunpack.c.0.s8 %v5668
  %v5670 = vlaneseq
  %v5671 = vshrl.u32 %v5670, 7
  %v5672 = vsub.s32 %v5669, %v5671
  %v5673 = vrot.slane %v5665, %v5672
  %v5675 = vunpack.c.l.s4 1983009808
  %v5676 = vunpack.c.0.s8 %v5675
  %v5677 = vlaneseq
  %v5678 = vshrl.u32 %v5677, 7
  %v5679 = vsub.s32 %v5676, %v5678
  %v5680 = vrot.slane %v5666, %v5679
  %v5681 = vcombine.low %v5485, %v5562
  %v5682 = vcombine.high %v5485, %v5562
  %v5684 = vunpack.c.l.s4 1983009808
  %v5685 = vunpack.c.0.s8 %v5684
  %v5686 = vlaneseq
  %v5687 = vshrl.u32 %v5686, 7
  %v5688 = vsub.s32 %v5685, %v5687
  %v5689 = vrot.slane %v5681, %v5688
  %v5691 = vunpack.c.l.s4 1983009808
  %v5692 = vunpack.c.0.s8 %v5691
  %v5693 = vlaneseq
  %v5694 = vshrl.u32 %v5693, 7
  %v5695 = vsub.s32 %v5692, %v5694
  %v5696 = vrot.slane %v5682, %v5695
  %v5697 = vcombine.low %v5487, %v5564
  %v5698 = vcombine.high %v5487, %v5564
  %v5700 = vunpack.c.l.s4 1983009808
  %v5701 = vunpack.c.0.s8 %v5700
  %v5702 = vlaneseq
  %v5703 = vshrl.u32 %v5702, 7
  %v5704 = vsub.s32 %v5701, %v5703
  %v5705 = vrot.slane %v5697, %v5704
  %v5707 = vunpack.c.l.s4 1983009808
  %v5708 = vunpack.c.0.s8 %v5707
  %v5709 = vlaneseq
  %v5710 = vshrl.u32 %v5709, 7
  %v5711 = vsub.s32 %v5708, %v5710
  %v5712 = vrot.slane %v5698, %v5711
  %v5713 = vcombine.low %v5657, %v5673
  %v5714 = vcombine.high %v5657, %v5673
  %v5716 = vunpack.c.l.s4 1934713408
  %v5717 = vunpack.c.0.s8 %v5716
  %v5718 = vlaneseq
  %v5719 = vshrl.u32 %v5718, 7
  %v5720 = vsub.s32 %v5717, %v5719
  %v5721 = vrot.slane %v5713, %v5720
  %v5723 = vunpack.c.l.s4 1934713408
  %v5724 = vunpack.c.0.s8 %v5723
  %v5725 = vlaneseq
  %v5726 = vshrl.u32 %v5725, 7
  %v5727 = vsub.s32 %v5724, %v5726
  %v5728 = vrot.slane %v5714, %v5727
  %v5729 = vcombine.low %v5664, %v5680
  %v5730 = vcombine.high %v5664, %v5680
  %v5732 = vunpack.c.l.s4 1934713408
  %v5733 = vunpack.c.0.s8 %v5732
  %v5734 = vlaneseq
  %v5735 = vshrl.u32 %v5734, 7
  %v5736 = vsub.s32 %v5733, %v5735
  %v5737 = vrot.slane %v5729, %v5736
  %v5739 = vunpack.c.l.s4 1934713408
  %v5740 = vunpack.c.0.s8 %v5739
  %v5741 = vlaneseq
  %v5742 = vshrl.u32 %v5741, 7
  %v5743 = vsub.s32 %v5740, %v5742
  %v5744 = vrot.slane %v5730, %v5743
  %v5745 = vcombine.low %v5689, %v5705
  %v5746 = vcombine.high %v5689, %v5705
  %v5748 = vunpack.c.l.s4 1934713408
  %v5749 = vunpack.c.0.s8 %v5748
  %v5750 = vlaneseq
  %v5751 = vshrl.u32 %v5750, 7
  %v5752 = vsub.s32 %v5749, %v5751
  %v5753 = vrot.slane %v5745, %v5752
  %v5755 = vunpack.c.l.s4 1934713408
  %v5756 = vunpack.c.0.s8 %v5755
  %v5757 = vlaneseq
  %v5758 = vshrl.u32 %v5757, 7
  %v5759 = vsub.s32 %v5756, %v5758
  %v5760 = vrot.slane %v5746, %v5759
  %v5761 = vcombine.low %v5696, %v5712
  %v5762 = vcombine.high %v5696, %v5712
  %v5764 = vunpack.c.l.s4 1934713408
  %v5765 = vunpack.c.0.s8 %v5764
  %v5766 = vlaneseq
  %v5767 = vshrl.u32 %v5766, 7
  %v5768 = vsub.s32 %v5765, %v5767
  %v5769 = vrot.slane %v5761, %v5768
  %v5771 = vunpack.c.l.s4 1934713408
  %v5772 = vunpack.c.0.s8 %v5771
  %v5773 = vlaneseq
  %v5774 = vshrl.u32 %v5773, 7
  %v5775 = vsub.s32 %v5772, %v5774
  %v5776 = vrot.slane %v5762, %v5775
  %v5777 = vcombine.low %v5721, %v5753
  %v5778 = vcombine.high %v5721, %v5753
  %v5779 = vcombine.low %v5728, %v5760
  %v5780 = vcombine.high %v5728, %v5760
  %v5781 = vcombine.low %v5737, %v5769
  %v5782 = vcombine.high %v5737, %v5769
  %v5783 = vcombine.low %v5744, %v5776
  %v5784 = vcombine.high %v5744, %v5776
  %v5785 = vcombine.high %v5639, 0.0
  %v5787 = vunpack.c.l.s4 1983009808
  %v5788 = vunpack.c.0.s8 %v5787
  %v5789 = vlaneseq
  %v5790 = vshrl.u32 %v5789, 7
  %v5791 = vsub.s32 %v5788, %v5790
  %v5792 = vrot.slane %v5639, %v5791
  %v5794 = vunpack.c.l.s4 1983009808
  %v5795 = vunpack.c.0.s8 %v5794
  %v5796 = vlaneseq
  %v5797 = vshrl.u32 %v5796, 7
  %v5798 = vsub.s32 %v5795, %v5797
  %v5799 = vrot.slane %v5785, %v5798
  %v5800 = vcombine.high %v5641, 0.0
  %v5802 = vunpack.c.l.s4 1983009808
  %v5803 = vunpack.c.0.s8 %v5802
  %v5804 = vlaneseq
  %v5805 = vshrl.u32 %v5804, 7
  %v5806 = vsub.s32 %v5803, %v5805
  %v5807 = vrot.slane %v5641, %v5806
  %v5809 = vunpack.c.l.s4 1983009808
  %v5810 = vunpack.c.0.s8 %v5809
  %v5811 = vlaneseq
  %v5812 = vshrl.u32 %v5811, 7
  %v5813 = vsub.s32 %v5810, %v5812
  %v5814 = vrot.slane %v5800, %v5813
  %v5815 = vcombine.low %v5792, %v5807
  %v5816 = vcombine.high %v5792, %v5807
  %v5818 = vunpack.c.l.s4 1934713408
  %v5819 = vunpack.c.0.s8 %v5818
  %v5820 = vlaneseq
  %v5821 = vshrl.u32 %v5820, 7
  %v5822 = vsub.s32 %v5819, %v5821
  %v5823 = vrot.slane %v5815, %v5822
  %v5825 = vunpack.c.l.s4 1934713408
  %v5826 = vunpack.c.0.s8 %v5825
  %v5827 = vlaneseq
  %v5828 = vshrl.u32 %v5827, 7
  %v5829 = vsub.s32 %v5826, %v5828
  %v5830 = vrot.slane %v5816, %v5829
  %v5831 = vcombine.low %v5799, %v5814
  %v5832 = vcombine.high %v5799, %v5814
  %v5834 = vunpack.c.l.s4 1934713408
  %v5835 = vunpack.c.0.s8 %v5834
  %v5836 = vlaneseq
  %v5837 = vshrl.u32 %v5836, 7
  %v5838 = vsub.s32 %v5835, %v5837
  %v5839 = vrot.slane %v5831, %v5838
  %v5841 = vunpack.c.l.s4 1934713408
  %v5842 = vunpack.c.0.s8 %v5841
  %v5843 = vlaneseq
  %v5844 = vshrl.u32 %v5843, 7
  %v5845 = vsub.s32 %v5842, %v5844
  %v5846 = vrot.slane %v5832, %v5845
  %v5847 = vcombine.high %v5823, 0.0
  %v5848 = vcombine.high %v5830, 0.0
  %v5849 = vcombine.high %v5839, 0.0
  %v5850 = vcombine.high %v5846, 0.0
  %v5851 = vcombine.low %v5337, %v5414
  %v5852 = vcombine.high %v5337, %v5414
  %v5854 = vunpack.c.l.s4 1983009808
  %v5855 = vunpack.c.0.s8 %v5854
  %v5856 = vlaneseq
  %v5857 = vshrl.u32 %v5856, 7
  %v5858 = vsub.s32 %v5855, %v5857
  %v5859 = vrot.slane %v5851, %v5858
  %v5861 = vunpack.c.l.s4 1983009808
  %v5862 = vunpack.c.0.s8 %v5861
  %v5863 = vlaneseq
  %v5864 = vshrl.u32 %v5863, 7
  %v5865 = vsub.s32 %v5862, %v5864
  %v5866 = vrot.slane %v5852, %v5865
  %v5867 = vcombine.low %v5339, %v5416
  %v5868 = vcombine.high %v5339, %v5416
  %v5870 = vunpack.c.l.s4 1983009808
  %v5871 = vunpack.c.0.s8 %v5870
  %v5872 = vlaneseq
  %v5873 = vshrl.u32 %v5872, 7
  %v5874 = vsub.s32 %v5871, %v5873
  %v5875 = vrot.slane %v5867, %v5874
  %v5877 = vunpack.c.l.s4 1983009808
  %v5878 = vunpack.c.0.s8 %v5877
  %v5879 = vlaneseq
  %v5880 = vshrl.u32 %v5879, 7
  %v5881 = vsub.s32 %v5878, %v5880
  %v5882 = vrot.slane %v5868, %v5881
  %v5883 = vcombine.low %v5491, %v5568
  %v5884 = vcombine.high %v5491, %v5568
  %v5886 = vunpack.c.l.s4 1983009808
  %v5887 = vunpack.c.0.s8 %v5886
  %v5888 = vlaneseq
  %v5889 = vshrl.u32 %v5888, 7
  %v5890 = vsub.s32 %v5887, %v5889
  %v5891 = vrot.slane %v5883, %v5890
  %v5893 = vunpack.c.l.s4 1983009808
  %v5894 = vunpack.c.0.s8 %v5893
  %v5895 = vlaneseq
  %v5896 = vshrl.u32 %v5895, 7
  %v5897 = vsub.s32 %v5894, %v5896
  %v5898 = vrot.slane %v5884, %v5897
  %v5899 = vcombine.low %v5493, %v5570
  %v5900 = vcombine.high %v5493, %v5570
  %v5902 = vunpack.c.l.s4 1983009808
  %v5903 = vunpack.c.0.s8 %v5902
  %v5904 = vlaneseq
  %v5905 = vshrl.u32 %v5904, 7
  %v5906 = vsub.s32 %v5903, %v5905
  %v5907 = vrot.slane %v5899, %v5906
  %v5909 = vunpack.c.l.s4 1983009808
  %v5910 = vunpack.c.0.s8 %v5909
  %v5911 = vlaneseq
  %v5912 = vshrl.u32 %v5911, 7
  %v5913 = vsub.s32 %v5910, %v5912
  %v5914 = vrot.slane %v5900, %v5913
  %v5915 = vcombine.low %v5859, %v5875
  %v5916 = vcombine.high %v5859, %v5875
  %v5918 = vunpack.c.l.s4 1934713408
  %v5919 = vunpack.c.0.s8 %v5918
  %v5920 = vlaneseq
  %v5921 = vshrl.u32 %v5920, 7
  %v5922 = vsub.s32 %v5919, %v5921
  %v5923 = vrot.slane %v5915, %v5922
  %v5925 = vunpack.c.l.s4 1934713408
  %v5926 = vunpack.c.0.s8 %v5925
  %v5927 = vlaneseq
  %v5928 = vshrl.u32 %v5927, 7
  %v5929 = vsub.s32 %v5926, %v5928
  %v5930 = vrot.slane %v5916, %v5929
  %v5931 = vcombine.low %v5866, %v5882
  %v5932 = vcombine.high %v5866, %v5882
  %v5934 = vunpack.c.l.s4 1934713408
  %v5935 = vunpack.c.0.s8 %v5934
  %v5936 = vlaneseq
  %v5937 = vshrl.u32 %v5936, 7
  %v5938 = vsub.s32 %v5935, %v5937
  %v5939 = vrot.slane %v5931, %v5938
  %v5941 = vunpack.c.l.s4 1934713408
  %v5942 = vunpack.c.0.s8 %v5941
  %v5943 = vlaneseq
  %v5944 = vshrl.u32 %v5943, 7
  %v5945 = vsub.s32 %v5942, %v5944
  %v5946 = vrot.slane %v5932, %v5945
  %v5947 = vcombine.low %v5891, %v5907
  %v5948 = vcombine.high %v5891, %v5907
  %v5950 = vunpack.c.l.s4 1934713408
  %v5951 = vunpack.c.0.s8 %v5950
  %v5952 = vlaneseq
  %v5953 = vshrl.u32 %v5952, 7
  %v5954 = vsub.s32 %v5951, %v5953
  %v5955 = vrot.slane %v5947, %v5954
  %v5957 = vunpack.c.l.s4 1934713408
  %v5958 = vunpack.c.0.s8 %v5957
  %v5959 = vlaneseq
  %v5960 = vshrl.u32 %v5959, 7
  %v5961 = vsub.s32 %v5958, %v5960
  %v5962 = vrot.slane %v5948, %v5961
  %v5963 = vcombine.low %v5898, %v5914
  %v5964 = vcombine.high %v5898, %v5914
  %v5966 = vunpack.c.l.s4 1934713408
  %v5967 = vunpack.c.0.s8 %v5966
  %v5968 = vlaneseq
  %v5969 = vshrl.u32 %v5968, 7
  %v5970 = vsub.s32 %v5967, %v5969
  %v5971 = vrot.slane %v5963, %v5970
  %v5973 = vunpack.c.l.s4 1934713408
  %v5974 = vunpack.c.0.s8 %v5973
  %v5975 = vlaneseq
  %v5976 = vshrl.u32 %v5975, 7
  %v5977 = vsub.s32 %v5974, %v5976
  %v5978 = vrot.slane %v5964, %v5977
  %v5979 = vcombine.low %v5923, %v5955
  %v5980 = vcombine.high %v5923, %v5955
  %v5981 = vcombine.low %v5930, %v5962
  %v5982 = vcombine.high %v5930, %v5962
  %v5983 = vcombine.low %v5939, %v5971
  %v5984 = vcombine.high %v5939, %v5971
  %v5985 = vcombine.low %v5946, %v5978
  %v5986 = vcombine.high %v5946, %v5978
  %v5987 = vcombine.high %v5645, 0.0
  %v5989 = vunpack.c.l.s4 1983009808
  %v5990 = vunpack.c.0.s8 %v5989
  %v5991 = vlaneseq
  %v5992 = vshrl.u32 %v5991, 7
  %v5993 = vsub.s32 %v5990, %v5992
  %v5994 = vrot.slane %v5645, %v5993
  %v5996 = vunpack.c.l.s4 1983009808
  %v5997 = vunpack.c.0.s8 %v5996
  %v5998 = vlaneseq
  %v5999 = vshrl.u32 %v5998, 7
  %v6000 = vsub.s32 %v5997, %v5999
  %v6001 = vrot.slane %v5987, %v6000
  %v6002 = vcombine.high %v5647, 0.0
  %v6004 = vunpack.c.l.s4 1983009808
  %v6005 = vunpack.c.0.s8 %v6004
  %v6006 = vlaneseq
  %v6007 = vshrl.u32 %v6006, 7
  %v6008 = vsub.s32 %v6005, %v6007
  %v6009 = vrot.slane %v5647, %v6008
  %v6011 = vunpack.c.l.s4 1983009808
  %v6012 = vunpack.c.0.s8 %v6011
  %v6013 = vlaneseq
  %v6014 = vshrl.u32 %v6013, 7
  %v6015 = vsub.s32 %v6012, %v6014
  %v6016 = vrot.slane %v6002, %v6015
  %v6017 = vcombine.low %v5994, %v6009
  %v6018 = vcombine.high %v5994, %v6009
  %v6020 = vunpack.c.l.s4 1934713408
  %v6021 = vunpack.c.0.s8 %v6020
  %v6022 = vlaneseq
  %v6023 = vshrl.u32 %v6022, 7
  %v6024 = vsub.s32 %v6021, %v6023
  %v6025 = vrot.slane %v6017, %v6024
  %v6027 = vunpack.c.l.s4 1934713408
  %v6028 = vunpack.c.0.s8 %v6027
  %v6029 = vlaneseq
  %v6030 = vshrl.u32 %v6029, 7
  %v6031 = vsub.s32 %v6028, %v6030
  %v6032 = vrot.slane %v6018, %v6031
  %v6033 = vcombine.low %v6001, %v6016
  %v6034 = vcombine.high %v6001, %v6016
  %v6036 = vunpack.c.l.s4 1934713408
  %v6037 = vunpack.c.0.s8 %v6036
  %v6038 = vlaneseq
  %v6039 = vshrl.u32 %v6038, 7
  %v6040 = vsub.s32 %v6037, %v6039
  %v6041 = vrot.slane %v6033, %v6040
  %v6043 = vunpack.c.l.s4 1934713408
  %v6044 = vunpack.c.0.s8 %v6043
  %v6045 = vlaneseq
  %v6046 = vshrl.u32 %v6045, 7
  %v6047 = vsub.s32 %v6044, %v6046
  %v6048 = vrot.slane %v6034, %v6047
  %v6049 = vcombine.high %v6025, 0.0
  %v6050 = vcombine.high %v6032, 0.0
  %v6051 = vcombine.high %v6041, 0.0
  %v6052 = vcombine.high %v6048, 0.0
  %v6053 = vadd.f32 %v5093, %v5777
  %v6054 = vadd.f32 %v5094, %v5823
  %v6055 = vadd.f32 %v5095, %v5778
  %v6056 = vadd.f32 %v5096, %v5847
  %v6057 = vadd.f32 %v5097, %v5779
  %v6058 = vadd.f32 %v5098, %v5830
  %v6059 = vadd.f32 %v5099, %v5780
  %v6060 = vadd.f32 %v5100, %v5848
  %v6061 = vadd.f32 %v5101, %v5781
  %v6062 = vadd.f32 %v5102, %v5839
  %v6063 = vadd.f32 %v5103, %v5782
  %v6064 = vadd.f32 %v5104, %v5849
  %v6065 = vadd.f32 %v5105, %v5783
  %v6066 = vadd.f32 %v5106, %v5846
  %v6067 = vadd.f32 %v5107, %v5784
  %v6068 = vadd.f32 %v5108, %v5850
  %v6069 = vadd.f32 %v5109, %v5979
  %v6070 = vadd.f32 %v5110, %v6025
  %v6071 = vadd.f32 %v5111, %v5980
  %v6072 = vadd.f32 %v5112, %v6049
  %v6073 = vadd.f32 %v5113, %v5981
  %v6074 = vadd.f32 %v5114, %v6032
  %v6075 = vadd.f32 %v5115, %v5982
  %v6076 = vadd.f32 %v5116, %v6050
  %v6077 = vadd.f32 %v5117, %v5983
  %v6078 = vadd.f32 %v5118, %v6041
  %v6079 = vadd.f32 %v5119, %v5984
  %v6080 = vadd.f32 %v5120, %v6051
  %v6081 = vadd.f32 %v5121, %v5985
  %v6082 = vadd.f32 %v5122, %v6048
  %v6083 = vadd.f32 %v5123, %v5986
  %v6084 = vadd.f32 %v5124, %v6052
  %v6085 = vxor.u32 %v6069, 2147483648
  %v6086 = vxor.u32 %v6070, 2147483648
  %v6087 = vxor.u32 %v6071, 2147483648
  %v6088 = vxor.u32 %v6072, 2147483648
  %v6089 = vxor.u32 %v6073, 2147483648
  %v6090 = vxor.u32 %v6074, 2147483648
  %v6091 = vxor.u32 %v6075, 2147483648
  %v6092 = vxor.u32 %v6076, 2147483648
  %v6093 = vxor.u32 %v6077, 2147483648
  %v6094 = vxor.u32 %v6078, 2147483648
  %v6095 = vxor.u32 %v6079, 2147483648
  %v6096 = vxor.u32 %v6080, 2147483648
  %v6097 = vxor.u32 %v6081, 2147483648
  %v6098 = vxor.u32 %v6082, 2147483648
  %v6099 = vxor.u32 %v6083, 2147483648
  %v6100 = vxor.u32 %v6084, 2147483648
  %v6101 = vmul.f32 %v6085, 1.442695
  %v6102 = vpow.pop %v6101
  %v6103 = vmul.f32 %v6086, 1.442695
  %v6104 = vpow.pop %v6103
  %v6105 = vmul.f32 %v6087, 1.442695
  %v6106 = vpow.pop %v6105
  %v6107 = vmul.f32 %v6088, 1.442695
  %v6108 = vpow.pop %v6107
  %v6109 = vmul.f32 %v6089, 1.442695
  %v6110 = vpow.pop %v6109
  %v6111 = vmul.f32 %v6090, 1.442695
  %v6112 = vpow.pop %v6111
  %v6113 = vmul.f32 %v6091, 1.442695
  %v6114 = vpow.pop %v6113
  %v6115 = vmul.f32 %v6092, 1.442695
  %v6116 = vpow.pop %v6115
  %v6117 = vmul.f32 %v6093, 1.442695
  %v6118 = vpow.pop %v6117
  %v6119 = vmul.f32 %v6094, 1.442695
  %v6120 = vpow.pop %v6119
  %v6121 = vmul.f32 %v6095, 1.442695
  %v6122 = vpow.pop %v6121
  %v6123 = vmul.f32 %v6096, 1.442695
  %v6124 = vpow.pop %v6123
  %v6125 = vmul.f32 %v6097, 1.442695
  %v6126 = vpow.pop %v6125
  %v6127 = vmul.f32 %v6098, 1.442695
  %v6128 = vpow.pop %v6127
  %v6129 = vmul.f32 %v6099, 1.442695
  %v6130 = vpow.pop %v6129
  %v6131 = vmul.f32 %v6100, 1.442695
  %v6132 = vpow.pop %v6131
  %v6133 = vadd.f32 %v6102, 1.0
  %v6134 = vadd.f32 %v6104, 1.0
  %v6135 = vadd.f32 %v6106, 1.0
  %v6136 = vadd.f32 %v6108, 1.0
  %v6137 = vadd.f32 %v6110, 1.0
  %v6138 = vadd.f32 %v6112, 1.0
  %v6139 = vadd.f32 %v6114, 1.0
  %v6140 = vadd.f32 %v6116, 1.0
  %v6141 = vadd.f32 %v6118, 1.0
  %v6142 = vadd.f32 %v6120, 1.0
  %v6143 = vadd.f32 %v6122, 1.0
  %v6144 = vadd.f32 %v6124, 1.0
  %v6145 = vadd.f32 %v6126, 1.0
  %v6146 = vadd.f32 %v6128, 1.0
  %v6147 = vadd.f32 %v6130, 1.0
  %v6148 = vadd.f32 %v6132, 1.0
  %v6149 = vrcp.pop %v6133
  %v6150 = vmul.f32 1.0, %v6149
  %v6151 = vrcp.pop %v6134
  %v6152 = vmul.f32 1.0, %v6151
  %v6153 = vrcp.pop %v6135
  %v6154 = vmul.f32 1.0, %v6153
  %v6155 = vrcp.pop %v6136
  %v6156 = vmul.f32 1.0, %v6155
  %v6157 = vrcp.pop %v6137
  %v6158 = vmul.f32 1.0, %v6157
  %v6159 = vrcp.pop %v6138
  %v6160 = vmul.f32 1.0, %v6159
  %v6161 = vrcp.pop %v6139
  %v6162 = vmul.f32 1.0, %v6161
  %v6163 = vrcp.pop %v6140
  %v6164 = vmul.f32 1.0, %v6163
  %v6165 = vrcp.pop %v6141
  %v6166 = vmul.f32 1.0, %v6165
  %v6167 = vrcp.pop %v6142
  %v6168 = vmul.f32 1.0, %v6167
  %v6169 = vrcp.pop %v6143
  %v6170 = vmul.f32 1.0, %v6169
  %v6171 = vrcp.pop %v6144
  %v6172 = vmul.f32 1.0, %v6171
  %v6173 = vrcp.pop %v6145
  %v6174 = vmul.f32 1.0, %v6173
  %v6175 = vrcp.pop %v6146
  %v6176 = vmul.f32 1.0, %v6175
  %v6177 = vrcp.pop %v6147
  %v6178 = vmul.f32 1.0, %v6177
  %v6179 = vrcp.pop %v6148
  %v6180 = vmul.f32 1.0, %v6179
  %v6181 = vmul.f32 %v6053, %v6150
  %v6182 = vmul.f32 %v6054, %v6152
  %v6183 = vmul.f32 %v6055, %v6154
  %v6184 = vmul.f32 %v6056, %v6156
  %v6185 = vmul.f32 %v6057, %v6158
  %v6186 = vmul.f32 %v6058, %v6160
  %v6187 = vmul.f32 %v6059, %v6162
  %v6188 = vmul.f32 %v6060, %v6164
  %v6189 = vmul.f32 %v6061, %v6166
  %v6190 = vmul.f32 %v6062, %v6168
  %v6191 = vmul.f32 %v6063, %v6170
  %v6192 = vmul.f32 %v6064, %v6172
  %v6193 = vmul.f32 %v6065, %v6174
  %v6194 = vmul.f32 %v6066, %v6176
  %v6195 = vmul.f32 %v6067, %v6178
  %v6196 = vmul.f32 %v6068, %v6180
  %s6197 = scalar_lea.vmem %s3, 128
  %6198 = vst [vmem:[%s6197] sm:$0xff] %v6181
  %6199 = vst [vmem:[%s6197 + $0x8] sm:$0x3] %v6182
  %6200 = vst [vmem:[%s6197 + $0x10] sm:$0xff] %v6183
  %6201 = vst [vmem:[%s6197 + $0x18] sm:$0x3] %v6184
  %6202 = vst [vmem:[%s6197 + $0x20] sm:$0xff] %v6185
  %6203 = vst [vmem:[%s6197 + $0x28] sm:$0x3] %v6186
  %6204 = vst [vmem:[%s6197 + $0x30] sm:$0xff] %v6187
  %6205 = vst [vmem:[%s6197 + $0x38] sm:$0x3] %v6188
  %6206 = vst [vmem:[%s6197 + $0x40] sm:$0xff] %v6189
  %6207 = vst [vmem:[%s6197 + $0x48] sm:$0x3] %v6190
  %6208 = vst [vmem:[%s6197 + $0x50] sm:$0xff] %v6191
  %6209 = vst [vmem:[%s6197 + $0x58] sm:$0x3] %v6192
  %6210 = vst [vmem:[%s6197 + $0x60] sm:$0xff] %v6193
  %6211 = vst [vmem:[%s6197 + $0x68] sm:$0x3] %v6194
  %6212 = vst [vmem:[%s6197 + $0x70] sm:$0xff] %v6195
  %6213 = vst [vmem:[%s6197 + $0x78] sm:$0x3] %v6196
  // Predicated region
  $region14: #{tpu_custom_call.1} parent=0 // pred_check
    _
  $region15: #{tpu_custom_call.1} parent=0 // pred_check_branch
    %6215 = sbr.rel (0) target = $region17
  $region16: #{tpu_custom_call.1} parent=0 // pred_region
    _
  $region17: #{tpu_custom_call.1} parent=0 // pred_fallthru
    _
  // Predicated region
  $region18: #{tpu_custom_call.1} parent=0 // pred_check
    _
  $region19: #{tpu_custom_call.1} parent=0 // pred_check_branch
    %6217 = sbr.rel (0) target = $region21
  $region20: #{tpu_custom_call.1} parent=0 // pred_region
    _
  $region21: #{tpu_custom_call.1} parent=0 // pred_fallthru
    _

</llo_original>
